<compile_context>
chip_gen: v7x
topology: tpu7x:2x2x1
jax: 0.10.0
libtpu: 0.0.40
codegen_flags: <defaults>
</compile_context>

<pallas_src>
import functools

import jax
import jax.numpy as jnp
from jax.experimental import pallas as pl
from jax.experimental.pallas import tpu as pltpu


def _round_up(x, m):
    return ((x + m - 1) // m) * m


def _cdiv(a, b):
    return (a + b - 1) // b


def _vmem_budget():
    """(vmem_limit_bytes, per-buffer byte budget) selected per TPU generation."""
    try:
        cap = int(pltpu.get_tpu_info().vmem_capacity_bytes)
    except Exception:
        cap = 64 * 1024 * 1024
    if cap >= 100 * 1024 * 1024:                  # v5e / v6e: 128 MiB physical
        return 96 * 1024 * 1024, 6 * 1024 * 1024
    return 48 * 1024 * 1024, 3 * 1024 * 1024      # v7x: 64 MiB physical


def _pick_row_tile(n_rows, row_bytes, budget, min_steps=1, cap=4096):
    """Byte-based row tile: as large as the double-buffer budget allows, while
    keeping >= min_steps grid steps (v7x megacore) when the data allows it."""
    tm = budget // max(1, 2 * row_bytes)
    if min_steps > 1:
        tm = min(tm, _cdiv(n_rows, min_steps))
    tm = min(tm, cap, max(n_rows, 8))
    return max(8, (tm // 8) * 8)


# ----------------------------- Pallas kernels ------------------------------

def _stats_kernel(xf_ref, shift_ref, s_ref, ss_ref):
    # Fused shifted sum / sum-of-squares over rows of the lane-folded slab.
    # Grid = (2 core-halves [parallel], row tiles [arbitrary, resident acc]).
    @pl.when(pl.program_id(1) == 0)
    def _init():
        s_ref[...] = jnp.zeros_like(s_ref)
        ss_ref[...] = jnp.zeros_like(ss_ref)

    diff = xf_ref[...] - shift_ref[...]
    s_ref[...] = s_ref[...] + jnp.sum(diff, axis=0, keepdims=True)
    ss_ref[...] = ss_ref[...] + jnp.sum(diff * diff, axis=0, keepdims=True)


def _bn_relu_kernel(xf_ref, scale_ref, shift_ref, y_ref):
    # Per-channel affine (batchnorm) + ReLU on the lane-folded slab; f32
    # compute (v5e has no bf16 VPU), bf16 store.
    y = xf_ref[...] * scale_ref[...] + shift_ref[...]
    y_ref[...] = jnp.maximum(y, 0.0).astype(y_ref.dtype)


def _make_conv_kernel(tm, tap_offsets):
    # Dilated 3x3 conv over the flattened padded activation: two consecutive
    # row blocks form a halo window; 9 statically-offset slices are matmul'd
    # against resident per-tap weights and accumulated in f32 VMEM scratch.
    def kernel(a_ref, b_ref, w_ref, bias_ref, o_ref, acc_ref):
        kc = pl.program_id(1)

        @pl.when(kc == 0)
        def _init():
            acc_ref[...] = jnp.zeros_like(acc_ref)

        win = jnp.concatenate([a_ref[...], b_ref[...]], axis=0)
        acc = acc_ref[...]
        for t, off in enumerate(tap_offsets):
            acc = acc + jnp.dot(win[off:off + tm, :], w_ref[t],
                                preferred_element_type=jnp.float32)
        acc_ref[...] = acc

        @pl.when(kc == pl.num_programs(1) - 1)
        def _finalize():
            o_ref[...] = (acc_ref[...] + bias_ref[...]).astype(o_ref.dtype)

    return kernel


# ------------------------------- wrapper ------------------------------------

@functools.partial(jax.jit, static_argnames=("dilation", "eps"))
def brc_caspp_forward(x_nchw, gamma, beta, weight_oihw, bias, dilation, eps=1e-5):
    N, Cin, H, W = x_nchw.shape
    Cout = weight_oihw.shape[0]
    d = int(dilation)
    M = N * H * W

    vmem_limit, buf_budget = _vmem_budget()

    def _params(sem):
        return pltpu.CompilerParams(dimension_semantics=sem,
                                    vmem_limit_bytes=vmem_limit)

    x = jnp.transpose(x_nchw, (0, 2, 3, 1)).astype(jnp.float32)      # NHWC
    x2d = x.reshape(M, Cin)

    # ---- lane folding: (M, Cin) -> (Mf, f*Cin), f = 128 // Cin --------------
    f = max(1, 128 // Cin)
    CL = f * Cin
    Mf = _cdiv(M, f)
    tm_s = _pick_row_tile(Mf, CL * 4, buf_budget, min_steps=4)
    Mf_p = _round_up(Mf, 2 * tm_s)            # even #tiles -> 2-way core split
    Mp = Mf_p * f
    npad = Mp - M
    xf = jnp.pad(x2d, ((0, npad), (0, 0))).reshape(Mf_p, CL)
    nt_half = Mf_p // (2 * tm_s)

    # common per-channel shift (first pixel) keeps the fused sum/sumsq
    # well-conditioned (no catastrophic cancellation in var).
    shift_c = x2d[0, :]                                   # (Cin,)
    shift_f = jnp.tile(shift_c[None, :], (1, f))          # (1, CL)

    # ---- pass 1 (Pallas): fused shifted sum + sum-of-squares ----------------
    s_out, ss_out = pl.pallas_call(
        _stats_kernel,
        out_shape=(jax.ShapeDtypeStruct((16, CL), jnp.float32),
                   jax.ShapeDtypeStruct((16, CL), jnp.float32)),
        grid=(2, nt_half),
        in_specs=[pl.BlockSpec((tm_s, CL), lambda c, i: (c * nt_half + i, 0)),
                  pl.BlockSpec((1, CL), lambda c, i: (0, 0))],
        out_specs=[pl.BlockSpec((8, CL), lambda c, i: (c, 0)),
                   pl.BlockSpec((8, CL), lambda c, i: (c, 0))],
        compiler_params=_params(("parallel", "arbitrary")),
    )(xf, shift_f)

    # fold the 2 core-halves and the f lane groups back to per-channel values
    s_all = s_out.reshape(2, 8, CL)[:, 0, :].sum(axis=0).reshape(f, Cin).sum(axis=0)
    ss_all = ss_out.reshape(2, 8, CL)[:, 0, :].sum(axis=0).reshape(f, Cin).sum(axis=0)
    # remove the zero pad-rows' contribution: each adds (-shift) and shift^2
    s_true = s_all + npad * shift_c
    ss_true = ss_all - npad * shift_c * shift_c
    ex = s_true / M
    mean = shift_c + ex
    var = ss_true / M - ex * ex                           # biased variance
    scale = gamma.astype(jnp.float32) * jax.lax.rsqrt(var + eps)
    shift_bn = beta.astype(jnp.float32) - mean * scale
    scale_f = jnp.tile(scale[None, :], (1, f))            # (1, CL)
    shiftb_f = jnp.tile(shift_bn[None, :], (1, f))
    # TODO(synk): running_mean/running_var momentum update is training-side
    # state only and does not affect the forward output; not implemented.

    # ---- pass 2 (Pallas): BN affine + ReLU -> bf16 activations --------------
    yf = pl.pallas_call(
        _bn_relu_kernel,
        out_shape=jax.ShapeDtypeStruct((Mf_p, CL), jnp.bfloat16),
        grid=(Mf_p // tm_s,),
        in_specs=[pl.BlockSpec((tm_s, CL), lambda i: (i, 0)),
                  pl.BlockSpec((1, CL), lambda i: (0, 0)),
                  pl.BlockSpec((1, CL), lambda i: (0, 0))],
        out_specs=pl.BlockSpec((tm_s, CL), lambda i: (i, 0)),
        compiler_params=_params(("parallel",)),
    )(xf, scale_f, shiftb_f)
    y = yf.reshape(Mp, Cin)[:M].reshape(N, H, W, Cin)     # activated, bf16

    # ---- pass 3 (Pallas): dilated 3x3 conv, no XLA im2col -------------------
    Hp, Wp = H + 2 * d, W + 2 * d
    R = N * Hp * Wp                                       # padded pixel rows
    Co_p = _round_up(Cout, 128)                           # lane-dense output

    # K (=Cin) chunking so the resident weight slab stays within VMEM (v7x).
    w_bytes = 9 * Cin * Co_p * 2
    if w_bytes <= 2 * buf_budget:
        n_kc, ck = 1, _round_up(Cin, 8)
    else:
        n_kc = _cdiv(w_bytes, 2 * buf_budget)
        ck = _round_up(_cdiv(Cin, n_kc), 128)             # block col constraint
        n_kc = _cdiv(Cin, ck)
    Cin_c = ck * n_kc

    halo = 2 * d * Wp + 2 * d                             # max flat tap offset
    tm_c = _pick_row_tile(R, 8 * ck + 8 * Co_p, buf_budget, min_steps=4, cap=2048)
    tm_c = max(tm_c, _round_up(halo, 8))                  # halo fits in window
    n_i = _cdiv(R, tm_c)
    need_rows = (n_i + 1) * tm_c                          # for the +1 view
    n_extra = _cdiv(max(0, need_rows - R), Hp * Wp)       # extra zero images
    # single pad: spatial halo + channel padding + trailing zero rows
    yp = jnp.pad(y, ((0, n_extra), (d, d), (d, d), (0, Cin_c - Cin)))
    y_flat = yp.reshape((N + n_extra) * Hp * Wp, Cin_c)   # bf16

    # weights: OIHW -> (9, Cin, Cout) per-tap slices, padded, bf16
    w9 = jnp.transpose(weight_oihw, (2, 3, 1, 0)).reshape(9, Cin, Cout)
    w9 = jnp.pad(w9, ((0, 0), (0, Cin_c - Cin), (0, Co_p - Cout))).astype(jnp.bfloat16)
    bias2d = jnp.pad(bias.astype(jnp.float32)[None, :], ((0, 0), (0, Co_p - Cout)))

    tap_offsets = tuple(ky * d * Wp + kx * d for ky in range(3) for kx in range(3))
    conv_kernel = _make_conv_kernel(tm_c, tap_offsets)

    out_flat = pl.pallas_call(
        conv_kernel,
        out_shape=jax.ShapeDtypeStruct((n_i * tm_c, Co_p), jnp.bfloat16),
        grid=(n_i, n_kc),
        in_specs=[pl.BlockSpec((tm_c, ck), lambda i, kc: (i, kc)),      # rows i
                  pl.BlockSpec((tm_c, ck), lambda i, kc: (i + 1, kc)),  # halo
                  pl.BlockSpec((9, ck, Co_p), lambda i, kc: (0, kc, 0)),
                  pl.BlockSpec((1, Co_p), lambda i, kc: (0, 0))],
        out_specs=pl.BlockSpec((tm_c, Co_p), lambda i, kc: (i, 0)),
        scratch_shapes=[pltpu.VMEM((tm_c, Co_p), jnp.float32)],
        compiler_params=_params(("parallel", "arbitrary")),
    )(y_flat, y_flat, w9, bias2d)

    out = out_flat[:R].reshape(N, Hp, Wp, Co_p)[:, :H, :W, :Cout]
    return jnp.transpose(out, (0, 3, 1, 2))               # NCHW, bf16


# ------------------------------ reference -----------------------------------

def brc_caspp_reference(x_nchw, gamma, beta, weight_oihw, bias, dilation, eps=1e-5):
    d = int(dilation)
    mean = jnp.mean(x_nchw, axis=(0, 2, 3), keepdims=True)
    var = jnp.mean((x_nchw - mean) ** 2, axis=(0, 2, 3), keepdims=True)  # biased
    y = (x_nchw - mean) * jax.lax.rsqrt(var + eps)
    y = y * gamma[None, :, None, None] + beta[None, :, None, None]
    y = jnp.maximum(y, 0.0)
    out = jax.lax.conv_general_dilated(
        y, weight_oihw, window_strides=(1, 1),
        padding=((d, d), (d, d)), rhs_dilation=(d, d),
        dimension_numbers=("NCHW", "OIHW", "NCHW"))
    return out + bias[None, :, None, None]


# --------------------------------- main --------------------------------------

if __name__ == "__main__":
    N, Cin, H, W = 2, 4, 16, 16
    Cout, dilation = 8, 2

    key = jax.random.PRNGKey(0)
    kx, kg, kb, kw, kbias = jax.random.split(key, 5)
    x = jax.random.normal(kx, (N, Cin, H, W), jnp.float32)
    gamma = 1.0 + 0.1 * jax.random.normal(kg, (Cin,), jnp.float32)
    beta = 0.1 * jax.random.normal(kb, (Cin,), jnp.float32)
    weight = 0.1 * jax.random.normal(kw, (Cout, Cin, 3, 3), jnp.float32)
    bias = 0.1 * jax.random.normal(kbias, (Cout,), jnp.float32)

    out = brc_caspp_forward(x, gamma, beta, weight, bias, dilation=dilation)
    out = jax.block_until_ready(out)

    ref = brc_caspp_reference(x, gamma, beta, weight, bias, dilation)
    assert out.shape == (N, Cout, H, W), out.shape
    # tolerance accounts for bf16 matmul operands, bf16 activations and the
    # bf16 output store (f32 accumulation inside the kernel)
    err = float(jnp.max(jnp.abs(out.astype(jnp.float32) - ref)))
    assert jnp.allclose(out.astype(jnp.float32), ref, atol=3e-2, rtol=3e-2), err

    print("KERNEL_OK")
</pallas_src>

<mosaic_0001>
module attributes {stable_mosaic.version = 11 : i64} {
  func.func @_stats_kernel(%arg0: i32, %arg1: i32, %arg2: memref<8x128xf32, #tpu.memory_space<vmem>>, %arg3: memref<1x128xf32, #tpu.memory_space<vmem>>, %arg4: memref<8x128xf32, #tpu.memory_space<vmem>>, %arg5: memref<8x128xf32, #tpu.memory_space<vmem>>) attributes {dimension_semantics = [#tpu.dimension_semantics<parallel>, #tpu.dimension_semantics<arbitrary>], iteration_bounds = array<i64: 2, 1>, scalar_prefetch = 0 : i64, scratch_operands = 0 : i64, tpu.core_type = #tpu.core_type<tc>, window_params = [{transform_indices = @transform_0, window_bounds = array<i64: 8, 128>}, {pipeline_mode = #tpu.pipeline_mode<synchronous>, transform_indices = @transform_1, window_bounds = array<i64: 1, 128>}, {transform_indices = @transform_2, window_bounds = array<i64: 8, 128>}, {transform_indices = @transform_3, window_bounds = array<i64: 8, 128>}]} {
    %c0_i32 = arith.constant 0 : i32
    %0 = arith.cmpi eq, %arg1, %c0_i32 : i32
    %1 = arith.extui %0 : i1 to i32
    %c0_i32_0 = arith.constant 0 : i32
    %2 = arith.cmpi ne, %1, %c0_i32_0 : i32
    scf.if %2 {
      %cst_13 = arith.constant 0.000000e+00 : f32
      %20 = vector.broadcast %cst_13 : f32 to vector<8x128xf32>
      %c0_14 = arith.constant 0 : index
      %c0_15 = arith.constant 0 : index
      %21 = vector.load %arg4[%c0_14, %c0_15] : memref<8x128xf32, #tpu.memory_space<vmem>>, vector<8x128xf32>
      tpu.vector_store %arg4[%c0_14, %c0_15], %20 {strides = array<i32>} : memref<8x128xf32, #tpu.memory_space<vmem>>, vector<8x128xf32>,
      %cst_16 = arith.constant 0.000000e+00 : f32
      %22 = vector.broadcast %cst_16 : f32 to vector<8x128xf32>
      %c0_17 = arith.constant 0 : index
      %c0_18 = arith.constant 0 : index
      %23 = vector.load %arg5[%c0_17, %c0_18] : memref<8x128xf32, #tpu.memory_space<vmem>>, vector<8x128xf32>
      tpu.vector_store %arg5[%c0_17, %c0_18], %22 {strides = array<i32>} : memref<8x128xf32, #tpu.memory_space<vmem>>, vector<8x128xf32>,
    } else {
    }
    %c0 = arith.constant 0 : index
    %c0_1 = arith.constant 0 : index
    %3 = vector.load %arg2[%c0, %c0_1] : memref<8x128xf32, #tpu.memory_space<vmem>>, vector<8x128xf32>
    %c0_2 = arith.constant 0 : index
    %c0_3 = arith.constant 0 : index
    %4 = vector.load %arg3[%c0_2, %c0_3] : memref<1x128xf32, #tpu.memory_space<vmem>>, vector<1x128xf32>
    %5 = vector.broadcast %4 : vector<1x128xf32> to vector<8x128xf32>
    %6 = arith.subf %3, %5 : vector<8x128xf32>
    %c0_4 = arith.constant 0 : index
    %c0_5 = arith.constant 0 : index
    %7 = vector.load %arg4[%c0_4, %c0_5] : memref<8x128xf32, #tpu.memory_space<vmem>>, vector<8x128xf32>
    %cst = arith.constant dense<0.000000e+00> : vector<128xf32>
    %8 = vector.multi_reduction <add>, %6, %cst [0] : vector<8x128xf32> to vector<128xf32>
    %9 = vector.shape_cast %8 : vector<128xf32> to vector<1x128xf32>
    %10 = vector.broadcast %9 : vector<1x128xf32> to vector<8x128xf32>
    %11 = arith.addf %7, %10 : vector<8x128xf32>
    %c0_6 = arith.constant 0 : index
    %c0_7 = arith.constant 0 : index
    %12 = vector.load %arg4[%c0_6, %c0_7] : memref<8x128xf32, #tpu.memory_space<vmem>>, vector<8x128xf32>
    tpu.vector_store %arg4[%c0_6, %c0_7], %11 {strides = array<i32>} : memref<8x128xf32, #tpu.memory_space<vmem>>, vector<8x128xf32>,
    %c0_8 = arith.constant 0 : index
    %c0_9 = arith.constant 0 : index
    %13 = vector.load %arg5[%c0_8, %c0_9] : memref<8x128xf32, #tpu.memory_space<vmem>>, vector<8x128xf32>
    %14 = arith.mulf %6, %6 : vector<8x128xf32>
    %cst_10 = arith.constant dense<0.000000e+00> : vector<128xf32>
    %15 = vector.multi_reduction <add>, %14, %cst_10 [0] : vector<8x128xf32> to vector<128xf32>
    %16 = vector.shape_cast %15 : vector<128xf32> to vector<1x128xf32>
    %17 = vector.broadcast %16 : vector<1x128xf32> to vector<8x128xf32>
    %18 = arith.addf %13, %17 : vector<8x128xf32>
    %c0_11 = arith.constant 0 : index
    %c0_12 = arith.constant 0 : index
    %19 = vector.load %arg5[%c0_11, %c0_12] : memref<8x128xf32, #tpu.memory_space<vmem>>, vector<8x128xf32>
    tpu.vector_store %arg5[%c0_11, %c0_12], %18 {strides = array<i32>} : memref<8x128xf32, #tpu.memory_space<vmem>>, vector<8x128xf32>,
    return
  }
  func.func @transform_0(%arg0: i32, %arg1: i32) -> (i32, i32) {
    %c1_i32 = arith.constant 1 : i32
    %0 = arith.muli %arg0, %c1_i32 : i32
    %1 = arith.addi %0, %arg1 : i32
    %c0_i32 = arith.constant 0 : i32
    %c0_i32_0 = arith.constant 0 : i32
    return %1, %c0_i32 : i32, i32
  }
  func.func @transform_1(%arg0: i32, %arg1: i32) -> (i32, i32) {
    %c0_i32 = arith.constant 0 : i32
    %c0_i32_0 = arith.constant 0 : i32
    %c0_i32_1 = arith.constant 0 : i32
    return %c0_i32, %c0_i32_0 : i32, i32
  }
  func.func @transform_2(%arg0: i32, %arg1: i32) -> (i32, i32) {
    %c0_i32 = arith.constant 0 : i32
    %c0_i32_0 = arith.constant 0 : i32
    return %arg0, %c0_i32 : i32, i32
  }
  func.func @transform_3(%arg0: i32, %arg1: i32) -> (i32, i32) {
    %c0_i32 = arith.constant 0 : i32
    %c0_i32_0 = arith.constant 0 : i32
    return %arg0, %c0_i32 : i32, i32
  }
}

module attributes {stable_mosaic.version = 11 : i64} {
  func.func @_bn_relu_kernel(%arg0: i32, %arg1: memref<8x128xf32, #tpu.memory_space<vmem>>, %arg2: memref<1x128xf32, #tpu.memory_space<vmem>>, %arg3: memref<1x128xf32, #tpu.memory_space<vmem>>, %arg4: memref<8x128xbf16, #tpu.memory_space<vmem>>) attributes {dimension_semantics = [#tpu.dimension_semantics<parallel>], iteration_bounds = array<i64: 2>, scalar_prefetch = 0 : i64, scratch_operands = 0 : i64, tpu.core_type = #tpu.core_type<tc>, window_params = [{transform_indices = @transform_0, window_bounds = array<i64: 8, 128>}, {pipeline_mode = #tpu.pipeline_mode<synchronous>, transform_indices = @transform_1, window_bounds = array<i64: 1, 128>}, {pipeline_mode = #tpu.pipeline_mode<synchronous>, transform_indices = @transform_2, window_bounds = array<i64: 1, 128>}, {transform_indices = @transform_3, window_bounds = array<i64: 8, 128>}]} {
    %c0 = arith.constant 0 : index
    %c0_0 = arith.constant 0 : index
    %0 = vector.load %arg1[%c0, %c0_0] : memref<8x128xf32, #tpu.memory_space<vmem>>, vector<8x128xf32>
    %c0_1 = arith.constant 0 : index
    %c0_2 = arith.constant 0 : index
    %1 = vector.load %arg2[%c0_1, %c0_2] : memref<1x128xf32, #tpu.memory_space<vmem>>, vector<1x128xf32>
    %2 = vector.broadcast %1 : vector<1x128xf32> to vector<8x128xf32>
    %3 = arith.mulf %0, %2 : vector<8x128xf32>
    %c0_3 = arith.constant 0 : index
    %c0_4 = arith.constant 0 : index
    %4 = vector.load %arg3[%c0_3, %c0_4] : memref<1x128xf32, #tpu.memory_space<vmem>>, vector<1x128xf32>
    %5 = vector.broadcast %4 : vector<1x128xf32> to vector<8x128xf32>
    %6 = arith.addf %3, %5 : vector<8x128xf32>
    %cst = arith.constant 0.000000e+00 : f32
    %7 = vector.broadcast %cst : f32 to vector<8x128xf32>
    %8 = arith.maximumf %6, %7 : vector<8x128xf32>
    %9 = arith.truncf %8 : vector<8x128xf32> to vector<8x128xbf16>
    %c0_5 = arith.constant 0 : index
    %c0_6 = arith.constant 0 : index
    %10 = vector.load %arg4[%c0_5, %c0_6] : memref<8x128xbf16, #tpu.memory_space<vmem>>, vector<8x128xbf16>
    tpu.vector_store %arg4[%c0_5, %c0_6], %9 {strides = array<i32>} : memref<8x128xbf16, #tpu.memory_space<vmem>>, vector<8x128xbf16>,
    return
  }
  func.func @transform_0(%arg0: i32) -> (i32, i32) {
    %c0_i32 = arith.constant 0 : i32
    %c0_i32_0 = arith.constant 0 : i32
    return %arg0, %c0_i32 : i32, i32
  }
  func.func @transform_1(%arg0: i32) -> (i32, i32) {
    %c0_i32 = arith.constant 0 : i32
    %c0_i32_0 = arith.constant 0 : i32
    %c0_i32_1 = arith.constant 0 : i32
    return %c0_i32, %c0_i32_0 : i32, i32
  }
  func.func @transform_2(%arg0: i32) -> (i32, i32) {
    %c0_i32 = arith.constant 0 : i32
    %c0_i32_0 = arith.constant 0 : i32
    %c0_i32_1 = arith.constant 0 : i32
    return %c0_i32, %c0_i32_0 : i32, i32
  }
  func.func @transform_3(%arg0: i32) -> (i32, i32) {
    %c0_i32 = arith.constant 0 : i32
    %c0_i32_0 = arith.constant 0 : i32
    return %arg0, %c0_i32 : i32, i32
  }
}

module attributes {stable_mosaic.version = 11 : i64} {
  func.func @kernel(%arg0: i32, %arg1: i32, %arg2: memref<200x8xbf16, #tpu.memory_space<vmem>>, %arg3: memref<200x8xbf16, #tpu.memory_space<vmem>>, %arg4: memref<9x8x128xbf16, #tpu.memory_space<vmem>>, %arg5: memref<1x128xf32, #tpu.memory_space<vmem>>, %arg6: memref<200x128xbf16, #tpu.memory_space<vmem>>, %arg7: memref<200x128xf32, #tpu.memory_space<vmem>>) attributes {dimension_semantics = [#tpu.dimension_semantics<parallel>, #tpu.dimension_semantics<arbitrary>], iteration_bounds = array<i64: 4, 1>, scalar_prefetch = 0 : i64, scratch_operands = 1 : i64, tpu.core_type = #tpu.core_type<tc>, window_params = [{transform_indices = @transform_0, window_bounds = array<i64: 200, 8>}, {transform_indices = @transform_1, window_bounds = array<i64: 200, 8>}, {transform_indices = @transform_2, window_bounds = array<i64: 9, 8, 128>}, {pipeline_mode = #tpu.pipeline_mode<synchronous>, transform_indices = @transform_3, window_bounds = array<i64: 1, 128>}, {transform_indices = @transform_4, window_bounds = array<i64: 200, 128>}]} {
    %c0_i32 = arith.constant 0 : i32
    %0 = arith.cmpi eq, %arg1, %c0_i32 : i32
    %1 = arith.extui %0 : i1 to i32
    %c0_i32_0 = arith.constant 0 : i32
    %2 = arith.cmpi ne, %1, %c0_i32_0 : i32
    scf.if %2 {
      %cst_37 = arith.constant 0.000000e+00 : f32
      %56 = vector.broadcast %cst_37 : f32 to vector<200x128xf32>
      %c0_38 = arith.constant 0 : index
      %c0_39 = arith.constant 0 : index
      %57 = vector.load %arg7[%c0_38, %c0_39] : memref<200x128xf32, #tpu.memory_space<vmem>>, vector<200x128xf32>
      tpu.vector_store %arg7[%c0_38, %c0_39], %56 {strides = array<i32>} : memref<200x128xf32, #tpu.memory_space<vmem>>, vector<200x128xf32>,
    } else {
    }
    %c0 = arith.constant 0 : index
    %c0_1 = arith.constant 0 : index
    %3 = vector.load %arg2[%c0, %c0_1] : memref<200x8xbf16, #tpu.memory_space<vmem>>, vector<200x8xbf16>
    %c0_2 = arith.constant 0 : index
    %c0_3 = arith.constant 0 : index
    %4 = vector.load %arg3[%c0_2, %c0_3] : memref<200x8xbf16, #tpu.memory_space<vmem>>, vector<200x8xbf16>
    %5 = tpu.concatenate %3, %4 in 0 : vector<200x8xbf16>, vector<200x8xbf16> -> vector<400x8xbf16>
    %c0_4 = arith.constant 0 : index
    %c0_5 = arith.constant 0 : index
    %6 = vector.load %arg7[%c0_4, %c0_5] : memref<200x128xf32, #tpu.memory_space<vmem>>, vector<200x128xf32>
    %7 = vector.extract_strided_slice %5 {offsets = [0, 0], sizes = [200, 8], strides = [1, 1]} : vector<400x8xbf16> to vector<200x8xbf16>
    %c0_6 = arith.constant 0 : index
    %c0_7 = arith.constant 0 : index
    %c0_8 = arith.constant 0 : index
    %8 = vector.load %arg4[%c0_6, %c0_7, %c0_8] : memref<9x8x128xbf16, #tpu.memory_space<vmem>>, vector<1x8x128xbf16>
    %9 = vector.shape_cast %8 : vector<1x8x128xbf16> to vector<8x128xbf16>
    %cst = arith.constant dense<0.000000e+00> : vector<200x128xf32>
    %10 = tpu.matmul %7, %9, %cst {dimension_numbers = #tpu.dot_dimension_numbers<[1], [0], [0], [1], [0, 0, 1, 1], [], []>} : vector<200x8xbf16>, vector<8x128xbf16>, vector<200x128xf32> -> vector<200x128xf32>
    %11 = arith.addf %6, %10 : vector<200x128xf32>
    %12 = vector.extract_strided_slice %5 {offsets = [2, 0], sizes = [200, 8], strides = [1, 1]} : vector<400x8xbf16> to vector<200x8xbf16>
    %c1 = arith.constant 1 : index
    %c0_9 = arith.constant 0 : index
    %c0_10 = arith.constant 0 : index
    %13 = vector.load %arg4[%c1, %c0_9, %c0_10] : memref<9x8x128xbf16, #tpu.memory_space<vmem>>, vector<1x8x128xbf16>
    %14 = vector.shape_cast %13 : vector<1x8x128xbf16> to vector<8x128xbf16>
    %cst_11 = arith.constant dense<0.000000e+00> : vector<200x128xf32>
    %15 = tpu.matmul %12, %14, %cst_11 {dimension_numbers = #tpu.dot_dimension_numbers<[1], [0], [0], [1], [0, 0, 1, 1], [], []>} : vector<200x8xbf16>, vector<8x128xbf16>, vector<200x128xf32> -> vector<200x128xf32>
    %16 = arith.addf %11, %15 : vector<200x128xf32>
    %17 = vector.extract_strided_slice %5 {offsets = [4, 0], sizes = [200, 8], strides = [1, 1]} : vector<400x8xbf16> to vector<200x8xbf16>
    %c2 = arith.constant 2 : index
    %c0_12 = arith.constant 0 : index
    %c0_13 = arith.constant 0 : index
    %18 = vector.load %arg4[%c2, %c0_12, %c0_13] : memref<9x8x128xbf16, #tpu.memory_space<vmem>>, vector<1x8x128xbf16>
    %19 = vector.shape_cast %18 : vector<1x8x128xbf16> to vector<8x128xbf16>
    %cst_14 = arith.constant dense<0.000000e+00> : vector<200x128xf32>
    %20 = tpu.matmul %17, %19, %cst_14 {dimension_numbers = #tpu.dot_dimension_numbers<[1], [0], [0], [1], [0, 0, 1, 1], [], []>} : vector<200x8xbf16>, vector<8x128xbf16>, vector<200x128xf32> -> vector<200x128xf32>
    %21 = arith.addf %16, %20 : vector<200x128xf32>
    %22 = vector.extract_strided_slice %5 {offsets = [40, 0], sizes = [200, 8], strides = [1, 1]} : vector<400x8xbf16> to vector<200x8xbf16>
    %c3 = arith.constant 3 : index
    %c0_15 = arith.constant 0 : index
    %c0_16 = arith.constant 0 : index
    %23 = vector.load %arg4[%c3, %c0_15, %c0_16] : memref<9x8x128xbf16, #tpu.memory_space<vmem>>, vector<1x8x128xbf16>
    %24 = vector.shape_cast %23 : vector<1x8x128xbf16> to vector<8x128xbf16>
    %cst_17 = arith.constant dense<0.000000e+00> : vector<200x128xf32>
    %25 = tpu.matmul %22, %24, %cst_17 {dimension_numbers = #tpu.dot_dimension_numbers<[1], [0], [0], [1], [0, 0, 1, 1], [], []>} : vector<200x8xbf16>, vector<8x128xbf16>, vector<200x128xf32> -> vector<200x128xf32>
    %26 = arith.addf %21, %25 : vector<200x128xf32>
    %27 = vector.extract_strided_slice %5 {offsets = [42, 0], sizes = [200, 8], strides = [1, 1]} : vector<400x8xbf16> to vector<200x8xbf16>
    %c4 = arith.constant 4 : index
    %c0_18 = arith.constant 0 : index
    %c0_19 = arith.constant 0 : index
    %28 = vector.load %arg4[%c4, %c0_18, %c0_19] : memref<9x8x128xbf16, #tpu.memory_space<vmem>>, vector<1x8x128xbf16>
    %29 = vector.shape_cast %28 : vector<1x8x128xbf16> to vector<8x128xbf16>
    %cst_20 = arith.constant dense<0.000000e+00> : vector<200x128xf32>
    %30 = tpu.matmul %27, %29, %cst_20 {dimension_numbers = #tpu.dot_dimension_numbers<[1], [0], [0], [1], [0, 0, 1, 1], [], []>} : vector<200x8xbf16>, vector<8x128xbf16>, vector<200x128xf32> -> vector<200x128xf32>
    %31 = arith.addf %26, %30 : vector<200x128xf32>
    %32 = vector.extract_strided_slice %5 {offsets = [44, 0], sizes = [200, 8], strides = [1, 1]} : vector<400x8xbf16> to vector<200x8xbf16>
    %c5 = arith.constant 5 : index
    %c0_21 = arith.constant 0 : index
    %c0_22 = arith.constant 0 : index
    %33 = vector.load %arg4[%c5, %c0_21, %c0_22] : memref<9x8x128xbf16, #tpu.memory_space<vmem>>, vector<1x8x128xbf16>
    %34 = vector.shape_cast %33 : vector<1x8x128xbf16> to vector<8x128xbf16>
    %cst_23 = arith.constant dense<0.000000e+00> : vector<200x128xf32>
    %35 = tpu.matmul %32, %34, %cst_23 {dimension_numbers = #tpu.dot_dimension_numbers<[1], [0], [0], [1], [0, 0, 1, 1], [], []>} : vector<200x8xbf16>, vector<8x128xbf16>, vector<200x128xf32> -> vector<200x128xf32>
    %36 = arith.addf %31, %35 : vector<200x128xf32>
    %37 = vector.extract_strided_slice %5 {offsets = [80, 0], sizes = [200, 8], strides = [1, 1]} : vector<400x8xbf16> to vector<200x8xbf16>
    %c6 = arith.constant 6 : index
    %c0_24 = arith.constant 0 : index
    %c0_25 = arith.constant 0 : index
    %38 = vector.load %arg4[%c6, %c0_24, %c0_25] : memref<9x8x128xbf16, #tpu.memory_space<vmem>>, vector<1x8x128xbf16>
    %39 = vector.shape_cast %38 : vector<1x8x128xbf16> to vector<8x128xbf16>
    %cst_26 = arith.constant dense<0.000000e+00> : vector<200x128xf32>
    %40 = tpu.matmul %37, %39, %cst_26 {dimension_numbers = #tpu.dot_dimension_numbers<[1], [0], [0], [1], [0, 0, 1, 1], [], []>} : vector<200x8xbf16>, vector<8x128xbf16>, vector<200x128xf32> -> vector<200x128xf32>
    %41 = arith.addf %36, %40 : vector<200x128xf32>
    %42 = vector.extract_strided_slice %5 {offsets = [82, 0], sizes = [200, 8], strides = [1, 1]} : vector<400x8xbf16> to vector<200x8xbf16>
    %c7 = arith.constant 7 : index
    %c0_27 = arith.constant 0 : index
    %c0_28 = arith.constant 0 : index
    %43 = vector.load %arg4[%c7, %c0_27, %c0_28] : memref<9x8x128xbf16, #tpu.memory_space<vmem>>, vector<1x8x128xbf16>
    %44 = vector.shape_cast %43 : vector<1x8x128xbf16> to vector<8x128xbf16>
    %cst_29 = arith.constant dense<0.000000e+00> : vector<200x128xf32>
    %45 = tpu.matmul %42, %44, %cst_29 {dimension_numbers = #tpu.dot_dimension_numbers<[1], [0], [0], [1], [0, 0, 1, 1], [], []>} : vector<200x8xbf16>, vector<8x128xbf16>, vector<200x128xf32> -> vector<200x128xf32>
    %46 = arith.addf %41, %45 : vector<200x128xf32>
    %47 = vector.extract_strided_slice %5 {offsets = [84, 0], sizes = [200, 8], strides = [1, 1]} : vector<400x8xbf16> to vector<200x8xbf16>
    %c8 = arith.constant 8 : index
    %c0_30 = arith.constant 0 : index
    %c0_31 = arith.constant 0 : index
    %48 = vector.load %arg4[%c8, %c0_30, %c0_31] : memref<9x8x128xbf16, #tpu.memory_space<vmem>>, vector<1x8x128xbf16>
    %49 = vector.shape_cast %48 : vector<1x8x128xbf16> to vector<8x128xbf16>
    %cst_32 = arith.constant dense<0.000000e+00> : vector<200x128xf32>
    %50 = tpu.matmul %47, %49, %cst_32 {dimension_numbers = #tpu.dot_dimension_numbers<[1], [0], [0], [1], [0, 0, 1, 1], [], []>} : vector<200x8xbf16>, vector<8x128xbf16>, vector<200x128xf32> -> vector<200x128xf32>
    %51 = arith.addf %46, %50 : vector<200x128xf32>
    %c0_33 = arith.constant 0 : index
    %c0_34 = arith.constant 0 : index
    %52 = vector.load %arg7[%c0_33, %c0_34] : memref<200x128xf32, #tpu.memory_space<vmem>>, vector<200x128xf32>
    tpu.vector_store %arg7[%c0_33, %c0_34], %51 {strides = array<i32>} : memref<200x128xf32, #tpu.memory_space<vmem>>, vector<200x128xf32>,
    %c0_i32_35 = arith.constant 0 : i32
    %53 = arith.cmpi eq, %arg1, %c0_i32_35 : i32
    %54 = arith.extui %53 : i1 to i32
    %c0_i32_36 = arith.constant 0 : i32
    %55 = arith.cmpi ne, %54, %c0_i32_36 : i32
    scf.if %55 {
      %c0_37 = arith.constant 0 : index
      %c0_38 = arith.constant 0 : index
      %56 = vector.load %arg7[%c0_37, %c0_38] : memref<200x128xf32, #tpu.memory_space<vmem>>, vector<200x128xf32>
      %c0_39 = arith.constant 0 : index
      %c0_40 = arith.constant 0 : index
      %57 = vector.load %arg5[%c0_39, %c0_40] : memref<1x128xf32, #tpu.memory_space<vmem>>, vector<1x128xf32>
      %58 = vector.broadcast %57 : vector<1x128xf32> to vector<200x128xf32>
      %59 = arith.addf %56, %58 : vector<200x128xf32>
      %60 = arith.truncf %59 : vector<200x128xf32> to vector<200x128xbf16>
      %c0_41 = arith.constant 0 : index
      %c0_42 = arith.constant 0 : index
      %61 = vector.load %arg6[%c0_41, %c0_42] : memref<200x128xbf16, #tpu.memory_space<vmem>>, vector<200x128xbf16>
      tpu.vector_store %arg6[%c0_41, %c0_42], %60 {strides = array<i32>} : memref<200x128xbf16, #tpu.memory_space<vmem>>, vector<200x128xbf16>,
    } else {
    }
    return
  }
  func.func @transform_0(%arg0: i32, %arg1: i32) -> (i32, i32) {
    %c0_i32 = arith.constant 0 : i32
    return %arg0, %arg1 : i32, i32
  }
  func.func @transform_1(%arg0: i32, %arg1: i32) -> (i32, i32) {
    %c1_i32 = arith.constant 1 : i32
    %0 = arith.addi %arg0, %c1_i32 : i32
    %c0_i32 = arith.constant 0 : i32
    return %0, %arg1 : i32, i32
  }
  func.func @transform_2(%arg0: i32, %arg1: i32) -> (i32, i32, i32) {
    %c0_i32 = arith.constant 0 : i32
    %c0_i32_0 = arith.constant 0 : i32
    %c0_i32_1 = arith.constant 0 : i32
    return %c0_i32, %arg1, %c0_i32_0 : i32, i32, i32
  }
  func.func @transform_3(%arg0: i32, %arg1: i32) -> (i32, i32) {
    %c0_i32 = arith.constant 0 : i32
    %c0_i32_0 = arith.constant 0 : i32
    %c0_i32_1 = arith.constant 0 : i32
    return %c0_i32, %c0_i32_0 : i32, i32
  }
  func.func @transform_4(%arg0: i32, %arg1: i32) -> (i32, i32) {
    %c0_i32 = arith.constant 0 : i32
    %c0_i32_0 = arith.constant 0 : i32
    return %arg0, %c0_i32 : i32, i32
  }
}

</mosaic_0001>

<llo_original>
// kernel: brc_caspp_forward.4
$region0: #{brc_caspp_forward.4}
  #allocation0 [shape = 'u32[]', space=smem, size = 0x4, offset = 0x4, fixed_abs, tag = 'smem constant byte address 0x4 - core index']
  #allocation1 [shape = 'u32[144,128]{1,0:T(1,128)}', space=vmem, size = 0x12000, scoped, tag = 'internal scratch']
  %s0 = inlined_call_operand.vmem [shape: f32[16,128], index: 0, kind: input, shape index: {}]
  %s1 = inlined_call_operand.vmem [shape: f32[1,128], index: 1, kind: input, shape index: {}]
  %s2 = inlined_call_operand.vmem [shape: f32[1,128], index: 2, kind: input, shape index: {}]
  %s3 = inlined_call_operand.vmem [shape: bf16[16,128], index: 3, kind: output, shape index: {}]
  %s4 = sld [smem:[#allocation0]]
  $region45: #{brc_caspp_forward.4} parent=0
    _
  %s6 = ssub.s32 1, %s4
  %s7 = scalar_select 0, %s6, %s4
  loop: start=0, step=1, limit=4
  $region2: #{brc_caspp_forward.4} parent=0 // loop_pre_header
    _
  $region3: #{brc_caspp_forward.4} parent=0 // loop_header
    %s9 = sphi 0, %s13
    %p10 = scmp.ge.s32.totalorder %s9, 4
    %s19 = sphi 0, %s21
    %s22 = sphi 0, %s19
    %s23 = sphi 0, %s22
    %s39 = sphi 0, %s23
    %s43 = sphi 0, %s43
    %s45 = sphi 0, %s43
    %s46 = sphi 0, %s45
    %s60 = sphi 0, %s46
    %s64 = sphi 0, %s64
    %s66 = sphi 0, %s64
    %s67 = sphi 0, %s66
    %s81 = sphi 0, %s67
    %s87 = sphi 0, %s89
    %s90 = sphi 0, %s87
    %s91 = sphi 0, %s90
    %s107 = sphi 0, %s91
  $region4: #{brc_caspp_forward.4} parent=0 // loop_header_branch
    %12 = sbr.rel (%p10) target = $region8
  $region5: #{brc_caspp_forward.4} parent=0 // loop_body
    %s14 = ssub.s32 %s9, 1
    %s15 = ssub.s32 %s9, 2
    %s16 = sadd.s32 %s9, 1
    %s17 = ssub.s32 %s9, %s16
    %p18 = scmp.eq.s32.totalorder %s17, 0
    %s20 = sadd.s32 %s19, 1
    %s21 = scalar_select %p18, %s19, %s20
    %p24 = pneg %p18
    %p25 = scmp.eq.s32.totalorder %s9, 1
    %p26 = por %p24, %p25
    %p27 = scmp.ne.s32.totalorder %s19, %s22
    %p28 = scmp.eq.s32.totalorder %s9, 0
    %p29 = por %p27, %p28
    %p30 = scmp.ne.s32.totalorder %s19, %s22
    %p31 = scmp.eq.s32.totalorder %s14, 1
    %p32 = por %p30, %p31
    %p33 = scmp.ne.s32.totalorder %s22, %s23
    %p34 = scmp.eq.s32.totalorder %s14, 0
    %p35 = por %p33, %p34
    %p36 = scmp.ne.s32.totalorder %s22, %s23
    %p37 = scmp.eq.s32.totalorder %s15, 1
    %p38 = por %p36, %p37
    %p40 = scmp.ne.s32.totalorder %s23, %s39
    %p41 = scmp.eq.s32.totalorder %s15, 0
    %p42 = por %p40, %p41
    %s44 = sadd.s32 %s43, 1
    %p47 = scmp.eq.s32.totalorder %s9, 1
    %p48 = scmp.ne.s32.totalorder %s43, %s45
    %p49 = scmp.eq.s32.totalorder %s9, 0
    %p50 = por %p48, %p49
    %p51 = scmp.ne.s32.totalorder %s43, %s45
    %p52 = scmp.eq.s32.totalorder %s14, 1
    %p53 = por %p51, %p52
    %p54 = scmp.ne.s32.totalorder %s45, %s46
    %p55 = scmp.eq.s32.totalorder %s14, 0
    %p56 = por %p54, %p55
    %p57 = scmp.ne.s32.totalorder %s45, %s46
    %p58 = scmp.eq.s32.totalorder %s15, 1
    %p59 = por %p57, %p58
    %p61 = scmp.ne.s32.totalorder %s46, %s60
    %p62 = scmp.eq.s32.totalorder %s15, 0
    %p63 = por %p61, %p62
    %s65 = sadd.s32 %s64, 1
    %p68 = scmp.eq.s32.totalorder %s9, 1
    %p69 = scmp.ne.s32.totalorder %s64, %s66
    %p70 = scmp.eq.s32.totalorder %s9, 0
    %p71 = por %p69, %p70
    %p72 = scmp.ne.s32.totalorder %s64, %s66
    %p73 = scmp.eq.s32.totalorder %s14, 1
    %p74 = por %p72, %p73
    %p75 = scmp.ne.s32.totalorder %s66, %s67
    %p76 = scmp.eq.s32.totalorder %s14, 0
    %p77 = por %p75, %p76
    %p78 = scmp.ne.s32.totalorder %s66, %s67
    %p79 = scmp.eq.s32.totalorder %s15, 1
    %p80 = por %p78, %p79
    %p82 = scmp.ne.s32.totalorder %s67, %s81
    %p83 = scmp.eq.s32.totalorder %s15, 0
    %p84 = por %p82, %p83
    %s85 = ssub.s32 %s9, %s16
    %p86 = scmp.eq.s32.totalorder %s85, 0
    %s88 = sadd.s32 %s87, 1
    %s89 = scalar_select %p86, %s87, %s88
    %p92 = pneg %p86
    %p93 = scmp.eq.s32.totalorder %s9, 1
    %p94 = por %p92, %p93
    %p95 = scmp.ne.s32.totalorder %s87, %s90
    %p96 = scmp.eq.s32.totalorder %s9, 0
    %p97 = por %p95, %p96
    %p98 = scmp.ne.s32.totalorder %s87, %s90
    %p99 = scmp.eq.s32.totalorder %s14, 1
    %p100 = por %p98, %p99
    %p101 = scmp.ne.s32.totalorder %s90, %s91
    %p102 = scmp.eq.s32.totalorder %s14, 0
    %p103 = por %p101, %p102
    %p104 = scmp.ne.s32.totalorder %s90, %s91
    %p105 = scmp.eq.s32.totalorder %s15, 1
    %p106 = por %p104, %p105
    %p108 = scmp.ne.s32.totalorder %s91, %s107
    %p109 = scmp.eq.s32.totalorder %s15, 0
    %p110 = por %p108, %p109
    %p111 = scmp.le.s32.totalorder 1, %s9
    %p112 = scmp.lt.s32.totalorder %s9, 3
    %p113 = pnand %p111, %p112
    %p114 = pneg %p113
    // Predicated region
    $region9: #{brc_caspp_forward.4} parent=5 // pred_check
      _
    $region10: #{brc_caspp_forward.4} parent=5 // pred_check_branch
      %116 = sbr.rel (%p113) target = $region12
    $region11: #{brc_caspp_forward.4} parent=5 // pred_region
      %s117 = ssub.s32 %s9, 1
      // Predicated region
      $region13: #{brc_caspp_forward.4} parent=11 // pred_check
        %p118 = pneg %p56
      $region14: #{brc_caspp_forward.4} parent=11 // pred_check_branch
        %120 = sbr.rel (%p118) target = $region16
      $region15: #{brc_caspp_forward.4} parent=11 // pred_region
        _
      $region16: #{brc_caspp_forward.4} parent=11 // pred_fallthru
        _
      // Predicated region
      $region17: #{brc_caspp_forward.4} parent=11 // pred_check
        %p121 = pneg %p77
      $region18: #{brc_caspp_forward.4} parent=11 // pred_check_branch
        %123 = sbr.rel (%p121) target = $region20
      $region19: #{brc_caspp_forward.4} parent=11 // pred_region
        _
      $region20: #{brc_caspp_forward.4} parent=11 // pred_fallthru
        _
    $region12: #{brc_caspp_forward.4} parent=5 // pred_fallthru
      _
    %p124 = scmp.lt.s32.totalorder %s9, 2
    // Predicated region
    $region21: #{brc_caspp_forward.4} parent=5 // pred_check
      %p125 = pneg %p124
    $region22: #{brc_caspp_forward.4} parent=5 // pred_check_branch
      %127 = sbr.rel (%p125) target = $region24
    $region23: #{brc_caspp_forward.4} parent=5 // pred_region
      // Predicated region
      $region25: #{brc_caspp_forward.4} parent=23 // pred_check
        %p128 = pneg %p29
      $region26: #{brc_caspp_forward.4} parent=23 // pred_check_branch
        %130 = sbr.rel (%p128) target = $region28
      $region27: #{brc_caspp_forward.4} parent=23 // pred_region
        %p131 = scmp.lt.s32.totalorder %s9, 1
        %s132 = scalar_select %p131, %s9, 1
        %s133 = smul.addr %s132, 8
        %s134 = scalar_lea.vmem %s0, %s133
      $region28: #{brc_caspp_forward.4} parent=23 // pred_fallthru
        _
    $region24: #{brc_caspp_forward.4} parent=5 // pred_fallthru
      _
    %p135 = scmp.le.s32.totalorder 1, %s9
    %p136 = scmp.lt.s32.totalorder %s9, 3
    %p137 = pnand %p135, %p136
    %p138 = pneg %p137
    // Predicated region
    $region29: #{brc_caspp_forward.4} parent=5 // pred_check
      _
    $region30: #{brc_caspp_forward.4} parent=5 // pred_check_branch
      %140 = sbr.rel (%p137) target = $region32
    $region31: #{brc_caspp_forward.4} parent=5 // pred_region
      %s141 = ssub.s32 %s9, 1
      %p142 = scmp.lt.s32.totalorder %s14, 1
      %s143 = scalar_select %p142, %s14, 1
      %s144 = smul.addr %s143, 8
      %s145 = scalar_lea.vmem %s0, %s144
      %p146 = pneg %p35
      %p147 = pneg %p32
      %p148 = pneg %p56
      %p149 = pneg %p53
      %p150 = pneg %p77
      %p151 = pneg %p74
      %p152 = pneg %p103
      %p153 = pneg %p100
      %p154 = scmp.lt.s32.totalorder %s14, 1
      %s155 = scalar_select %p154, %s14, 1
      %s156 = smul.addr %s155, 4
      %s157 = scalar_lea.vmem %s3, %s156
      %p158 = scmp.lt.s32.totalorder %s14, 1
      %s159 = scalar_select %p158, %s14, 1
      %s160 = smul.addr %s159, 8
      %s161 = scalar_lea.vmem %s0, %s160
      %p162 = scmp.lt.s32.totalorder %s14, 1
      %s163 = scalar_select %p162, %s14, 1
      %s164 = smul.addr %s163, 4
      %s165 = scalar_lea.vmem %s3, %s164
      %v166 = vld [vmem:[%s161] sm:$0xff]
      %v167 = vld [vmem:[%s1] sm:$0x1]
      %v169 = vlaneseq
      %v170 = vshrl.u32 %v169, 7
      %v171 = vsub.s32 0, %v170
      %v172 = vrot.slane %v167, %v171
      %v174 = vmul.f32 %v166, %v172
      %v175 = vld [vmem:[%s2] sm:$0x1]
      %v177 = vlaneseq
      %v178 = vshrl.u32 %v177, 7
      %v179 = vsub.s32 0, %v178
      %v180 = vrot.slane %v175, %v179
      %v182 = vadd.f32 %v174, %v180
      %v183 = vmax.f32 %v182, 0.0
      %v184 = vpack.c.bf16 %v183, %v183
      %185 = vst [vmem:[%s165] sm:$0xf] %v184
      %p186 = scmp.lt.s32.totalorder %s14, 1
      %s187 = scalar_select %p186, %s14, 1
      %s188 = smul.addr %s187, 4
      %s189 = scalar_lea.vmem %s3, %s188
      // Predicated region
      $region33: #{brc_caspp_forward.4} parent=31 // pred_check
        %p190 = pneg %p100
      $region34: #{brc_caspp_forward.4} parent=31 // pred_check_branch
        %192 = sbr.rel (%p190) target = $region36
      $region35: #{brc_caspp_forward.4} parent=31 // pred_region
        _
      $region36: #{brc_caspp_forward.4} parent=31 // pred_fallthru
        _
    $region32: #{brc_caspp_forward.4} parent=5 // pred_fallthru
      _
    %p193 = scmp.le.s32.totalorder 2, %s9
    // Predicated region
    $region37: #{brc_caspp_forward.4} parent=5 // pred_check
      %p194 = pneg %p193
    $region38: #{brc_caspp_forward.4} parent=5 // pred_check_branch
      %196 = sbr.rel (%p194) target = $region40
    $region39: #{brc_caspp_forward.4} parent=5 // pred_region
      %s197 = ssub.s32 %s9, 2
      // Predicated region
      $region41: #{brc_caspp_forward.4} parent=39 // pred_check
        %p198 = pneg %p106
      $region42: #{brc_caspp_forward.4} parent=39 // pred_check_branch
        %200 = sbr.rel (%p198) target = $region44
      $region43: #{brc_caspp_forward.4} parent=39 // pred_region
        %p201 = scmp.lt.s32.totalorder %s15, 1
        %s202 = scalar_select %p201, %s15, 1
        %s203 = smul.addr %s202, 4
        %s204 = scalar_lea.vmem %s3, %s203
      $region44: #{brc_caspp_forward.4} parent=39 // pred_fallthru
        _
    $region40: #{brc_caspp_forward.4} parent=5 // pred_fallthru
      _
  $region6: #{brc_caspp_forward.4} parent=0 // loop_footer
    %s13 = sadd.s32 1, %s9
  $region7: #{brc_caspp_forward.4} parent=0 // loop_footer_branch
    %8 = sbr.rel target = $region3
  $region8: #{brc_caspp_forward.4} parent=0 // loop_exit
    _

// kernel: brc_caspp_forward.3
$region0: #{brc_caspp_forward.3}
  #allocation0 [shape = 'u32[]', space=smem, size = 0x4, offset = 0x4, fixed_abs, tag = 'smem constant byte address 0x4 - core index']
  #allocation1 [shape = 'u32[144,128]{1,0:T(1,128)}', space=vmem, size = 0x12000, scoped, tag = 'internal scratch']
  %s0 = inlined_call_operand.vmem [shape: f32[16,128], index: 0, kind: input, shape index: {}]
  %s1 = inlined_call_operand.vmem [shape: f32[1,128], index: 1, kind: input, shape index: {}]
  %s2 = inlined_call_operand.vmem [shape: f32[16,128], index: 2, kind: output, shape index: {0}]
  %s3 = inlined_call_operand.vmem [shape: f32[16,128], index: 3, kind: output, shape index: {1}]
  %4 = xla_tuple %s2, %s3
  %s5 = sld [smem:[#allocation0]]
  $region53: #{brc_caspp_forward.3} parent=0
    _
  %s7 = ssub.s32 1, %s5
  %s8 = scalar_select 0, %s7, %s5
  loop: start=0, step=1, limit=4
  $region2: #{brc_caspp_forward.3} parent=0 // loop_pre_header
    _
  $region3: #{brc_caspp_forward.3} parent=0 // loop_header
    %s10 = sphi 0, %s14
    %p11 = scmp.ge.s32.totalorder %s10, 4
    %s17 = sphi 0, %s29
    %s18 = sphi 0, %s25
    %s19 = sphi 0, %s17
    %s20 = sphi 0, %s18
    %s21 = sphi 0, %s19
    %s22 = sphi 0, %s20
    %s34 = sphi 0, %s36
    %s37 = sphi 0, %s34
    %s38 = sphi 0, %s37
    %s54 = sphi 0, %s38
    %s58 = sphi 0, %s58
    %s60 = sphi 0, %s58
    %s61 = sphi 0, %s60
    %s75 = sphi 0, %s61
    %s81 = sphi 0, %s83
    %s84 = sphi 0, %s81
    %s85 = sphi 0, %s84
    %s101 = sphi 0, %s85
    %s107 = sphi 0, %s109
    %s110 = sphi 0, %s107
    %s111 = sphi 0, %s110
    %s127 = sphi 0, %s111
  $region4: #{brc_caspp_forward.3} parent=0 // loop_header_branch
    %13 = sbr.rel (%p11) target = $region8
  $region5: #{brc_caspp_forward.3} parent=0 // loop_body
    %s15 = ssub.s32 %s10, 1
    %s16 = ssub.s32 %s10, 2
    %s23 = sadd.s32 1, %s18
    %p24 = scmp.ge.s32.totalorder %s23, 1
    %s25 = scalar_select %p24, 0, %s23
    %s26 = sadd.s32 1, %s17
    %s27 = scalar_select %p24, %s26, %s17
    %p28 = scmp.ge.s32.totalorder %s27, 2
    %s29 = scalar_select %p28, 0, %s27
    %s30 = sadd.s32 %s17, %s18
    %s31 = sadd.s32 %s29, %s25
    %s32 = ssub.s32 %s30, %s31
    %p33 = scmp.eq.s32.totalorder %s32, 0
    %s35 = sadd.s32 %s34, 1
    %s36 = scalar_select %p33, %s34, %s35
    %p39 = pneg %p33
    %p40 = scmp.eq.s32.totalorder %s10, 1
    %p41 = por %p39, %p40
    %p42 = scmp.ne.s32.totalorder %s34, %s37
    %p43 = scmp.eq.s32.totalorder %s10, 0
    %p44 = por %p42, %p43
    %p45 = scmp.ne.s32.totalorder %s34, %s37
    %p46 = scmp.eq.s32.totalorder %s15, 1
    %p47 = por %p45, %p46
    %p48 = scmp.ne.s32.totalorder %s37, %s38
    %p49 = scmp.eq.s32.totalorder %s15, 0
    %p50 = por %p48, %p49
    %p51 = scmp.ne.s32.totalorder %s37, %s38
    %p52 = scmp.eq.s32.totalorder %s16, 1
    %p53 = por %p51, %p52
    %p55 = scmp.ne.s32.totalorder %s38, %s54
    %p56 = scmp.eq.s32.totalorder %s16, 0
    %p57 = por %p55, %p56
    %s59 = sadd.s32 %s58, 1
    %p62 = scmp.eq.s32.totalorder %s10, 1
    %p63 = scmp.ne.s32.totalorder %s58, %s60
    %p64 = scmp.eq.s32.totalorder %s10, 0
    %p65 = por %p63, %p64
    %p66 = scmp.ne.s32.totalorder %s58, %s60
    %p67 = scmp.eq.s32.totalorder %s15, 1
    %p68 = por %p66, %p67
    %p69 = scmp.ne.s32.totalorder %s60, %s61
    %p70 = scmp.eq.s32.totalorder %s15, 0
    %p71 = por %p69, %p70
    %p72 = scmp.ne.s32.totalorder %s60, %s61
    %p73 = scmp.eq.s32.totalorder %s16, 1
    %p74 = por %p72, %p73
    %p76 = scmp.ne.s32.totalorder %s61, %s75
    %p77 = scmp.eq.s32.totalorder %s16, 0
    %p78 = por %p76, %p77
    %s79 = ssub.s32 %s17, %s29
    %p80 = scmp.eq.s32.totalorder %s79, 0
    %s82 = sadd.s32 %s81, 1
    %s83 = scalar_select %p80, %s81, %s82
    %p86 = pneg %p80
    %p87 = scmp.eq.s32.totalorder %s10, 1
    %p88 = por %p86, %p87
    %p89 = scmp.ne.s32.totalorder %s81, %s84
    %p90 = scmp.eq.s32.totalorder %s10, 0
    %p91 = por %p89, %p90
    %p92 = scmp.ne.s32.totalorder %s81, %s84
    %p93 = scmp.eq.s32.totalorder %s15, 1
    %p94 = por %p92, %p93
    %p95 = scmp.ne.s32.totalorder %s84, %s85
    %p96 = scmp.eq.s32.totalorder %s15, 0
    %p97 = por %p95, %p96
    %p98 = scmp.ne.s32.totalorder %s84, %s85
    %p99 = scmp.eq.s32.totalorder %s16, 1
    %p100 = por %p98, %p99
    %p102 = scmp.ne.s32.totalorder %s85, %s101
    %p103 = scmp.eq.s32.totalorder %s16, 0
    %p104 = por %p102, %p103
    %s105 = ssub.s32 %s17, %s29
    %p106 = scmp.eq.s32.totalorder %s105, 0
    %s108 = sadd.s32 %s107, 1
    %s109 = scalar_select %p106, %s107, %s108
    %p112 = pneg %p106
    %p113 = scmp.eq.s32.totalorder %s10, 1
    %p114 = por %p112, %p113
    %p115 = scmp.ne.s32.totalorder %s107, %s110
    %p116 = scmp.eq.s32.totalorder %s10, 0
    %p117 = por %p115, %p116
    %p118 = scmp.ne.s32.totalorder %s107, %s110
    %p119 = scmp.eq.s32.totalorder %s15, 1
    %p120 = por %p118, %p119
    %p121 = scmp.ne.s32.totalorder %s110, %s111
    %p122 = scmp.eq.s32.totalorder %s15, 0
    %p123 = por %p121, %p122
    %p124 = scmp.ne.s32.totalorder %s110, %s111
    %p125 = scmp.eq.s32.totalorder %s16, 1
    %p126 = por %p124, %p125
    %p128 = scmp.ne.s32.totalorder %s111, %s127
    %p129 = scmp.eq.s32.totalorder %s16, 0
    %p130 = por %p128, %p129
    %p131 = scmp.le.s32.totalorder 1, %s10
    %p132 = scmp.lt.s32.totalorder %s10, 3
    %p133 = pnand %p131, %p132
    %p134 = pneg %p133
    // Predicated region
    $region9: #{brc_caspp_forward.3} parent=5 // pred_check
      _
    $region10: #{brc_caspp_forward.3} parent=5 // pred_check_branch
      %136 = sbr.rel (%p133) target = $region12
    $region11: #{brc_caspp_forward.3} parent=5 // pred_region
      %s137 = ssub.s32 %s10, 1
      // Predicated region
      $region13: #{brc_caspp_forward.3} parent=11 // pred_check
        %p138 = pneg %p71
      $region14: #{brc_caspp_forward.3} parent=11 // pred_check_branch
        %140 = sbr.rel (%p138) target = $region16
      $region15: #{brc_caspp_forward.3} parent=11 // pred_region
        _
      $region16: #{brc_caspp_forward.3} parent=11 // pred_fallthru
        _
    $region12: #{brc_caspp_forward.3} parent=5 // pred_fallthru
      _
    %p141 = scmp.lt.s32.totalorder %s10, 2
    // Predicated region
    $region17: #{brc_caspp_forward.3} parent=5 // pred_check
      %p142 = pneg %p141
    $region18: #{brc_caspp_forward.3} parent=5 // pred_check_branch
      %144 = sbr.rel (%p142) target = $region20
    $region19: #{brc_caspp_forward.3} parent=5 // pred_region
      // Predicated region
      $region21: #{brc_caspp_forward.3} parent=19 // pred_check
        %p145 = pneg %p44
      $region22: #{brc_caspp_forward.3} parent=19 // pred_check_branch
        %147 = sbr.rel (%p145) target = $region24
      $region23: #{brc_caspp_forward.3} parent=19 // pred_region
        %s148 = sadd.s32 %s17, %s18
        %p149 = scmp.lt.s32.totalorder %s148, 1
        %s150 = scalar_select %p149, %s148, 1
        %s151 = smul.addr %s150, 8
        %s152 = scalar_lea.vmem %s0, %s151
        %s153 = sadd.s32 %s17, %s18
      $region24: #{brc_caspp_forward.3} parent=19 // pred_fallthru
        _
    $region20: #{brc_caspp_forward.3} parent=5 // pred_fallthru
      _
    %p154 = scmp.le.s32.totalorder 1, %s10
    %p155 = scmp.lt.s32.totalorder %s10, 3
    %p156 = pnand %p154, %p155
    %p157 = pneg %p156
    // Predicated region
    $region25: #{brc_caspp_forward.3} parent=5 // pred_check
      _
    $region26: #{brc_caspp_forward.3} parent=5 // pred_check_branch
      %159 = sbr.rel (%p156) target = $region28
    $region27: #{brc_caspp_forward.3} parent=5 // pred_region
      %s160 = ssub.s32 %s10, 1
      %s161 = sadd.s32 %s19, %s20
      %p162 = scmp.lt.s32.totalorder %s161, 1
      %s163 = scalar_select %p162, %s161, 1
      %s164 = smul.addr %s163, 8
      %s165 = scalar_lea.vmem %s0, %s164
      %p166 = pneg %p50
      %p167 = pneg %p47
      %p168 = pneg %p71
      %p169 = pneg %p68
      %p170 = pneg %p97
      %p171 = pneg %p94
      %p172 = scmp.lt.s32.totalorder %s19, 1
      %s173 = scalar_select %p172, %s19, 1
      %s174 = smul.addr %s173, 8
      %s175 = scalar_lea.vmem %s2, %s174
      %p176 = pneg %p123
      %p177 = pneg %p120
      %p178 = scmp.lt.s32.totalorder %s19, 1
      %s179 = scalar_select %p178, %s19, 1
      %s180 = smul.addr %s179, 8
      %s181 = scalar_lea.vmem %s3, %s180
      %s182 = sadd.s32 %s19, %s20
      %p183 = scmp.lt.s32.totalorder %s182, 1
      %s184 = scalar_select %p183, %s182, 1
      %s185 = smul.addr %s184, 8
      %s186 = scalar_lea.vmem %s0, %s185
      %s187 = sadd.s32 %s19, %s20
      %p188 = scmp.lt.s32.totalorder %s19, 1
      %s189 = scalar_select %p188, %s19, 1
      %s190 = smul.addr %s189, 8
      %s191 = scalar_lea.vmem %s2, %s190
      %p192 = scmp.lt.s32.totalorder %s19, 1
      %s193 = scalar_select %p192, %s19, 1
      %s194 = smul.addr %s193, 8
      %s195 = scalar_lea.vmem %s3, %s194
      %p196 = scmp.eq.s32.totalorder %s20, 0
      // Predicated region
      $region29: #{brc_caspp_forward.3} parent=27 // pred_check
        %p197 = pneg %p196
      $region30: #{brc_caspp_forward.3} parent=27 // pred_check_branch
        %199 = sbr.rel (%p197) target = $region32
      $region31: #{brc_caspp_forward.3} parent=27 // pred_region
        %200 = vst [vmem:[%s191] sm:$0xff] 0.0
        %201 = vst [vmem:[%s195] sm:$0xff] 0.0
      $region32: #{brc_caspp_forward.3} parent=27 // pred_fallthru
        _
      %v202 = vld [vmem:[%s186] sm:$0xff]
      %v203 = vld [vmem:[%s1] sm:$0x1]
      %v205 = vlaneseq
      %v206 = vshrl.u32 %v205, 7
      %v207 = vsub.s32 0, %v206
      %v208 = vrot.slane %v203, %v207
      %v210 = vsub.f32 %v202, %v208
      %v211 = vld [vmem:[%s191] sm:$0xff]
      %v212 = vrot.slane %v210, 4
      %v213 = vadd.f32 %v210, %v212
      %v214 = vrot.slane %v213, 2
      %v215 = vadd.f32 %v213, %v214
      %v216 = vrot.slane %v215, 1
      %v217 = vadd.f32 %v215, %v216
      %v218 = vadd.f32 %v211, %v217
      %219 = vst [vmem:[%s191] sm:$0xff] %v218
      %v220 = vld [vmem:[%s195] sm:$0xff]
      %v221 = vmul.f32 %v210, %v210
      %v222 = vrot.slane %v221, 4
      %v223 = vadd.f32 %v221, %v222
      %v224 = vrot.slane %v223, 2
      %v225 = vadd.f32 %v223, %v224
      %v226 = vrot.slane %v225, 1
      %v227 = vadd.f32 %v225, %v226
      %v228 = vadd.f32 %v220, %v227
      %229 = vst [vmem:[%s195] sm:$0xff] %v228
      %p230 = scmp.lt.s32.totalorder %s19, 1
      %s231 = scalar_select %p230, %s19, 1
      %s232 = smul.addr %s231, 8
      %s233 = scalar_lea.vmem %s2, %s232
      %p234 = scmp.lt.s32.totalorder %s19, 1
      %s235 = scalar_select %p234, %s19, 1
      %s236 = smul.addr %s235, 8
      %s237 = scalar_lea.vmem %s3, %s236
      // Predicated region
      $region33: #{brc_caspp_forward.3} parent=27 // pred_check
        %p238 = pneg %p94
      $region34: #{brc_caspp_forward.3} parent=27 // pred_check_branch
        %240 = sbr.rel (%p238) target = $region36
      $region35: #{brc_caspp_forward.3} parent=27 // pred_region
        _
      $region36: #{brc_caspp_forward.3} parent=27 // pred_fallthru
        _
      // Predicated region
      $region37: #{brc_caspp_forward.3} parent=27 // pred_check
        %p241 = pneg %p120
      $region38: #{brc_caspp_forward.3} parent=27 // pred_check_branch
        %243 = sbr.rel (%p241) target = $region40
      $region39: #{brc_caspp_forward.3} parent=27 // pred_region
        _
      $region40: #{brc_caspp_forward.3} parent=27 // pred_fallthru
        _
    $region28: #{brc_caspp_forward.3} parent=5 // pred_fallthru
      _
    %p244 = scmp.le.s32.totalorder 2, %s10
    // Predicated region
    $region41: #{brc_caspp_forward.3} parent=5 // pred_check
      %p245 = pneg %p244
    $region42: #{brc_caspp_forward.3} parent=5 // pred_check_branch
      %247 = sbr.rel (%p245) target = $region44
    $region43: #{brc_caspp_forward.3} parent=5 // pred_region
      %s248 = ssub.s32 %s10, 2
      // Predicated region
      $region45: #{brc_caspp_forward.3} parent=43 // pred_check
        %p249 = pneg %p100
      $region46: #{brc_caspp_forward.3} parent=43 // pred_check_branch
        %251 = sbr.rel (%p249) target = $region48
      $region47: #{brc_caspp_forward.3} parent=43 // pred_region
        %p252 = scmp.lt.s32.totalorder %s21, 1
        %s253 = scalar_select %p252, %s21, 1
        %s254 = smul.addr %s253, 8
        %s255 = scalar_lea.vmem %s2, %s254
      $region48: #{brc_caspp_forward.3} parent=43 // pred_fallthru
        _
      // Predicated region
      $region49: #{brc_caspp_forward.3} parent=43 // pred_check
        %p256 = pneg %p126
      $region50: #{brc_caspp_forward.3} parent=43 // pred_check_branch
        %258 = sbr.rel (%p256) target = $region52
      $region51: #{brc_caspp_forward.3} parent=43 // pred_region
        %p259 = scmp.lt.s32.totalorder %s21, 1
        %s260 = scalar_select %p259, %s21, 1
        %s261 = smul.addr %s260, 8
        %s262 = scalar_lea.vmem %s3, %s261
      $region52: #{brc_caspp_forward.3} parent=43 // pred_fallthru
        _
    $region44: #{brc_caspp_forward.3} parent=5 // pred_fallthru
      _
  $region6: #{brc_caspp_forward.3} parent=0 // loop_footer
    %s14 = sadd.s32 1, %s10
  $region7: #{brc_caspp_forward.3} parent=0 // loop_footer_branch
    %9 = sbr.rel target = $region3
  $region8: #{brc_caspp_forward.3} parent=0 // loop_exit
    _

// kernel: brc_caspp_forward.5
$region0: #{brc_caspp_forward.5}
  #allocation0 [shape = 'u32[]', space=smem, size = 0x4, offset = 0x4, fixed_abs, tag = 'smem constant byte address 0x4 - core index']
  #allocation1 [shape = 'u32[144,128]{1,0:T(1,128)}', space=vmem, size = 0x12000, scoped, tag = 'internal scratch']
  #allocation2 [shape = 'f32[200,128]{1,0:T(8,128)}', space=vmem, size = 0x19000, scoped, tag = 'scratch operand']
  %s0 = inlined_call_operand.vmem [shape: bf16[1200,8], index: 0, kind: input, shape index: {}, may-alias: {0,1}]
  %s1 = inlined_call_operand.vmem [shape: bf16[1200,8], index: 1, kind: input, shape index: {}, may-alias: {0,1}]
  %s2 = inlined_call_operand.vmem [shape: bf16[9,8,128], index: 2, kind: input, shape index: {}]
  %s3 = inlined_call_operand.vmem [shape: f32[1,128], index: 3, kind: input, shape index: {}]
  %s4 = inlined_call_operand.vmem [shape: bf16[800,128], index: 4, kind: output, shape index: {}]
  %s5 = sld [smem:[#allocation0]]
  $region57: #{brc_caspp_forward.5} parent=0
    _
  %s7 = ssub.s32 1, %s5
  %s8 = scalar_select 0, %s7, %s5
  loop: start=0, step=1, limit=6
  $region2: #{brc_caspp_forward.5} parent=0 // loop_pre_header
    _
  $region3: #{brc_caspp_forward.5} parent=0 // loop_header
    %s10 = sphi 0, %s14
    %p11 = scmp.ge.s32.totalorder %s10, 6
    %s17 = sphi 0, %s29
    %s18 = sphi 0, %s25
    %s19 = sphi 0, %s17
    %s20 = sphi 0, %s18
    %s21 = sphi 0, %s19
    %s22 = sphi 0, %s20
    %s34 = sphi 0, %s36
    %s37 = sphi 0, %s34
    %s38 = sphi 0, %s37
    %s54 = sphi 0, %s38
    %s64 = sphi 0, %s66
    %s67 = sphi 0, %s64
    %s68 = sphi 0, %s67
    %s84 = sphi 0, %s68
    %s90 = sphi 0, %s92
    %s93 = sphi 0, %s90
    %s94 = sphi 0, %s93
    %s110 = sphi 0, %s94
    %s114 = sphi 0, %s114
    %s116 = sphi 0, %s114
    %s117 = sphi 0, %s116
    %s131 = sphi 0, %s117
    %s137 = sphi 0, %s139
    %s140 = sphi 0, %s137
    %s141 = sphi 0, %s140
    %s157 = sphi 0, %s141
  $region4: #{brc_caspp_forward.5} parent=0 // loop_header_branch
    %13 = sbr.rel (%p11) target = $region8
  $region5: #{brc_caspp_forward.5} parent=0 // loop_body
    %s15 = ssub.s32 %s10, 1
    %s16 = ssub.s32 %s10, 2
    %s23 = sadd.s32 1, %s18
    %p24 = scmp.ge.s32.totalorder %s23, 1
    %s25 = scalar_select %p24, 0, %s23
    %s26 = sadd.s32 1, %s17
    %s27 = scalar_select %p24, %s26, %s17
    %p28 = scmp.ge.s32.totalorder %s27, 4
    %s29 = scalar_select %p28, 0, %s27
    %s30 = ssub.s32 %s17, %s29
    %s31 = ssub.s32 %s18, %s25
    %s32 = sor.u32 %s30, %s31
    %p33 = scmp.eq.s32.totalorder %s32, 0
    %s35 = sadd.s32 %s34, 1
    %s36 = scalar_select %p33, %s34, %s35
    %p39 = pneg %p33
    %p40 = scmp.eq.s32.totalorder %s10, 3
    %p41 = por %p39, %p40
    %p42 = scmp.ne.s32.totalorder %s34, %s37
    %p43 = scmp.eq.s32.totalorder %s10, 0
    %p44 = por %p42, %p43
    %p45 = scmp.ne.s32.totalorder %s34, %s37
    %p46 = scmp.eq.s32.totalorder %s15, 3
    %p47 = por %p45, %p46
    %p48 = scmp.ne.s32.totalorder %s37, %s38
    %p49 = scmp.eq.s32.totalorder %s15, 0
    %p50 = por %p48, %p49
    %p51 = scmp.ne.s32.totalorder %s37, %s38
    %p52 = scmp.eq.s32.totalorder %s16, 3
    %p53 = por %p51, %p52
    %p55 = scmp.ne.s32.totalorder %s38, %s54
    %p56 = scmp.eq.s32.totalorder %s16, 0
    %p57 = por %p55, %p56
    %s58 = sadd.s32 %s17, 1
    %s59 = sadd.s32 %s29, 1
    %s60 = ssub.s32 %s58, %s59
    %s61 = ssub.s32 %s18, %s25
    %s62 = sor.u32 %s60, %s61
    %p63 = scmp.eq.s32.totalorder %s62, 0
    %s65 = sadd.s32 %s64, 1
    %s66 = scalar_select %p63, %s64, %s65
    %p69 = pneg %p63
    %p70 = scmp.eq.s32.totalorder %s10, 3
    %p71 = por %p69, %p70
    %p72 = scmp.ne.s32.totalorder %s64, %s67
    %p73 = scmp.eq.s32.totalorder %s10, 0
    %p74 = por %p72, %p73
    %p75 = scmp.ne.s32.totalorder %s64, %s67
    %p76 = scmp.eq.s32.totalorder %s15, 3
    %p77 = por %p75, %p76
    %p78 = scmp.ne.s32.totalorder %s67, %s68
    %p79 = scmp.eq.s32.totalorder %s15, 0
    %p80 = por %p78, %p79
    %p81 = scmp.ne.s32.totalorder %s67, %s68
    %p82 = scmp.eq.s32.totalorder %s16, 3
    %p83 = por %p81, %p82
    %p85 = scmp.ne.s32.totalorder %s68, %s84
    %p86 = scmp.eq.s32.totalorder %s16, 0
    %p87 = por %p85, %p86
    %s88 = ssub.s32 %s18, %s25
    %p89 = scmp.eq.s32.totalorder %s88, 0
    %s91 = sadd.s32 %s90, 1
    %s92 = scalar_select %p89, %s90, %s91
    %p95 = pneg %p89
    %p96 = scmp.eq.s32.totalorder %s10, 3
    %p97 = por %p95, %p96
    %p98 = scmp.ne.s32.totalorder %s90, %s93
    %p99 = scmp.eq.s32.totalorder %s10, 0
    %p100 = por %p98, %p99
    %p101 = scmp.ne.s32.totalorder %s90, %s93
    %p102 = scmp.eq.s32.totalorder %s15, 3
    %p103 = por %p101, %p102
    %p104 = scmp.ne.s32.totalorder %s93, %s94
    %p105 = scmp.eq.s32.totalorder %s15, 0
    %p106 = por %p104, %p105
    %p107 = scmp.ne.s32.totalorder %s93, %s94
    %p108 = scmp.eq.s32.totalorder %s16, 3
    %p109 = por %p107, %p108
    %p111 = scmp.ne.s32.totalorder %s94, %s110
    %p112 = scmp.eq.s32.totalorder %s16, 0
    %p113 = por %p111, %p112
    %s115 = sadd.s32 %s114, 1
    %p118 = scmp.eq.s32.totalorder %s10, 3
    %p119 = scmp.ne.s32.totalorder %s114, %s116
    %p120 = scmp.eq.s32.totalorder %s10, 0
    %p121 = por %p119, %p120
    %p122 = scmp.ne.s32.totalorder %s114, %s116
    %p123 = scmp.eq.s32.totalorder %s15, 3
    %p124 = por %p122, %p123
    %p125 = scmp.ne.s32.totalorder %s116, %s117
    %p126 = scmp.eq.s32.totalorder %s15, 0
    %p127 = por %p125, %p126
    %p128 = scmp.ne.s32.totalorder %s116, %s117
    %p129 = scmp.eq.s32.totalorder %s16, 3
    %p130 = por %p128, %p129
    %p132 = scmp.ne.s32.totalorder %s117, %s131
    %p133 = scmp.eq.s32.totalorder %s16, 0
    %p134 = por %p132, %p133
    %s135 = ssub.s32 %s17, %s29
    %p136 = scmp.eq.s32.totalorder %s135, 0
    %s138 = sadd.s32 %s137, 1
    %s139 = scalar_select %p136, %s137, %s138
    %p142 = pneg %p136
    %p143 = scmp.eq.s32.totalorder %s10, 3
    %p144 = por %p142, %p143
    %p145 = scmp.ne.s32.totalorder %s137, %s140
    %p146 = scmp.eq.s32.totalorder %s10, 0
    %p147 = por %p145, %p146
    %p148 = scmp.ne.s32.totalorder %s137, %s140
    %p149 = scmp.eq.s32.totalorder %s15, 3
    %p150 = por %p148, %p149
    %p151 = scmp.ne.s32.totalorder %s140, %s141
    %p152 = scmp.eq.s32.totalorder %s15, 0
    %p153 = por %p151, %p152
    %p154 = scmp.ne.s32.totalorder %s140, %s141
    %p155 = scmp.eq.s32.totalorder %s16, 3
    %p156 = por %p154, %p155
    %p158 = scmp.ne.s32.totalorder %s141, %s157
    %p159 = scmp.eq.s32.totalorder %s16, 0
    %p160 = por %p158, %p159
    %p161 = scmp.le.s32.totalorder 1, %s10
    %p162 = scmp.lt.s32.totalorder %s10, 5
    %p163 = pnand %p161, %p162
    %p164 = pneg %p163
    // Predicated region
    $region9: #{brc_caspp_forward.5} parent=5 // pred_check
      _
    $region10: #{brc_caspp_forward.5} parent=5 // pred_check_branch
      %166 = sbr.rel (%p163) target = $region12
    $region11: #{brc_caspp_forward.5} parent=5 // pred_region
      %s167 = ssub.s32 %s10, 1
      // Predicated region
      $region13: #{brc_caspp_forward.5} parent=11 // pred_check
        %p168 = pneg %p106
      $region14: #{brc_caspp_forward.5} parent=11 // pred_check_branch
        %170 = sbr.rel (%p168) target = $region16
      $region15: #{brc_caspp_forward.5} parent=11 // pred_region
        %p171 = scmp.lt.s32.totalorder %s20, 0
        %s172 = scalar_select %p171, %s20, 0
        %s173 = smul.addr %s172, 4
        %s174 = scalar_lea.vmem %s2, %s173
      $region16: #{brc_caspp_forward.5} parent=11 // pred_fallthru
        _
      // Predicated region
      $region17: #{brc_caspp_forward.5} parent=11 // pred_check
        %p175 = pneg %p127
      $region18: #{brc_caspp_forward.5} parent=11 // pred_check_branch
        %177 = sbr.rel (%p175) target = $region20
      $region19: #{brc_caspp_forward.5} parent=11 // pred_region
        _
      $region20: #{brc_caspp_forward.5} parent=11 // pred_fallthru
        _
    $region12: #{brc_caspp_forward.5} parent=5 // pred_fallthru
      _
    %p178 = scmp.lt.s32.totalorder %s10, 4
    // Predicated region
    $region21: #{brc_caspp_forward.5} parent=5 // pred_check
      %p179 = pneg %p178
    $region22: #{brc_caspp_forward.5} parent=5 // pred_check_branch
      %181 = sbr.rel (%p179) target = $region24
    $region23: #{brc_caspp_forward.5} parent=5 // pred_region
      // Predicated region
      $region25: #{brc_caspp_forward.5} parent=23 // pred_check
        %p182 = pneg %p44
      $region26: #{brc_caspp_forward.5} parent=23 // pred_check_branch
        %184 = sbr.rel (%p182) target = $region28
      $region27: #{brc_caspp_forward.5} parent=23 // pred_region
        %s185 = smul.u32 25, %s17
        %p186 = scmp.lt.s32.totalorder %s185, 149
        %s187 = scalar_select %p186, %s185, 149
        %p188 = scmp.lt.s32.totalorder %s18, 0
        %s189 = scalar_select %p188, %s18, 0
        %s190 = sadd.s32 %s189, %s187
        %s191 = smul.addr %s190, 4
        %s192 = scalar_lea.vmem %s0, %s191
        %s193 = smul.u32 25, %s17
      $region28: #{brc_caspp_forward.5} parent=23 // pred_fallthru
        _
      // Predicated region
      $region29: #{brc_caspp_forward.5} parent=23 // pred_check
        %p194 = pneg %p74
      $region30: #{brc_caspp_forward.5} parent=23 // pred_check_branch
        %196 = sbr.rel (%p194) target = $region32
      $region31: #{brc_caspp_forward.5} parent=23 // pred_region
        %s197 = sadd.s32 %s17, 1
        %s198 = smul.u32 25, %s197
        %p199 = scmp.lt.s32.totalorder %s198, 149
        %s200 = scalar_select %p199, %s198, 149
        %p201 = scmp.lt.s32.totalorder %s18, 0
        %s202 = scalar_select %p201, %s18, 0
        %s203 = sadd.s32 %s202, %s200
        %s204 = smul.addr %s203, 4
        %s205 = scalar_lea.vmem %s1, %s204
        %s206 = sadd.s32 %s17, 1
        %s207 = smul.u32 25, %s206
      $region32: #{brc_caspp_forward.5} parent=23 // pred_fallthru
        _
    $region24: #{brc_caspp_forward.5} parent=5 // pred_fallthru
      _
    %p208 = scmp.le.s32.totalorder 1, %s10
    %p209 = scmp.lt.s32.totalorder %s10, 5
    %p210 = pnand %p208, %p209
    %p211 = pneg %p210
    // Predicated region
    $region33: #{brc_caspp_forward.5} parent=5 // pred_check
      _
    $region34: #{brc_caspp_forward.5} parent=5 // pred_check_branch
      %213 = sbr.rel (%p210) target = $region36
    $region35: #{brc_caspp_forward.5} parent=5 // pred_region
      %s214 = ssub.s32 %s10, 1
      %s215 = smul.u32 25, %s19
      %p216 = scmp.lt.s32.totalorder %s215, 149
      %s217 = scalar_select %p216, %s215, 149
      %p218 = scmp.lt.s32.totalorder %s20, 0
      %s219 = scalar_select %p218, %s20, 0
      %s220 = sadd.s32 %s219, %s217
      %s221 = smul.addr %s220, 4
      %s222 = scalar_lea.vmem %s0, %s221
      %p223 = pneg %p50
      %p224 = pneg %p47
      %s225 = sadd.s32 %s19, 1
      %s226 = smul.u32 25, %s225
      %p227 = scmp.lt.s32.totalorder %s226, 149
      %s228 = scalar_select %p227, %s226, 149
      %p229 = scmp.lt.s32.totalorder %s20, 0
      %s230 = scalar_select %p229, %s20, 0
      %s231 = sadd.s32 %s230, %s228
      %s232 = smul.addr %s231, 4
      %s233 = scalar_lea.vmem %s1, %s232
      %p234 = pneg %p80
      %p235 = pneg %p77
      %p236 = scmp.lt.s32.totalorder %s20, 0
      %s237 = scalar_select %p236, %s20, 0
      %s238 = smul.addr %s237, 4
      %s239 = scalar_lea.vmem %s2, %s238
      %p240 = pneg %p106
      %p241 = pneg %p103
      %p242 = pneg %p127
      %p243 = pneg %p124
      %p244 = pneg %p153
      %p245 = pneg %p150
      %s246 = smul.u32 25, %s19
      %p247 = scmp.lt.s32.totalorder %s246, 99
      %s248 = scalar_select %p247, %s246, 99
      %s249 = smul.addr %s248, 4
      %s250 = scalar_lea.vmem %s4, %s249
      %s251 = smul.u32 25, %s19
      %p252 = scmp.lt.s32.totalorder %s251, 149
      %s253 = scalar_select %p252, %s251, 149
      %p254 = scmp.lt.s32.totalorder %s20, 0
      %s255 = scalar_select %p254, %s20, 0
      %s256 = sadd.s32 %s255, %s253
      %s257 = smul.addr %s256, 4
      %s258 = scalar_lea.vmem %s0, %s257
      %s259 = smul.u32 25, %s19
      %s260 = sadd.s32 %s19, 1
      %s261 = smul.u32 25, %s260
      %p262 = scmp.lt.s32.totalorder %s261, 149
      %s263 = scalar_select %p262, %s261, 149
      %p264 = scmp.lt.s32.totalorder %s20, 0
      %s265 = scalar_select %p264, %s20, 0
      %s266 = sadd.s32 %s265, %s263
      %s267 = smul.addr %s266, 4
      %s268 = scalar_lea.vmem %s1, %s267
      %s269 = sadd.s32 %s19, 1
      %s270 = smul.u32 25, %s269
      %p271 = scmp.lt.s32.totalorder %s20, 0
      %s272 = scalar_select %p271, %s20, 0
      %s273 = smul.addr %s272, 4
      %s274 = scalar_lea.vmem %s2, %s273
      %s275 = smul.u32 25, %s19
      %p276 = scmp.lt.s32.totalorder %s275, 99
      %s277 = scalar_select %p276, %s275, 99
      %s278 = smul.addr %s277, 4
      %s279 = scalar_lea.vmem %s4, %s278
      %s280 = smul.u32 25, %s19
      %p282 = scmp.eq.s32.totalorder %s20, 0
      // Predicated region
      $region37: #{brc_caspp_forward.5} parent=35 // pred_check
        %p283 = pneg %p282
      $region38: #{brc_caspp_forward.5} parent=35 // pred_check_branch
        %285 = sbr.rel (%p283) target = $region40
      $region39: #{brc_caspp_forward.5} parent=35 // pred_region
        %286 = vst [vmem:[#allocation2] sm:$0xff] 0.0
        %287 = vst [vmem:[#allocation2 + $0x8] sm:$0xff] 0.0
        %288 = vst [vmem:[#allocation2 + $0x10] sm:$0xff] 0.0
        %289 = vst [vmem:[#allocation2 + $0x18] sm:$0xff] 0.0
        %290 = vst [vmem:[#allocation2 + $0x20] sm:$0xff] 0.0
        %291 = vst [vmem:[#allocation2 + $0x28] sm:$0xff] 0.0
        %292 = vst [vmem:[#allocation2 + $0x30] sm:$0xff] 0.0
        %293 = vst [vmem:[#allocation2 + $0x38] sm:$0xff] 0.0
        %294 = vst [vmem:[#allocation2 + $0x40] sm:$0xff] 0.0
        %295 = vst [vmem:[#allocation2 + $0x48] sm:$0xff] 0.0
        %296 = vst [vmem:[#allocation2 + $0x50] sm:$0xff] 0.0
        %297 = vst [vmem:[#allocation2 + $0x58] sm:$0xff] 0.0
        %298 = vst [vmem:[#allocation2 + $0x60] sm:$0xff] 0.0
        %299 = vst [vmem:[#allocation2 + $0x68] sm:$0xff] 0.0
        %300 = vst [vmem:[#allocation2 + $0x70] sm:$0xff] 0.0
        %301 = vst [vmem:[#allocation2 + $0x78] sm:$0xff] 0.0
        %302 = vst [vmem:[#allocation2 + $0x80] sm:$0xff] 0.0
        %303 = vst [vmem:[#allocation2 + $0x88] sm:$0xff] 0.0
        %304 = vst [vmem:[#allocation2 + $0x90] sm:$0xff] 0.0
        %305 = vst [vmem:[#allocation2 + $0x98] sm:$0xff] 0.0
        %306 = vst [vmem:[#allocation2 + $0xa0] sm:$0xff] 0.0
        %307 = vst [vmem:[#allocation2 + $0xa8] sm:$0xff] 0.0
        %308 = vst [vmem:[#allocation2 + $0xb0] sm:$0xff] 0.0
        %309 = vst [vmem:[#allocation2 + $0xb8] sm:$0xff] 0.0
        %310 = vst [vmem:[#allocation2 + $0xc0] sm:$0xff] 0.0
      $region40: #{brc_caspp_forward.5} parent=35 // pred_fallthru
        _
      %v311 = vld [vmem:[%s258] sm:$0xf]
      %v312 = vld [vmem:[%s258 + $0x4] sm:$0xf]
      %v313 = vld [vmem:[%s258 + $0x8] sm:$0xf]
      %v314 = vld [vmem:[%s258 + $0xc] sm:$0xf]
      %v315 = vld [vmem:[%s258 + $0x10] sm:$0xf]
      %v316 = vld [vmem:[%s258 + $0x14] sm:$0xf]
      %v317 = vld [vmem:[%s258 + $0x18] sm:$0xf]
      %v318 = vld [vmem:[%s258 + $0x1c] sm:$0xf]
      %v319 = vld [vmem:[%s258 + $0x20] sm:$0xf]
      %v320 = vld [vmem:[%s258 + $0x24] sm:$0xf]
      %v321 = vld [vmem:[%s258 + $0x28] sm:$0xf]
      %v322 = vld [vmem:[%s258 + $0x2c] sm:$0xf]
      %v323 = vld [vmem:[%s258 + $0x30] sm:$0xf]
      %v324 = vld [vmem:[%s258 + $0x34] sm:$0xf]
      %v325 = vld [vmem:[%s258 + $0x38] sm:$0xf]
      %v326 = vld [vmem:[%s258 + $0x3c] sm:$0xf]
      %v327 = vld [vmem:[%s258 + $0x40] sm:$0xf]
      %v328 = vld [vmem:[%s258 + $0x44] sm:$0xf]
      %v329 = vld [vmem:[%s258 + $0x48] sm:$0xf]
      %v330 = vld [vmem:[%s258 + $0x4c] sm:$0xf]
      %v331 = vld [vmem:[%s258 + $0x50] sm:$0xf]
      %v332 = vld [vmem:[%s258 + $0x54] sm:$0xf]
      %v333 = vld [vmem:[%s258 + $0x58] sm:$0xf]
      %v334 = vld [vmem:[%s258 + $0x5c] sm:$0xf]
      %v335 = vld [vmem:[%s258 + $0x60] sm:$0xf]
      %v336 = vld [vmem:[%s268] sm:$0xf]
      %v337 = vld [vmem:[%s268 + $0x4] sm:$0xf]
      %v338 = vld [vmem:[%s268 + $0x8] sm:$0xf]
      %v339 = vld [vmem:[%s268 + $0xc] sm:$0xf]
      %v340 = vld [vmem:[%s268 + $0x10] sm:$0xf]
      %v341 = vld [vmem:[%s268 + $0x14] sm:$0xf]
      %v342 = vld [vmem:[%s268 + $0x18] sm:$0xf]
      %v343 = vld [vmem:[%s268 + $0x1c] sm:$0xf]
      %v344 = vld [vmem:[%s268 + $0x20] sm:$0xf]
      %v345 = vld [vmem:[%s268 + $0x24] sm:$0xf]
      %v346 = vld [vmem:[%s268 + $0x28] sm:$0xf]
      %v372 = vunpack.c.l.b16 %v311
      %v373 = vunpack.c.l.b16 %v312
      %v374 = vunpack.c.l.b16 %v313
      %v375 = vunpack.c.l.b16 %v314
      %v376 = vunpack.c.l.b16 %v315
      %v377 = vunpack.c.l.b16 %v316
      %v378 = vunpack.c.l.b16 %v317
      %v379 = vunpack.c.l.b16 %v318
      %v380 = vunpack.c.l.b16 %v319
      %v381 = vunpack.c.l.b16 %v320
      %v382 = vunpack.c.l.b16 %v321
      %v383 = vunpack.c.l.b16 %v322
      %v384 = vunpack.c.l.b16 %v323
      %v385 = vunpack.c.l.b16 %v324
      %v386 = vunpack.c.l.b16 %v325
      %v387 = vunpack.c.l.b16 %v326
      %v388 = vunpack.c.l.b16 %v327
      %v389 = vunpack.c.l.b16 %v328
      %v390 = vunpack.c.l.b16 %v329
      %v391 = vunpack.c.l.b16 %v330
      %v392 = vunpack.c.l.b16 %v331
      %v393 = vunpack.c.l.b16 %v332
      %v394 = vunpack.c.l.b16 %v333
      %v395 = vunpack.c.l.b16 %v334
      %v396 = vunpack.c.l.b16 %v335
      %v397 = vpack.c.b16 %v373, %v372
      %v398 = vpack.c.b16 %v375, %v374
      %v399 = vpack.c.b16 %v377, %v376
      %v400 = vpack.c.b16 %v379, %v378
      %v401 = vpack.c.b16 %v381, %v380
      %v402 = vpack.c.b16 %v383, %v382
      %v403 = vpack.c.b16 %v385, %v384
      %v404 = vpack.c.b16 %v387, %v386
      %v405 = vpack.c.b16 %v389, %v388
      %v406 = vpack.c.b16 %v391, %v390
      %v407 = vpack.c.b16 %v393, %v392
      %v408 = vpack.c.b16 %v395, %v394
      %v409 = vpack.c.b16 %v396, %v396
      %v421 = vunpack.c.l.b16 %v336
      %v422 = vunpack.c.l.b16 %v337
      %v423 = vunpack.c.l.b16 %v338
      %v424 = vunpack.c.l.b16 %v339
      %v425 = vunpack.c.l.b16 %v340
      %v426 = vunpack.c.l.b16 %v341
      %v427 = vunpack.c.l.b16 %v342
      %v428 = vunpack.c.l.b16 %v343
      %v429 = vunpack.c.l.b16 %v344
      %v430 = vunpack.c.l.b16 %v345
      %v431 = vunpack.c.l.b16 %v346
      %v432 = vpack.c.b16 %v421, %v421
      %v433 = vpack.c.b16 %v423, %v422
      %v434 = vpack.c.b16 %v425, %v424
      %v435 = vpack.c.b16 %v427, %v426
      %v436 = vpack.c.b16 %v429, %v428
      %v437 = vpack.c.b16 %v431, %v430
      %vm438 = vcmask 1043456
      %v441 = vsel %vm438, %v409, %v432
      %v442 = vld [vmem:[#allocation2] sm:$0xff]
      %v443 = vld [vmem:[#allocation2 + $0x8] sm:$0xff]
      %v444 = vld [vmem:[#allocation2 + $0x10] sm:$0xff]
      %v445 = vld [vmem:[#allocation2 + $0x18] sm:$0xff]
      %v446 = vld [vmem:[#allocation2 + $0x20] sm:$0xff]
      %v447 = vld [vmem:[#allocation2 + $0x28] sm:$0xff]
      %v448 = vld [vmem:[#allocation2 + $0x30] sm:$0xff]
      %v449 = vld [vmem:[#allocation2 + $0x38] sm:$0xff]
      %v450 = vld [vmem:[#allocation2 + $0x40] sm:$0xff]
      %v451 = vld [vmem:[#allocation2 + $0x48] sm:$0xff]
      %v452 = vld [vmem:[#allocation2 + $0x50] sm:$0xff]
      %v453 = vld [vmem:[#allocation2 + $0x58] sm:$0xff]
      %v454 = vld [vmem:[#allocation2 + $0x60] sm:$0xff]
      %v455 = vld [vmem:[#allocation2 + $0x68] sm:$0xff]
      %v456 = vld [vmem:[#allocation2 + $0x70] sm:$0xff]
      %v457 = vld [vmem:[#allocation2 + $0x78] sm:$0xff]
      %v458 = vld [vmem:[#allocation2 + $0x80] sm:$0xff]
      %v459 = vld [vmem:[#allocation2 + $0x88] sm:$0xff]
      %v460 = vld [vmem:[#allocation2 + $0x90] sm:$0xff]
      %v461 = vld [vmem:[#allocation2 + $0x98] sm:$0xff]
      %v462 = vld [vmem:[#allocation2 + $0xa0] sm:$0xff]
      %v463 = vld [vmem:[#allocation2 + $0xa8] sm:$0xff]
      %v464 = vld [vmem:[#allocation2 + $0xb0] sm:$0xff]
      %v465 = vld [vmem:[#allocation2 + $0xb8] sm:$0xff]
      %v466 = vld [vmem:[#allocation2 + $0xc0] sm:$0xff]
      %v467 = vld [vmem:[%s274] sm:$0xf]
      %vm468 = vcmask 64512
      %v470 = vsel %vm468, %v397, 0
      %v473 = vsel %vm468, %v398, 0
      %v476 = vsel %vm468, %v399, 0
      %v479 = vsel %vm468, %v400, 0
      %v482 = vsel %vm468, %v401, 0
      %v485 = vsel %vm468, %v402, 0
      %v488 = vsel %vm468, %v403, 0
      %v491 = vsel %vm468, %v404, 0
      %v494 = vsel %vm468, %v405, 0
      %v497 = vsel %vm468, %v406, 0
      %v500 = vsel %vm468, %v407, 0
      %v503 = vsel %vm468, %v408, 0
      %v505 = vsel %vm468, %v441, 0
      %v508 = vsel %vm438, %v467, 0
      %510 = vmatprep.subr.bf16.mxu0 0
      %511 = vmatpush1.bf16.msra.mxu0 %v508
      %512 = vmatprep.subr.bf16.mxu0 0
      %513 = vmatpush1.bf16.msra.mxu0 0
      %514 = vmatprep.subr.bf16.mxu0 0
      %515 = vmatpush1.bf16.msra.mxu0 0
      %516 = vmatprep.subr.bf16.mxu0 0
      %517 = vmatpush1.bf16.msra.mxu0 0
      %518 = vmatprep.subr.bf16.mxu0 0
      %519 = vmatpush1.bf16.msra.mxu0 0
      %520 = vmatprep.subr.bf16.mxu0 0
      %521 = vmatpush1.bf16.msra.mxu0 0
      %522 = vmatprep.subr.bf16.mxu0 0
      %523 = vmatpush1.bf16.msra.mxu0 0
      %524 = vmatprep.subr.bf16.mxu0 0
      %525 = vmatpush1.bf16.msra.mxu0 0
      %526 = vmatprep.subr.bf16.mxu0 0
      %527 = vmatpush1.bf16.msra.mxu0 0
      %528 = vmatprep.subr.bf16.mxu0 0
      %529 = vmatpush1.bf16.msra.mxu0 0
      %530 = vmatprep.subr.bf16.mxu0 0
      %531 = vmatpush1.bf16.msra.mxu0 0
      %532 = vmatprep.subr.bf16.mxu0 0
      %533 = vmatpush1.bf16.msra.mxu0 0
      %534 = vmatprep.subr.bf16.mxu0 0
      %535 = vmatpush1.bf16.msra.mxu0 0
      %536 = vmatprep.subr.bf16.mxu0 0
      %537 = vmatpush1.bf16.msra.mxu0 0
      %538 = vmatprep.subr.bf16.mxu0 0
      %539 = vmatpush1.bf16.msra.mxu0 0
      %540 = vmatprep.subr.bf16.mxu0 0
      %541 = vmatpush1.bf16.msra.mxu0 0
      %542 = vmatprep.mubr.bf16.mxu0 0
      %543 = vmatmul.mubr.bf16.gmra.mrb[0].mxu0 %v470
      %v544 = vpop.f32.mrb[0].mxu0
      %v545 = vadd.f32 0.0, %v544
      %v546 = vpop.f32.mrb[0].mxu0
      %v547 = vpop.f32.mrb[0].mxu0
      %v548 = vadd.f32 0.0, %v547
      %v549 = vpop.f32.mrb[0].mxu0
      %550 = vmatprep.mubr.bf16.mxu0 0
      %551 = vmatmul.mubr.bf16.gmra.mrb[0].mxu0 %v473
      %v552 = vpop.f32.mrb[0].mxu0
      %v553 = vadd.f32 0.0, %v552
      %v554 = vpop.f32.mrb[0].mxu0
      %v555 = vpop.f32.mrb[0].mxu0
      %v556 = vadd.f32 0.0, %v555
      %v557 = vpop.f32.mrb[0].mxu0
      %558 = vmatprep.mubr.bf16.mxu0 0
      %559 = vmatmul.mubr.bf16.gmra.mrb[0].mxu0 %v476
      %v560 = vpop.f32.mrb[0].mxu0
      %v561 = vadd.f32 0.0, %v560
      %v562 = vpop.f32.mrb[0].mxu0
      %v563 = vpop.f32.mrb[0].mxu0
      %v564 = vadd.f32 0.0, %v563
      %v565 = vpop.f32.mrb[0].mxu0
      %566 = vmatprep.mubr.bf16.mxu0 0
      %567 = vmatmul.mubr.bf16.gmra.mrb[0].mxu0 %v479
      %v568 = vpop.f32.mrb[0].mxu0
      %v569 = vadd.f32 0.0, %v568
      %v570 = vpop.f32.mrb[0].mxu0
      %v571 = vpop.f32.mrb[0].mxu0
      %v572 = vadd.f32 0.0, %v571
      %v573 = vpop.f32.mrb[0].mxu0
      %574 = vmatprep.mubr.bf16.mxu0 0
      %575 = vmatmul.mubr.bf16.gmra.mrb[0].mxu0 %v482
      %v576 = vpop.f32.mrb[0].mxu0
      %v577 = vadd.f32 0.0, %v576
      %v578 = vpop.f32.mrb[0].mxu0
      %v579 = vpop.f32.mrb[0].mxu0
      %v580 = vadd.f32 0.0, %v579
      %v581 = vpop.f32.mrb[0].mxu0
      %582 = vmatprep.mubr.bf16.mxu0 0
      %583 = vmatmul.mubr.bf16.gmra.mrb[0].mxu0 %v485
      %v584 = vpop.f32.mrb[0].mxu0
      %v585 = vadd.f32 0.0, %v584
      %v586 = vpop.f32.mrb[0].mxu0
      %v587 = vpop.f32.mrb[0].mxu0
      %v588 = vadd.f32 0.0, %v587
      %v589 = vpop.f32.mrb[0].mxu0
      %590 = vmatprep.mubr.bf16.mxu0 0
      %591 = vmatmul.mubr.bf16.gmra.mrb[0].mxu0 %v488
      %v592 = vpop.f32.mrb[0].mxu0
      %v593 = vadd.f32 0.0, %v592
      %v594 = vpop.f32.mrb[0].mxu0
      %v595 = vpop.f32.mrb[0].mxu0
      %v596 = vadd.f32 0.0, %v595
      %v597 = vpop.f32.mrb[0].mxu0
      %598 = vmatprep.mubr.bf16.mxu0 0
      %599 = vmatmul.mubr.bf16.gmra.mrb[0].mxu0 %v491
      %v600 = vpop.f32.mrb[0].mxu0
      %v601 = vadd.f32 0.0, %v600
      %v602 = vpop.f32.mrb[0].mxu0
      %v603 = vpop.f32.mrb[0].mxu0
      %v604 = vadd.f32 0.0, %v603
      %v605 = vpop.f32.mrb[0].mxu0
      %606 = vmatprep.mubr.bf16.mxu0 0
      %607 = vmatmul.mubr.bf16.gmra.mrb[0].mxu0 %v494
      %v608 = vpop.f32.mrb[0].mxu0
      %v609 = vadd.f32 0.0, %v608
      %v610 = vpop.f32.mrb[0].mxu0
      %v611 = vpop.f32.mrb[0].mxu0
      %v612 = vadd.f32 0.0, %v611
      %v613 = vpop.f32.mrb[0].mxu0
      %614 = vmatprep.mubr.bf16.mxu0 0
      %615 = vmatmul.mubr.bf16.gmra.mrb[0].mxu0 %v497
      %v616 = vpop.f32.mrb[0].mxu0
      %v617 = vadd.f32 0.0, %v616
      %v618 = vpop.f32.mrb[0].mxu0
      %v619 = vpop.f32.mrb[0].mxu0
      %v620 = vadd.f32 0.0, %v619
      %v621 = vpop.f32.mrb[0].mxu0
      %622 = vmatprep.mubr.bf16.mxu0 0
      %623 = vmatmul.mubr.bf16.gmra.mrb[0].mxu0 %v500
      %v624 = vpop.f32.mrb[0].mxu0
      %v625 = vadd.f32 0.0, %v624
      %v626 = vpop.f32.mrb[0].mxu0
      %v627 = vpop.f32.mrb[0].mxu0
      %v628 = vadd.f32 0.0, %v627
      %v629 = vpop.f32.mrb[0].mxu0
      %630 = vmatprep.mubr.bf16.mxu0 0
      %631 = vmatmul.mubr.bf16.gmra.mrb[0].mxu0 %v503
      %v632 = vpop.f32.mrb[0].mxu0
      %v633 = vadd.f32 0.0, %v632
      %v634 = vpop.f32.mrb[0].mxu0
      %v635 = vpop.f32.mrb[0].mxu0
      %v636 = vadd.f32 0.0, %v635
      %v637 = vpop.f32.mrb[0].mxu0
      %638 = vmatprep.mubr.bf16.mxu0 0
      %639 = vmatmul.mubr.bf16.gmra.mrb[0].mxu0 %v505
      %v640 = vpop.f32.mrb[0].mxu0
      %v641 = vadd.f32 0.0, %v640
      %v642 = vpop.f32.mrb[0].mxu0
      %v643 = vpop.f32.mrb[0].mxu0
      %v644 = vpop.f32.mrb[0].mxu0
      %645 = vdwg.mxu0
      %v646 = vadd.f32 %v442, %v545
      %v647 = vadd.f32 %v443, %v548
      %v648 = vadd.f32 %v444, %v553
      %v649 = vadd.f32 %v445, %v556
      %v650 = vadd.f32 %v446, %v561
      %v651 = vadd.f32 %v447, %v564
      %v652 = vadd.f32 %v448, %v569
      %v653 = vadd.f32 %v449, %v572
      %v654 = vadd.f32 %v450, %v577
      %v655 = vadd.f32 %v451, %v580
      %v656 = vadd.f32 %v452, %v585
      %v657 = vadd.f32 %v453, %v588
      %v658 = vadd.f32 %v454, %v593
      %v659 = vadd.f32 %v455, %v596
      %v660 = vadd.f32 %v456, %v601
      %v661 = vadd.f32 %v457, %v604
      %v662 = vadd.f32 %v458, %v609
      %v663 = vadd.f32 %v459, %v612
      %v664 = vadd.f32 %v460, %v617
      %v665 = vadd.f32 %v461, %v620
      %v666 = vadd.f32 %v462, %v625
      %v667 = vadd.f32 %v463, %v628
      %v668 = vadd.f32 %v464, %v633
      %v669 = vadd.f32 %v465, %v636
      %v670 = vadd.f32 %v466, %v641
      %s671 = scalar_lea.vmem %s274, 4
      %v672 = vld [vmem:[%s671] sm:$0xf]
      %vm674 = vcmask 1046528
      %v675 = vrot.slane %v397, 1
      %v676 = vrot.slane %v398, 1
      %v677 = vsel %vm674, %v675, %v676
      %v678 = vrot.slane %v399, 1
      %v679 = vsel %vm674, %v676, %v678
      %v680 = vrot.slane %v400, 1
      %v681 = vsel %vm674, %v678, %v680
      %v682 = vrot.slane %v401, 1
      %v683 = vsel %vm674, %v680, %v682
      %v684 = vrot.slane %v402, 1
      %v685 = vsel %vm674, %v682, %v684
      %v686 = vrot.slane %v403, 1
      %v687 = vsel %vm674, %v684, %v686
      %v688 = vrot.slane %v404, 1
      %v689 = vsel %vm674, %v686, %v688
      %v690 = vrot.slane %v405, 1
      %v691 = vsel %vm674, %v688, %v690
      %v692 = vrot.slane %v406, 1
      %v693 = vsel %vm674, %v690, %v692
      %v694 = vrot.slane %v407, 1
      %v695 = vsel %vm674, %v692, %v694
      %v696 = vrot.slane %v408, 1
      %v697 = vsel %vm674, %v694, %v696
      %v698 = vrot.slane %v441, 1
      %v699 = vsel %vm674, %v696, %v698
      %v701 = vsel %vm468, %v677, 0
      %v704 = vsel %vm468, %v679, 0
      %v707 = vsel %vm468, %v681, 0
      %v710 = vsel %vm468, %v683, 0
      %v713 = vsel %vm468, %v685, 0
      %v716 = vsel %vm468, %v687, 0
      %v719 = vsel %vm468, %v689, 0
      %v722 = vsel %vm468, %v691, 0
      %v725 = vsel %vm468, %v693, 0
      %v728 = vsel %vm468, %v695, 0
      %v731 = vsel %vm468, %v697, 0
      %v734 = vsel %vm468, %v699, 0
      %v737 = vsel %vm468, %v698, 0
      %v740 = vsel %vm438, %v672, 0
      %742 = vmatprep.subr.bf16.mxu0 0
      %743 = vmatpush1.bf16.msra.mxu0 %v740
      %744 = vmatprep.subr.bf16.mxu0 0
      %745 = vmatpush1.bf16.msra.mxu0 0
      %746 = vmatprep.subr.bf16.mxu0 0
      %747 = vmatpush1.bf16.msra.mxu0 0
      %748 = vmatprep.subr.bf16.mxu0 0
      %749 = vmatpush1.bf16.msra.mxu0 0
      %750 = vmatprep.subr.bf16.mxu0 0
      %751 = vmatpush1.bf16.msra.mxu0 0
      %752 = vmatprep.subr.bf16.mxu0 0
      %753 = vmatpush1.bf16.msra.mxu0 0
      %754 = vmatprep.subr.bf16.mxu0 0
      %755 = vmatpush1.bf16.msra.mxu0 0
      %756 = vmatprep.subr.bf16.mxu0 0
      %757 = vmatpush1.bf16.msra.mxu0 0
      %758 = vmatprep.subr.bf16.mxu0 0
      %759 = vmatpush1.bf16.msra.mxu0 0
      %760 = vmatprep.subr.bf16.mxu0 0
      %761 = vmatpush1.bf16.msra.mxu0 0
      %762 = vmatprep.subr.bf16.mxu0 0
      %763 = vmatpush1.bf16.msra.mxu0 0
      %764 = vmatprep.subr.bf16.mxu0 0
      %765 = vmatpush1.bf16.msra.mxu0 0
      %766 = vmatprep.subr.bf16.mxu0 0
      %767 = vmatpush1.bf16.msra.mxu0 0
      %768 = vmatprep.subr.bf16.mxu0 0
      %769 = vmatpush1.bf16.msra.mxu0 0
      %770 = vmatprep.subr.bf16.mxu0 0
      %771 = vmatpush1.bf16.msra.mxu0 0
      %772 = vmatprep.subr.bf16.mxu0 0
      %773 = vmatpush1.bf16.msra.mxu0 0
      %774 = vmatprep.mubr.bf16.mxu0 0
      %775 = vmatmul.mubr.bf16.gmra.mrb[0].mxu0 %v701
      %v776 = vpop.f32.mrb[0].mxu0
      %v777 = vadd.f32 0.0, %v776
      %v778 = vpop.f32.mrb[0].mxu0
      %v779 = vpop.f32.mrb[0].mxu0
      %v780 = vadd.f32 0.0, %v779
      %v781 = vpop.f32.mrb[0].mxu0
      %782 = vmatprep.mubr.bf16.mxu0 0
      %783 = vmatmul.mubr.bf16.gmra.mrb[0].mxu0 %v704
      %v784 = vpop.f32.mrb[0].mxu0
      %v785 = vadd.f32 0.0, %v784
      %v786 = vpop.f32.mrb[0].mxu0
      %v787 = vpop.f32.mrb[0].mxu0
      %v788 = vadd.f32 0.0, %v787
      %v789 = vpop.f32.mrb[0].mxu0
      %790 = vmatprep.mubr.bf16.mxu0 0
      %791 = vmatmul.mubr.bf16.gmra.mrb[0].mxu0 %v707
      %v792 = vpop.f32.mrb[0].mxu0
      %v793 = vadd.f32 0.0, %v792
      %v794 = vpop.f32.mrb[0].mxu0
      %v795 = vpop.f32.mrb[0].mxu0
      %v796 = vadd.f32 0.0, %v795
      %v797 = vpop.f32.mrb[0].mxu0
      %798 = vmatprep.mubr.bf16.mxu0 0
      %799 = vmatmul.mubr.bf16.gmra.mrb[0].mxu0 %v710
      %v800 = vpop.f32.mrb[0].mxu0
      %v801 = vadd.f32 0.0, %v800
      %v802 = vpop.f32.mrb[0].mxu0
      %v803 = vpop.f32.mrb[0].mxu0
      %v804 = vadd.f32 0.0, %v803
      %v805 = vpop.f32.mrb[0].mxu0
      %806 = vmatprep.mubr.bf16.mxu0 0
      %807 = vmatmul.mubr.bf16.gmra.mrb[0].mxu0 %v713
      %v808 = vpop.f32.mrb[0].mxu0
      %v809 = vadd.f32 0.0, %v808
      %v810 = vpop.f32.mrb[0].mxu0
      %v811 = vpop.f32.mrb[0].mxu0
      %v812 = vadd.f32 0.0, %v811
      %v813 = vpop.f32.mrb[0].mxu0
      %814 = vmatprep.mubr.bf16.mxu0 0
      %815 = vmatmul.mubr.bf16.gmra.mrb[0].mxu0 %v716
      %v816 = vpop.f32.mrb[0].mxu0
      %v817 = vadd.f32 0.0, %v816
      %v818 = vpop.f32.mrb[0].mxu0
      %v819 = vpop.f32.mrb[0].mxu0
      %v820 = vadd.f32 0.0, %v819
      %v821 = vpop.f32.mrb[0].mxu0
      %822 = vmatprep.mubr.bf16.mxu0 0
      %823 = vmatmul.mubr.bf16.gmra.mrb[0].mxu0 %v719
      %v824 = vpop.f32.mrb[0].mxu0
      %v825 = vadd.f32 0.0, %v824
      %v826 = vpop.f32.mrb[0].mxu0
      %v827 = vpop.f32.mrb[0].mxu0
      %v828 = vadd.f32 0.0, %v827
      %v829 = vpop.f32.mrb[0].mxu0
      %830 = vmatprep.mubr.bf16.mxu0 0
      %831 = vmatmul.mubr.bf16.gmra.mrb[0].mxu0 %v722
      %v832 = vpop.f32.mrb[0].mxu0
      %v833 = vadd.f32 0.0, %v832
      %v834 = vpop.f32.mrb[0].mxu0
      %v835 = vpop.f32.mrb[0].mxu0
      %v836 = vadd.f32 0.0, %v835
      %v837 = vpop.f32.mrb[0].mxu0
      %838 = vmatprep.mubr.bf16.mxu0 0
      %839 = vmatmul.mubr.bf16.gmra.mrb[0].mxu0 %v725
      %v840 = vpop.f32.mrb[0].mxu0
      %v841 = vadd.f32 0.0, %v840
      %v842 = vpop.f32.mrb[0].mxu0
      %v843 = vpop.f32.mrb[0].mxu0
      %v844 = vadd.f32 0.0, %v843
      %v845 = vpop.f32.mrb[0].mxu0
      %846 = vmatprep.mubr.bf16.mxu0 0
      %847 = vmatmul.mubr.bf16.gmra.mrb[0].mxu0 %v728
      %v848 = vpop.f32.mrb[0].mxu0
      %v849 = vadd.f32 0.0, %v848
      %v850 = vpop.f32.mrb[0].mxu0
      %v851 = vpop.f32.mrb[0].mxu0
      %v852 = vadd.f32 0.0, %v851
      %v853 = vpop.f32.mrb[0].mxu0
      %854 = vmatprep.mubr.bf16.mxu0 0
      %855 = vmatmul.mubr.bf16.gmra.mrb[0].mxu0 %v731
      %v856 = vpop.f32.mrb[0].mxu0
      %v857 = vadd.f32 0.0, %v856
      %v858 = vpop.f32.mrb[0].mxu0
      %v859 = vpop.f32.mrb[0].mxu0
      %v860 = vadd.f32 0.0, %v859
      %v861 = vpop.f32.mrb[0].mxu0
      %862 = vmatprep.mubr.bf16.mxu0 0
      %863 = vmatmul.mubr.bf16.gmra.mrb[0].mxu0 %v734
      %v864 = vpop.f32.mrb[0].mxu0
      %v865 = vadd.f32 0.0, %v864
      %v866 = vpop.f32.mrb[0].mxu0
      %v867 = vpop.f32.mrb[0].mxu0
      %v868 = vadd.f32 0.0, %v867
      %v869 = vpop.f32.mrb[0].mxu0
      %870 = vmatprep.mubr.bf16.mxu0 0
      %871 = vmatmul.mubr.bf16.gmra.mrb[0].mxu0 %v737
      %v872 = vpop.f32.mrb[0].mxu0
      %v873 = vadd.f32 0.0, %v872
      %v874 = vpop.f32.mrb[0].mxu0
      %v875 = vpop.f32.mrb[0].mxu0
      %v876 = vpop.f32.mrb[0].mxu0
      %877 = vdwg.mxu0
      %v878 = vadd.f32 %v646, %v777
      %v879 = vadd.f32 %v647, %v780
      %v880 = vadd.f32 %v648, %v785
      %v881 = vadd.f32 %v649, %v788
      %v882 = vadd.f32 %v650, %v793
      %v883 = vadd.f32 %v651, %v796
      %v884 = vadd.f32 %v652, %v801
      %v885 = vadd.f32 %v653, %v804
      %v886 = vadd.f32 %v654, %v809
      %v887 = vadd.f32 %v655, %v812
      %v888 = vadd.f32 %v656, %v817
      %v889 = vadd.f32 %v657, %v820
      %v890 = vadd.f32 %v658, %v825
      %v891 = vadd.f32 %v659, %v828
      %v892 = vadd.f32 %v660, %v833
      %v893 = vadd.f32 %v661, %v836
      %v894 = vadd.f32 %v662, %v841
      %v895 = vadd.f32 %v663, %v844
      %v896 = vadd.f32 %v664, %v849
      %v897 = vadd.f32 %v665, %v852
      %v898 = vadd.f32 %v666, %v857
      %v899 = vadd.f32 %v667, %v860
      %v900 = vadd.f32 %v668, %v865
      %v901 = vadd.f32 %v669, %v868
      %v902 = vadd.f32 %v670, %v873
      %s903 = scalar_lea.vmem %s274, 8
      %v904 = vld [vmem:[%s903] sm:$0xf]
      %vm905 = vcmask 1045504
      %v906 = vrot.slane %v397, 2
      %v907 = vrot.slane %v398, 2
      %v908 = vsel %vm905, %v906, %v907
      %v909 = vrot.slane %v399, 2
      %v910 = vsel %vm905, %v907, %v909
      %v911 = vrot.slane %v400, 2
      %v912 = vsel %vm905, %v909, %v911
      %v913 = vrot.slane %v401, 2
      %v914 = vsel %vm905, %v911, %v913
      %v915 = vrot.slane %v402, 2
      %v916 = vsel %vm905, %v913, %v915
      %v917 = vrot.slane %v403, 2
      %v918 = vsel %vm905, %v915, %v917
      %v919 = vrot.slane %v404, 2
      %v920 = vsel %vm905, %v917, %v919
      %v921 = vrot.slane %v405, 2
      %v922 = vsel %vm905, %v919, %v921
      %v923 = vrot.slane %v406, 2
      %v924 = vsel %vm905, %v921, %v923
      %v925 = vrot.slane %v407, 2
      %v926 = vsel %vm905, %v923, %v925
      %v927 = vrot.slane %v408, 2
      %v928 = vsel %vm905, %v925, %v927
      %v929 = vrot.slane %v441, 2
      %v930 = vsel %vm905, %v927, %v929
      %v932 = vsel %vm468, %v908, 0
      %v935 = vsel %vm468, %v910, 0
      %v938 = vsel %vm468, %v912, 0
      %v941 = vsel %vm468, %v914, 0
      %v944 = vsel %vm468, %v916, 0
      %v947 = vsel %vm468, %v918, 0
      %v950 = vsel %vm468, %v920, 0
      %v953 = vsel %vm468, %v922, 0
      %v956 = vsel %vm468, %v924, 0
      %v959 = vsel %vm468, %v926, 0
      %v962 = vsel %vm468, %v928, 0
      %v965 = vsel %vm468, %v930, 0
      %v968 = vsel %vm468, %v929, 0
      %v971 = vsel %vm438, %v904, 0
      %973 = vmatprep.subr.bf16.mxu0 0
      %974 = vmatpush1.bf16.msra.mxu0 %v971
      %975 = vmatprep.subr.bf16.mxu0 0
      %976 = vmatpush1.bf16.msra.mxu0 0
      %977 = vmatprep.subr.bf16.mxu0 0
      %978 = vmatpush1.bf16.msra.mxu0 0
      %979 = vmatprep.subr.bf16.mxu0 0
      %980 = vmatpush1.bf16.msra.mxu0 0
      %981 = vmatprep.subr.bf16.mxu0 0
      %982 = vmatpush1.bf16.msra.mxu0 0
      %983 = vmatprep.subr.bf16.mxu0 0
      %984 = vmatpush1.bf16.msra.mxu0 0
      %985 = vmatprep.subr.bf16.mxu0 0
      %986 = vmatpush1.bf16.msra.mxu0 0
      %987 = vmatprep.subr.bf16.mxu0 0
      %988 = vmatpush1.bf16.msra.mxu0 0
      %989 = vmatprep.subr.bf16.mxu0 0
      %990 = vmatpush1.bf16.msra.mxu0 0
      %991 = vmatprep.subr.bf16.mxu0 0
      %992 = vmatpush1.bf16.msra.mxu0 0
      %993 = vmatprep.subr.bf16.mxu0 0
      %994 = vmatpush1.bf16.msra.mxu0 0
      %995 = vmatprep.subr.bf16.mxu0 0
      %996 = vmatpush1.bf16.msra.mxu0 0
      %997 = vmatprep.subr.bf16.mxu0 0
      %998 = vmatpush1.bf16.msra.mxu0 0
      %999 = vmatprep.subr.bf16.mxu0 0
      %1000 = vmatpush1.bf16.msra.mxu0 0
      %1001 = vmatprep.subr.bf16.mxu0 0
      %1002 = vmatpush1.bf16.msra.mxu0 0
      %1003 = vmatprep.subr.bf16.mxu0 0
      %1004 = vmatpush1.bf16.msra.mxu0 0
      %1005 = vmatprep.mubr.bf16.mxu0 0
      %1006 = vmatmul.mubr.bf16.gmra.mrb[0].mxu0 %v932
      %v1007 = vpop.f32.mrb[0].mxu0
      %v1008 = vadd.f32 0.0, %v1007
      %v1009 = vpop.f32.mrb[0].mxu0
      %v1010 = vpop.f32.mrb[0].mxu0
      %v1011 = vadd.f32 0.0, %v1010
      %v1012 = vpop.f32.mrb[0].mxu0
      %1013 = vmatprep.mubr.bf16.mxu0 0
      %1014 = vmatmul.mubr.bf16.gmra.mrb[0].mxu0 %v935
      %v1015 = vpop.f32.mrb[0].mxu0
      %v1016 = vadd.f32 0.0, %v1015
      %v1017 = vpop.f32.mrb[0].mxu0
      %v1018 = vpop.f32.mrb[0].mxu0
      %v1019 = vadd.f32 0.0, %v1018
      %v1020 = vpop.f32.mrb[0].mxu0
      %1021 = vmatprep.mubr.bf16.mxu0 0
      %1022 = vmatmul.mubr.bf16.gmra.mrb[0].mxu0 %v938
      %v1023 = vpop.f32.mrb[0].mxu0
      %v1024 = vadd.f32 0.0, %v1023
      %v1025 = vpop.f32.mrb[0].mxu0
      %v1026 = vpop.f32.mrb[0].mxu0
      %v1027 = vadd.f32 0.0, %v1026
      %v1028 = vpop.f32.mrb[0].mxu0
      %1029 = vmatprep.mubr.bf16.mxu0 0
      %1030 = vmatmul.mubr.bf16.gmra.mrb[0].mxu0 %v941
      %v1031 = vpop.f32.mrb[0].mxu0
      %v1032 = vadd.f32 0.0, %v1031
      %v1033 = vpop.f32.mrb[0].mxu0
      %v1034 = vpop.f32.mrb[0].mxu0
      %v1035 = vadd.f32 0.0, %v1034
      %v1036 = vpop.f32.mrb[0].mxu0
      %1037 = vmatprep.mubr.bf16.mxu0 0
      %1038 = vmatmul.mubr.bf16.gmra.mrb[0].mxu0 %v944
      %v1039 = vpop.f32.mrb[0].mxu0
      %v1040 = vadd.f32 0.0, %v1039
      %v1041 = vpop.f32.mrb[0].mxu0
      %v1042 = vpop.f32.mrb[0].mxu0
      %v1043 = vadd.f32 0.0, %v1042
      %v1044 = vpop.f32.mrb[0].mxu0
      %1045 = vmatprep.mubr.bf16.mxu0 0
      %1046 = vmatmul.mubr.bf16.gmra.mrb[0].mxu0 %v947
      %v1047 = vpop.f32.mrb[0].mxu0
      %v1048 = vadd.f32 0.0, %v1047
      %v1049 = vpop.f32.mrb[0].mxu0
      %v1050 = vpop.f32.mrb[0].mxu0
      %v1051 = vadd.f32 0.0, %v1050
      %v1052 = vpop.f32.mrb[0].mxu0
      %1053 = vmatprep.mubr.bf16.mxu0 0
      %1054 = vmatmul.mubr.bf16.gmra.mrb[0].mxu0 %v950
      %v1055 = vpop.f32.mrb[0].mxu0
      %v1056 = vadd.f32 0.0, %v1055
      %v1057 = vpop.f32.mrb[0].mxu0
      %v1058 = vpop.f32.mrb[0].mxu0
      %v1059 = vadd.f32 0.0, %v1058
      %v1060 = vpop.f32.mrb[0].mxu0
      %1061 = vmatprep.mubr.bf16.mxu0 0
      %1062 = vmatmul.mubr.bf16.gmra.mrb[0].mxu0 %v953
      %v1063 = vpop.f32.mrb[0].mxu0
      %v1064 = vadd.f32 0.0, %v1063
      %v1065 = vpop.f32.mrb[0].mxu0
      %v1066 = vpop.f32.mrb[0].mxu0
      %v1067 = vadd.f32 0.0, %v1066
      %v1068 = vpop.f32.mrb[0].mxu0
      %1069 = vmatprep.mubr.bf16.mxu0 0
      %1070 = vmatmul.mubr.bf16.gmra.mrb[0].mxu0 %v956
      %v1071 = vpop.f32.mrb[0].mxu0
      %v1072 = vadd.f32 0.0, %v1071
      %v1073 = vpop.f32.mrb[0].mxu0
      %v1074 = vpop.f32.mrb[0].mxu0
      %v1075 = vadd.f32 0.0, %v1074
      %v1076 = vpop.f32.mrb[0].mxu0
      %1077 = vmatprep.mubr.bf16.mxu0 0
      %1078 = vmatmul.mubr.bf16.gmra.mrb[0].mxu0 %v959
      %v1079 = vpop.f32.mrb[0].mxu0
      %v1080 = vadd.f32 0.0, %v1079
      %v1081 = vpop.f32.mrb[0].mxu0
      %v1082 = vpop.f32.mrb[0].mxu0
      %v1083 = vadd.f32 0.0, %v1082
      %v1084 = vpop.f32.mrb[0].mxu0
      %1085 = vmatprep.mubr.bf16.mxu0 0
      %1086 = vmatmul.mubr.bf16.gmra.mrb[0].mxu0 %v962
      %v1087 = vpop.f32.mrb[0].mxu0
      %v1088 = vadd.f32 0.0, %v1087
      %v1089 = vpop.f32.mrb[0].mxu0
      %v1090 = vpop.f32.mrb[0].mxu0
      %v1091 = vadd.f32 0.0, %v1090
      %v1092 = vpop.f32.mrb[0].mxu0
      %1093 = vmatprep.mubr.bf16.mxu0 0
      %1094 = vmatmul.mubr.bf16.gmra.mrb[0].mxu0 %v965
      %v1095 = vpop.f32.mrb[0].mxu0
      %v1096 = vadd.f32 0.0, %v1095
      %v1097 = vpop.f32.mrb[0].mxu0
      %v1098 = vpop.f32.mrb[0].mxu0
      %v1099 = vadd.f32 0.0, %v1098
      %v1100 = vpop.f32.mrb[0].mxu0
      %1101 = vmatprep.mubr.bf16.mxu0 0
      %1102 = vmatmul.mubr.bf16.gmra.mrb[0].mxu0 %v968
      %v1103 = vpop.f32.mrb[0].mxu0
      %v1104 = vadd.f32 0.0, %v1103
      %v1105 = vpop.f32.mrb[0].mxu0
      %v1106 = vpop.f32.mrb[0].mxu0
      %v1107 = vpop.f32.mrb[0].mxu0
      %1108 = vdwg.mxu0
      %v1109 = vadd.f32 %v878, %v1008
      %v1110 = vadd.f32 %v879, %v1011
      %v1111 = vadd.f32 %v880, %v1016
      %v1112 = vadd.f32 %v881, %v1019
      %v1113 = vadd.f32 %v882, %v1024
      %v1114 = vadd.f32 %v883, %v1027
      %v1115 = vadd.f32 %v884, %v1032
      %v1116 = vadd.f32 %v885, %v1035
      %v1117 = vadd.f32 %v886, %v1040
      %v1118 = vadd.f32 %v887, %v1043
      %v1119 = vadd.f32 %v888, %v1048
      %v1120 = vadd.f32 %v889, %v1051
      %v1121 = vadd.f32 %v890, %v1056
      %v1122 = vadd.f32 %v891, %v1059
      %v1123 = vadd.f32 %v892, %v1064
      %v1124 = vadd.f32 %v893, %v1067
      %v1125 = vadd.f32 %v894, %v1072
      %v1126 = vadd.f32 %v895, %v1075
      %v1127 = vadd.f32 %v896, %v1080
      %v1128 = vadd.f32 %v897, %v1083
      %v1129 = vadd.f32 %v898, %v1088
      %v1130 = vadd.f32 %v899, %v1091
      %v1131 = vadd.f32 %v900, %v1096
      %v1132 = vadd.f32 %v901, %v1099
      %v1133 = vadd.f32 %v902, %v1104
      %s1134 = scalar_lea.vmem %s274, 12
      %v1135 = vld [vmem:[%s1134] sm:$0xf]
      %vm1136 = vcmask 1043456
      %v1137 = vrot.slane %v399, 4
      %v1138 = vrot.slane %v400, 4
      %v1139 = vsel %vm1136, %v1137, %v1138
      %v1140 = vrot.slane %v401, 4
      %v1141 = vsel %vm1136, %v1138, %v1140
      %v1142 = vrot.slane %v402, 4
      %v1143 = vsel %vm1136, %v1140, %v1142
      %v1144 = vrot.slane %v403, 4
      %v1145 = vsel %vm1136, %v1142, %v1144
      %v1146 = vrot.slane %v404, 4
      %v1147 = vsel %vm1136, %v1144, %v1146
      %v1148 = vrot.slane %v405, 4
      %v1149 = vsel %vm1136, %v1146, %v1148
      %v1150 = vrot.slane %v406, 4
      %v1151 = vsel %vm1136, %v1148, %v1150
      %v1152 = vrot.slane %v407, 4
      %v1153 = vsel %vm1136, %v1150, %v1152
      %v1154 = vrot.slane %v408, 4
      %v1155 = vsel %vm1136, %v1152, %v1154
      %v1156 = vrot.slane %v441, 4
      %v1157 = vsel %vm1136, %v1154, %v1156
      %v1158 = vrot.slane %v433, 4
      %v1159 = vsel %vm1136, %v1156, %v1158
      %v1160 = vrot.slane %v434, 4
      %v1161 = vsel %vm1136, %v1158, %v1160
      %v1163 = vsel %vm468, %v1139, 0
      %v1166 = vsel %vm468, %v1141, 0
      %v1169 = vsel %vm468, %v1143, 0
      %v1172 = vsel %vm468, %v1145, 0
      %v1175 = vsel %vm468, %v1147, 0
      %v1178 = vsel %vm468, %v1149, 0
      %v1181 = vsel %vm468, %v1151, 0
      %v1184 = vsel %vm468, %v1153, 0
      %v1187 = vsel %vm468, %v1155, 0
      %v1190 = vsel %vm468, %v1157, 0
      %v1193 = vsel %vm468, %v1159, 0
      %v1196 = vsel %vm468, %v1161, 0
      %v1199 = vsel %vm468, %v1160, 0
      %v1202 = vsel %vm438, %v1135, 0
      %1204 = vmatprep.subr.bf16.mxu0 0
      %1205 = vmatpush1.bf16.msra.mxu0 %v1202
      %1206 = vmatprep.subr.bf16.mxu0 0
      %1207 = vmatpush1.bf16.msra.mxu0 0
      %1208 = vmatprep.subr.bf16.mxu0 0
      %1209 = vmatpush1.bf16.msra.mxu0 0
      %1210 = vmatprep.subr.bf16.mxu0 0
      %1211 = vmatpush1.bf16.msra.mxu0 0
      %1212 = vmatprep.subr.bf16.mxu0 0
      %1213 = vmatpush1.bf16.msra.mxu0 0
      %1214 = vmatprep.subr.bf16.mxu0 0
      %1215 = vmatpush1.bf16.msra.mxu0 0
      %1216 = vmatprep.subr.bf16.mxu0 0
      %1217 = vmatpush1.bf16.msra.mxu0 0
      %1218 = vmatprep.subr.bf16.mxu0 0
      %1219 = vmatpush1.bf16.msra.mxu0 0
      %1220 = vmatprep.subr.bf16.mxu0 0
      %1221 = vmatpush1.bf16.msra.mxu0 0
      %1222 = vmatprep.subr.bf16.mxu0 0
      %1223 = vmatpush1.bf16.msra.mxu0 0
      %1224 = vmatprep.subr.bf16.mxu0 0
      %1225 = vmatpush1.bf16.msra.mxu0 0
      %1226 = vmatprep.subr.bf16.mxu0 0
      %1227 = vmatpush1.bf16.msra.mxu0 0
      %1228 = vmatprep.subr.bf16.mxu0 0
      %1229 = vmatpush1.bf16.msra.mxu0 0
      %1230 = vmatprep.subr.bf16.mxu0 0
      %1231 = vmatpush1.bf16.msra.mxu0 0
      %1232 = vmatprep.subr.bf16.mxu0 0
      %1233 = vmatpush1.bf16.msra.mxu0 0
      %1234 = vmatprep.subr.bf16.mxu0 0
      %1235 = vmatpush1.bf16.msra.mxu0 0
      %1236 = vmatprep.mubr.bf16.mxu0 0
      %1237 = vmatmul.mubr.bf16.gmra.mrb[0].mxu0 %v1163
      %v1238 = vpop.f32.mrb[0].mxu0
      %v1239 = vadd.f32 0.0, %v1238
      %v1240 = vpop.f32.mrb[0].mxu0
      %v1241 = vpop.f32.mrb[0].mxu0
      %v1242 = vadd.f32 0.0, %v1241
      %v1243 = vpop.f32.mrb[0].mxu0
      %1244 = vmatprep.mubr.bf16.mxu0 0
      %1245 = vmatmul.mubr.bf16.gmra.mrb[0].mxu0 %v1166
      %v1246 = vpop.f32.mrb[0].mxu0
      %v1247 = vadd.f32 0.0, %v1246
      %v1248 = vpop.f32.mrb[0].mxu0
      %v1249 = vpop.f32.mrb[0].mxu0
      %v1250 = vadd.f32 0.0, %v1249
      %v1251 = vpop.f32.mrb[0].mxu0
      %1252 = vmatprep.mubr.bf16.mxu0 0
      %1253 = vmatmul.mubr.bf16.gmra.mrb[0].mxu0 %v1169
      %v1254 = vpop.f32.mrb[0].mxu0
      %v1255 = vadd.f32 0.0, %v1254
      %v1256 = vpop.f32.mrb[0].mxu0
      %v1257 = vpop.f32.mrb[0].mxu0
      %v1258 = vadd.f32 0.0, %v1257
      %v1259 = vpop.f32.mrb[0].mxu0
      %1260 = vmatprep.mubr.bf16.mxu0 0
      %1261 = vmatmul.mubr.bf16.gmra.mrb[0].mxu0 %v1172
      %v1262 = vpop.f32.mrb[0].mxu0
      %v1263 = vadd.f32 0.0, %v1262
      %v1264 = vpop.f32.mrb[0].mxu0
      %v1265 = vpop.f32.mrb[0].mxu0
      %v1266 = vadd.f32 0.0, %v1265
      %v1267 = vpop.f32.mrb[0].mxu0
      %1268 = vmatprep.mubr.bf16.mxu0 0
      %1269 = vmatmul.mubr.bf16.gmra.mrb[0].mxu0 %v1175
      %v1270 = vpop.f32.mrb[0].mxu0
      %v1271 = vadd.f32 0.0, %v1270
      %v1272 = vpop.f32.mrb[0].mxu0
      %v1273 = vpop.f32.mrb[0].mxu0
      %v1274 = vadd.f32 0.0, %v1273
      %v1275 = vpop.f32.mrb[0].mxu0
      %1276 = vmatprep.mubr.bf16.mxu0 0
      %1277 = vmatmul.mubr.bf16.gmra.mrb[0].mxu0 %v1178
      %v1278 = vpop.f32.mrb[0].mxu0
      %v1279 = vadd.f32 0.0, %v1278
      %v1280 = vpop.f32.mrb[0].mxu0
      %v1281 = vpop.f32.mrb[0].mxu0
      %v1282 = vadd.f32 0.0, %v1281
      %v1283 = vpop.f32.mrb[0].mxu0
      %1284 = vmatprep.mubr.bf16.mxu0 0
      %1285 = vmatmul.mubr.bf16.gmra.mrb[0].mxu0 %v1181
      %v1286 = vpop.f32.mrb[0].mxu0
      %v1287 = vadd.f32 0.0, %v1286
      %v1288 = vpop.f32.mrb[0].mxu0
      %v1289 = vpop.f32.mrb[0].mxu0
      %v1290 = vadd.f32 0.0, %v1289
      %v1291 = vpop.f32.mrb[0].mxu0
      %1292 = vmatprep.mubr.bf16.mxu0 0
      %1293 = vmatmul.mubr.bf16.gmra.mrb[0].mxu0 %v1184
      %v1294 = vpop.f32.mrb[0].mxu0
      %v1295 = vadd.f32 0.0, %v1294
      %v1296 = vpop.f32.mrb[0].mxu0
      %v1297 = vpop.f32.mrb[0].mxu0
      %v1298 = vadd.f32 0.0, %v1297
      %v1299 = vpop.f32.mrb[0].mxu0
      %1300 = vmatprep.mubr.bf16.mxu0 0
      %1301 = vmatmul.mubr.bf16.gmra.mrb[0].mxu0 %v1187
      %v1302 = vpop.f32.mrb[0].mxu0
      %v1303 = vadd.f32 0.0, %v1302
      %v1304 = vpop.f32.mrb[0].mxu0
      %v1305 = vpop.f32.mrb[0].mxu0
      %v1306 = vadd.f32 0.0, %v1305
      %v1307 = vpop.f32.mrb[0].mxu0
      %1308 = vmatprep.mubr.bf16.mxu0 0
      %1309 = vmatmul.mubr.bf16.gmra.mrb[0].mxu0 %v1190
      %v1310 = vpop.f32.mrb[0].mxu0
      %v1311 = vadd.f32 0.0, %v1310
      %v1312 = vpop.f32.mrb[0].mxu0
      %v1313 = vpop.f32.mrb[0].mxu0
      %v1314 = vadd.f32 0.0, %v1313
      %v1315 = vpop.f32.mrb[0].mxu0
      %1316 = vmatprep.mubr.bf16.mxu0 0
      %1317 = vmatmul.mubr.bf16.gmra.mrb[0].mxu0 %v1193
      %v1318 = vpop.f32.mrb[0].mxu0
      %v1319 = vadd.f32 0.0, %v1318
      %v1320 = vpop.f32.mrb[0].mxu0
      %v1321 = vpop.f32.mrb[0].mxu0
      %v1322 = vadd.f32 0.0, %v1321
      %v1323 = vpop.f32.mrb[0].mxu0
      %1324 = vmatprep.mubr.bf16.mxu0 0
      %1325 = vmatmul.mubr.bf16.gmra.mrb[0].mxu0 %v1196
      %v1326 = vpop.f32.mrb[0].mxu0
      %v1327 = vadd.f32 0.0, %v1326
      %v1328 = vpop.f32.mrb[0].mxu0
      %v1329 = vpop.f32.mrb[0].mxu0
      %v1330 = vadd.f32 0.0, %v1329
      %v1331 = vpop.f32.mrb[0].mxu0
      %1332 = vmatprep.mubr.bf16.mxu0 0
      %1333 = vmatmul.mubr.bf16.gmra.mrb[0].mxu0 %v1199
      %v1334 = vpop.f32.mrb[0].mxu0
      %v1335 = vadd.f32 0.0, %v1334
      %v1336 = vpop.f32.mrb[0].mxu0
      %v1337 = vpop.f32.mrb[0].mxu0
      %v1338 = vpop.f32.mrb[0].mxu0
      %1339 = vdwg.mxu0
      %v1340 = vadd.f32 %v1109, %v1239
      %v1341 = vadd.f32 %v1110, %v1242
      %v1342 = vadd.f32 %v1111, %v1247
      %v1343 = vadd.f32 %v1112, %v1250
      %v1344 = vadd.f32 %v1113, %v1255
      %v1345 = vadd.f32 %v1114, %v1258
      %v1346 = vadd.f32 %v1115, %v1263
      %v1347 = vadd.f32 %v1116, %v1266
      %v1348 = vadd.f32 %v1117, %v1271
      %v1349 = vadd.f32 %v1118, %v1274
      %v1350 = vadd.f32 %v1119, %v1279
      %v1351 = vadd.f32 %v1120, %v1282
      %v1352 = vadd.f32 %v1121, %v1287
      %v1353 = vadd.f32 %v1122, %v1290
      %v1354 = vadd.f32 %v1123, %v1295
      %v1355 = vadd.f32 %v1124, %v1298
      %v1356 = vadd.f32 %v1125, %v1303
      %v1357 = vadd.f32 %v1126, %v1306
      %v1358 = vadd.f32 %v1127, %v1311
      %v1359 = vadd.f32 %v1128, %v1314
      %v1360 = vadd.f32 %v1129, %v1319
      %v1361 = vadd.f32 %v1130, %v1322
      %v1362 = vadd.f32 %v1131, %v1327
      %v1363 = vadd.f32 %v1132, %v1330
      %v1364 = vadd.f32 %v1133, %v1335
      %s1365 = scalar_lea.vmem %s274, 16
      %v1366 = vld [vmem:[%s1365] sm:$0xf]
      %vm1367 = vcmask 1042432
      %v1368 = vrot.slane %v399, 5
      %v1369 = vrot.slane %v400, 5
      %v1370 = vsel %vm1367, %v1368, %v1369
      %v1371 = vrot.slane %v401, 5
      %v1372 = vsel %vm1367, %v1369, %v1371
      %v1373 = vrot.slane %v402, 5
      %v1374 = vsel %vm1367, %v1371, %v1373
      %v1375 = vrot.slane %v403, 5
      %v1376 = vsel %vm1367, %v1373, %v1375
      %v1377 = vrot.slane %v404, 5
      %v1378 = vsel %vm1367, %v1375, %v1377
      %v1379 = vrot.slane %v405, 5
      %v1380 = vsel %vm1367, %v1377, %v1379
      %v1381 = vrot.slane %v406, 5
      %v1382 = vsel %vm1367, %v1379, %v1381
      %v1383 = vrot.slane %v407, 5
      %v1384 = vsel %vm1367, %v1381, %v1383
      %v1385 = vrot.slane %v408, 5
      %v1386 = vsel %vm1367, %v1383, %v1385
      %v1387 = vrot.slane %v441, 5
      %v1388 = vsel %vm1367, %v1385, %v1387
      %v1389 = vrot.slane %v433, 5
      %v1390 = vsel %vm1367, %v1387, %v1389
      %v1391 = vrot.slane %v434, 5
      %v1392 = vsel %vm1367, %v1389, %v1391
      %v1393 = vrot.slane %v435, 5
      %v1394 = vsel %vm1367, %v1391, %v1393
      %v1396 = vsel %vm468, %v1370, 0
      %v1399 = vsel %vm468, %v1372, 0
      %v1402 = vsel %vm468, %v1374, 0
      %v1405 = vsel %vm468, %v1376, 0
      %v1408 = vsel %vm468, %v1378, 0
      %v1411 = vsel %vm468, %v1380, 0
      %v1414 = vsel %vm468, %v1382, 0
      %v1417 = vsel %vm468, %v1384, 0
      %v1420 = vsel %vm468, %v1386, 0
      %v1423 = vsel %vm468, %v1388, 0
      %v1426 = vsel %vm468, %v1390, 0
      %v1429 = vsel %vm468, %v1392, 0
      %v1432 = vsel %vm468, %v1394, 0
      %v1435 = vsel %vm438, %v1366, 0
      %1437 = vmatprep.subr.bf16.mxu0 0
      %1438 = vmatpush1.bf16.msra.mxu0 %v1435
      %1439 = vmatprep.subr.bf16.mxu0 0
      %1440 = vmatpush1.bf16.msra.mxu0 0
      %1441 = vmatprep.subr.bf16.mxu0 0
      %1442 = vmatpush1.bf16.msra.mxu0 0
      %1443 = vmatprep.subr.bf16.mxu0 0
      %1444 = vmatpush1.bf16.msra.mxu0 0
      %1445 = vmatprep.subr.bf16.mxu0 0
      %1446 = vmatpush1.bf16.msra.mxu0 0
      %1447 = vmatprep.subr.bf16.mxu0 0
      %1448 = vmatpush1.bf16.msra.mxu0 0
      %1449 = vmatprep.subr.bf16.mxu0 0
      %1450 = vmatpush1.bf16.msra.mxu0 0
      %1451 = vmatprep.subr.bf16.mxu0 0
      %1452 = vmatpush1.bf16.msra.mxu0 0
      %1453 = vmatprep.subr.bf16.mxu0 0
      %1454 = vmatpush1.bf16.msra.mxu0 0
      %1455 = vmatprep.subr.bf16.mxu0 0
      %1456 = vmatpush1.bf16.msra.mxu0 0
      %1457 = vmatprep.subr.bf16.mxu0 0
      %1458 = vmatpush1.bf16.msra.mxu0 0
      %1459 = vmatprep.subr.bf16.mxu0 0
      %1460 = vmatpush1.bf16.msra.mxu0 0
      %1461 = vmatprep.subr.bf16.mxu0 0
      %1462 = vmatpush1.bf16.msra.mxu0 0
      %1463 = vmatprep.subr.bf16.mxu0 0
      %1464 = vmatpush1.bf16.msra.mxu0 0
      %1465 = vmatprep.subr.bf16.mxu0 0
      %1466 = vmatpush1.bf16.msra.mxu0 0
      %1467 = vmatprep.subr.bf16.mxu0 0
      %1468 = vmatpush1.bf16.msra.mxu0 0
      %1469 = vmatprep.mubr.bf16.mxu0 0
      %1470 = vmatmul.mubr.bf16.gmra.mrb[0].mxu0 %v1396
      %v1471 = vpop.f32.mrb[0].mxu0
      %v1472 = vadd.f32 0.0, %v1471
      %v1473 = vpop.f32.mrb[0].mxu0
      %v1474 = vpop.f32.mrb[0].mxu0
      %v1475 = vadd.f32 0.0, %v1474
      %v1476 = vpop.f32.mrb[0].mxu0
      %1477 = vmatprep.mubr.bf16.mxu0 0
      %1478 = vmatmul.mubr.bf16.gmra.mrb[0].mxu0 %v1399
      %v1479 = vpop.f32.mrb[0].mxu0
      %v1480 = vadd.f32 0.0, %v1479
      %v1481 = vpop.f32.mrb[0].mxu0
      %v1482 = vpop.f32.mrb[0].mxu0
      %v1483 = vadd.f32 0.0, %v1482
      %v1484 = vpop.f32.mrb[0].mxu0
      %1485 = vmatprep.mubr.bf16.mxu0 0
      %1486 = vmatmul.mubr.bf16.gmra.mrb[0].mxu0 %v1402
      %v1487 = vpop.f32.mrb[0].mxu0
      %v1488 = vadd.f32 0.0, %v1487
      %v1489 = vpop.f32.mrb[0].mxu0
      %v1490 = vpop.f32.mrb[0].mxu0
      %v1491 = vadd.f32 0.0, %v1490
      %v1492 = vpop.f32.mrb[0].mxu0
      %1493 = vmatprep.mubr.bf16.mxu0 0
      %1494 = vmatmul.mubr.bf16.gmra.mrb[0].mxu0 %v1405
      %v1495 = vpop.f32.mrb[0].mxu0
      %v1496 = vadd.f32 0.0, %v1495
      %v1497 = vpop.f32.mrb[0].mxu0
      %v1498 = vpop.f32.mrb[0].mxu0
      %v1499 = vadd.f32 0.0, %v1498
      %v1500 = vpop.f32.mrb[0].mxu0
      %1501 = vmatprep.mubr.bf16.mxu0 0
      %1502 = vmatmul.mubr.bf16.gmra.mrb[0].mxu0 %v1408
      %v1503 = vpop.f32.mrb[0].mxu0
      %v1504 = vadd.f32 0.0, %v1503
      %v1505 = vpop.f32.mrb[0].mxu0
      %v1506 = vpop.f32.mrb[0].mxu0
      %v1507 = vadd.f32 0.0, %v1506
      %v1508 = vpop.f32.mrb[0].mxu0
      %1509 = vmatprep.mubr.bf16.mxu0 0
      %1510 = vmatmul.mubr.bf16.gmra.mrb[0].mxu0 %v1411
      %v1511 = vpop.f32.mrb[0].mxu0
      %v1512 = vadd.f32 0.0, %v1511
      %v1513 = vpop.f32.mrb[0].mxu0
      %v1514 = vpop.f32.mrb[0].mxu0
      %v1515 = vadd.f32 0.0, %v1514
      %v1516 = vpop.f32.mrb[0].mxu0
      %1517 = vmatprep.mubr.bf16.mxu0 0
      %1518 = vmatmul.mubr.bf16.gmra.mrb[0].mxu0 %v1414
      %v1519 = vpop.f32.mrb[0].mxu0
      %v1520 = vadd.f32 0.0, %v1519
      %v1521 = vpop.f32.mrb[0].mxu0
      %v1522 = vpop.f32.mrb[0].mxu0
      %v1523 = vadd.f32 0.0, %v1522
      %v1524 = vpop.f32.mrb[0].mxu0
      %1525 = vmatprep.mubr.bf16.mxu0 0
      %1526 = vmatmul.mubr.bf16.gmra.mrb[0].mxu0 %v1417
      %v1527 = vpop.f32.mrb[0].mxu0
      %v1528 = vadd.f32 0.0, %v1527
      %v1529 = vpop.f32.mrb[0].mxu0
      %v1530 = vpop.f32.mrb[0].mxu0
      %v1531 = vadd.f32 0.0, %v1530
      %v1532 = vpop.f32.mrb[0].mxu0
      %1533 = vmatprep.mubr.bf16.mxu0 0
      %1534 = vmatmul.mubr.bf16.gmra.mrb[0].mxu0 %v1420
      %v1535 = vpop.f32.mrb[0].mxu0
      %v1536 = vadd.f32 0.0, %v1535
      %v1537 = vpop.f32.mrb[0].mxu0
      %v1538 = vpop.f32.mrb[0].mxu0
      %v1539 = vadd.f32 0.0, %v1538
      %v1540 = vpop.f32.mrb[0].mxu0
      %1541 = vmatprep.mubr.bf16.mxu0 0
      %1542 = vmatmul.mubr.bf16.gmra.mrb[0].mxu0 %v1423
      %v1543 = vpop.f32.mrb[0].mxu0
      %v1544 = vadd.f32 0.0, %v1543
      %v1545 = vpop.f32.mrb[0].mxu0
      %v1546 = vpop.f32.mrb[0].mxu0
      %v1547 = vadd.f32 0.0, %v1546
      %v1548 = vpop.f32.mrb[0].mxu0
      %1549 = vmatprep.mubr.bf16.mxu0 0
      %1550 = vmatmul.mubr.bf16.gmra.mrb[0].mxu0 %v1426
      %v1551 = vpop.f32.mrb[0].mxu0
      %v1552 = vadd.f32 0.0, %v1551
      %v1553 = vpop.f32.mrb[0].mxu0
      %v1554 = vpop.f32.mrb[0].mxu0
      %v1555 = vadd.f32 0.0, %v1554
      %v1556 = vpop.f32.mrb[0].mxu0
      %1557 = vmatprep.mubr.bf16.mxu0 0
      %1558 = vmatmul.mubr.bf16.gmra.mrb[0].mxu0 %v1429
      %v1559 = vpop.f32.mrb[0].mxu0
      %v1560 = vadd.f32 0.0, %v1559
      %v1561 = vpop.f32.mrb[0].mxu0
      %v1562 = vpop.f32.mrb[0].mxu0
      %v1563 = vadd.f32 0.0, %v1562
      %v1564 = vpop.f32.mrb[0].mxu0
      %1565 = vmatprep.mubr.bf16.mxu0 0
      %1566 = vmatmul.mubr.bf16.gmra.mrb[0].mxu0 %v1432
      %v1567 = vpop.f32.mrb[0].mxu0
      %v1568 = vadd.f32 0.0, %v1567
      %v1569 = vpop.f32.mrb[0].mxu0
      %v1570 = vpop.f32.mrb[0].mxu0
      %v1571 = vpop.f32.mrb[0].mxu0
      %1572 = vdwg.mxu0
      %v1573 = vadd.f32 %v1340, %v1472
      %v1574 = vadd.f32 %v1341, %v1475
      %v1575 = vadd.f32 %v1342, %v1480
      %v1576 = vadd.f32 %v1343, %v1483
      %v1577 = vadd.f32 %v1344, %v1488
      %v1578 = vadd.f32 %v1345, %v1491
      %v1579 = vadd.f32 %v1346, %v1496
      %v1580 = vadd.f32 %v1347, %v1499
      %v1581 = vadd.f32 %v1348, %v1504
      %v1582 = vadd.f32 %v1349, %v1507
      %v1583 = vadd.f32 %v1350, %v1512
      %v1584 = vadd.f32 %v1351, %v1515
      %v1585 = vadd.f32 %v1352, %v1520
      %v1586 = vadd.f32 %v1353, %v1523
      %v1587 = vadd.f32 %v1354, %v1528
      %v1588 = vadd.f32 %v1355, %v1531
      %v1589 = vadd.f32 %v1356, %v1536
      %v1590 = vadd.f32 %v1357, %v1539
      %v1591 = vadd.f32 %v1358, %v1544
      %v1592 = vadd.f32 %v1359, %v1547
      %v1593 = vadd.f32 %v1360, %v1552
      %v1594 = vadd.f32 %v1361, %v1555
      %v1595 = vadd.f32 %v1362, %v1560
      %v1596 = vadd.f32 %v1363, %v1563
      %v1597 = vadd.f32 %v1364, %v1568
      %s1598 = scalar_lea.vmem %s274, 20
      %v1599 = vld [vmem:[%s1598] sm:$0xf]
      %vm1600 = vcmask 1041408
      %v1601 = vrot.slane %v399, 6
      %v1602 = vrot.slane %v400, 6
      %v1603 = vsel %vm1600, %v1601, %v1602
      %v1604 = vrot.slane %v401, 6
      %v1605 = vsel %vm1600, %v1602, %v1604
      %v1606 = vrot.slane %v402, 6
      %v1607 = vsel %vm1600, %v1604, %v1606
      %v1608 = vrot.slane %v403, 6
      %v1609 = vsel %vm1600, %v1606, %v1608
      %v1610 = vrot.slane %v404, 6
      %v1611 = vsel %vm1600, %v1608, %v1610
      %v1612 = vrot.slane %v405, 6
      %v1613 = vsel %vm1600, %v1610, %v1612
      %v1614 = vrot.slane %v406, 6
      %v1615 = vsel %vm1600, %v1612, %v1614
      %v1616 = vrot.slane %v407, 6
      %v1617 = vsel %vm1600, %v1614, %v1616
      %v1618 = vrot.slane %v408, 6
      %v1619 = vsel %vm1600, %v1616, %v1618
      %v1620 = vrot.slane %v441, 6
      %v1621 = vsel %vm1600, %v1618, %v1620
      %v1622 = vrot.slane %v433, 6
      %v1623 = vsel %vm1600, %v1620, %v1622
      %v1624 = vrot.slane %v434, 6
      %v1625 = vsel %vm1600, %v1622, %v1624
      %v1626 = vrot.slane %v435, 6
      %v1627 = vsel %vm1600, %v1624, %v1626
      %v1629 = vsel %vm468, %v1603, 0
      %v1632 = vsel %vm468, %v1605, 0
      %v1635 = vsel %vm468, %v1607, 0
      %v1638 = vsel %vm468, %v1609, 0
      %v1641 = vsel %vm468, %v1611, 0
      %v1644 = vsel %vm468, %v1613, 0
      %v1647 = vsel %vm468, %v1615, 0
      %v1650 = vsel %vm468, %v1617, 0
      %v1653 = vsel %vm468, %v1619, 0
      %v1656 = vsel %vm468, %v1621, 0
      %v1659 = vsel %vm468, %v1623, 0
      %v1662 = vsel %vm468, %v1625, 0
      %v1665 = vsel %vm468, %v1627, 0
      %v1668 = vsel %vm438, %v1599, 0
      %1670 = vmatprep.subr.bf16.mxu0 0
      %1671 = vmatpush1.bf16.msra.mxu0 %v1668
      %1672 = vmatprep.subr.bf16.mxu0 0
      %1673 = vmatpush1.bf16.msra.mxu0 0
      %1674 = vmatprep.subr.bf16.mxu0 0
      %1675 = vmatpush1.bf16.msra.mxu0 0
      %1676 = vmatprep.subr.bf16.mxu0 0
      %1677 = vmatpush1.bf16.msra.mxu0 0
      %1678 = vmatprep.subr.bf16.mxu0 0
      %1679 = vmatpush1.bf16.msra.mxu0 0
      %1680 = vmatprep.subr.bf16.mxu0 0
      %1681 = vmatpush1.bf16.msra.mxu0 0
      %1682 = vmatprep.subr.bf16.mxu0 0
      %1683 = vmatpush1.bf16.msra.mxu0 0
      %1684 = vmatprep.subr.bf16.mxu0 0
      %1685 = vmatpush1.bf16.msra.mxu0 0
      %1686 = vmatprep.subr.bf16.mxu0 0
      %1687 = vmatpush1.bf16.msra.mxu0 0
      %1688 = vmatprep.subr.bf16.mxu0 0
      %1689 = vmatpush1.bf16.msra.mxu0 0
      %1690 = vmatprep.subr.bf16.mxu0 0
      %1691 = vmatpush1.bf16.msra.mxu0 0
      %1692 = vmatprep.subr.bf16.mxu0 0
      %1693 = vmatpush1.bf16.msra.mxu0 0
      %1694 = vmatprep.subr.bf16.mxu0 0
      %1695 = vmatpush1.bf16.msra.mxu0 0
      %1696 = vmatprep.subr.bf16.mxu0 0
      %1697 = vmatpush1.bf16.msra.mxu0 0
      %1698 = vmatprep.subr.bf16.mxu0 0
      %1699 = vmatpush1.bf16.msra.mxu0 0
      %1700 = vmatprep.subr.bf16.mxu0 0
      %1701 = vmatpush1.bf16.msra.mxu0 0
      %1702 = vmatprep.mubr.bf16.mxu0 0
      %1703 = vmatmul.mubr.bf16.gmra.mrb[0].mxu0 %v1629
      %v1704 = vpop.f32.mrb[0].mxu0
      %v1705 = vadd.f32 0.0, %v1704
      %v1706 = vpop.f32.mrb[0].mxu0
      %v1707 = vpop.f32.mrb[0].mxu0
      %v1708 = vadd.f32 0.0, %v1707
      %v1709 = vpop.f32.mrb[0].mxu0
      %1710 = vmatprep.mubr.bf16.mxu0 0
      %1711 = vmatmul.mubr.bf16.gmra.mrb[0].mxu0 %v1632
      %v1712 = vpop.f32.mrb[0].mxu0
      %v1713 = vadd.f32 0.0, %v1712
      %v1714 = vpop.f32.mrb[0].mxu0
      %v1715 = vpop.f32.mrb[0].mxu0
      %v1716 = vadd.f32 0.0, %v1715
      %v1717 = vpop.f32.mrb[0].mxu0
      %1718 = vmatprep.mubr.bf16.mxu0 0
      %1719 = vmatmul.mubr.bf16.gmra.mrb[0].mxu0 %v1635
      %v1720 = vpop.f32.mrb[0].mxu0
      %v1721 = vadd.f32 0.0, %v1720
      %v1722 = vpop.f32.mrb[0].mxu0
      %v1723 = vpop.f32.mrb[0].mxu0
      %v1724 = vadd.f32 0.0, %v1723
      %v1725 = vpop.f32.mrb[0].mxu0
      %1726 = vmatprep.mubr.bf16.mxu0 0
      %1727 = vmatmul.mubr.bf16.gmra.mrb[0].mxu0 %v1638
      %v1728 = vpop.f32.mrb[0].mxu0
      %v1729 = vadd.f32 0.0, %v1728
      %v1730 = vpop.f32.mrb[0].mxu0
      %v1731 = vpop.f32.mrb[0].mxu0
      %v1732 = vadd.f32 0.0, %v1731
      %v1733 = vpop.f32.mrb[0].mxu0
      %1734 = vmatprep.mubr.bf16.mxu0 0
      %1735 = vmatmul.mubr.bf16.gmra.mrb[0].mxu0 %v1641
      %v1736 = vpop.f32.mrb[0].mxu0
      %v1737 = vadd.f32 0.0, %v1736
      %v1738 = vpop.f32.mrb[0].mxu0
      %v1739 = vpop.f32.mrb[0].mxu0
      %v1740 = vadd.f32 0.0, %v1739
      %v1741 = vpop.f32.mrb[0].mxu0
      %1742 = vmatprep.mubr.bf16.mxu0 0
      %1743 = vmatmul.mubr.bf16.gmra.mrb[0].mxu0 %v1644
      %v1744 = vpop.f32.mrb[0].mxu0
      %v1745 = vadd.f32 0.0, %v1744
      %v1746 = vpop.f32.mrb[0].mxu0
      %v1747 = vpop.f32.mrb[0].mxu0
      %v1748 = vadd.f32 0.0, %v1747
      %v1749 = vpop.f32.mrb[0].mxu0
      %1750 = vmatprep.mubr.bf16.mxu0 0
      %1751 = vmatmul.mubr.bf16.gmra.mrb[0].mxu0 %v1647
      %v1752 = vpop.f32.mrb[0].mxu0
      %v1753 = vadd.f32 0.0, %v1752
      %v1754 = vpop.f32.mrb[0].mxu0
      %v1755 = vpop.f32.mrb[0].mxu0
      %v1756 = vadd.f32 0.0, %v1755
      %v1757 = vpop.f32.mrb[0].mxu0
      %1758 = vmatprep.mubr.bf16.mxu0 0
      %1759 = vmatmul.mubr.bf16.gmra.mrb[0].mxu0 %v1650
      %v1760 = vpop.f32.mrb[0].mxu0
      %v1761 = vadd.f32 0.0, %v1760
      %v1762 = vpop.f32.mrb[0].mxu0
      %v1763 = vpop.f32.mrb[0].mxu0
      %v1764 = vadd.f32 0.0, %v1763
      %v1765 = vpop.f32.mrb[0].mxu0
      %1766 = vmatprep.mubr.bf16.mxu0 0
      %1767 = vmatmul.mubr.bf16.gmra.mrb[0].mxu0 %v1653
      %v1768 = vpop.f32.mrb[0].mxu0
      %v1769 = vadd.f32 0.0, %v1768
      %v1770 = vpop.f32.mrb[0].mxu0
      %v1771 = vpop.f32.mrb[0].mxu0
      %v1772 = vadd.f32 0.0, %v1771
      %v1773 = vpop.f32.mrb[0].mxu0
      %1774 = vmatprep.mubr.bf16.mxu0 0
      %1775 = vmatmul.mubr.bf16.gmra.mrb[0].mxu0 %v1656
      %v1776 = vpop.f32.mrb[0].mxu0
      %v1777 = vadd.f32 0.0, %v1776
      %v1778 = vpop.f32.mrb[0].mxu0
      %v1779 = vpop.f32.mrb[0].mxu0
      %v1780 = vadd.f32 0.0, %v1779
      %v1781 = vpop.f32.mrb[0].mxu0
      %1782 = vmatprep.mubr.bf16.mxu0 0
      %1783 = vmatmul.mubr.bf16.gmra.mrb[0].mxu0 %v1659
      %v1784 = vpop.f32.mrb[0].mxu0
      %v1785 = vadd.f32 0.0, %v1784
      %v1786 = vpop.f32.mrb[0].mxu0
      %v1787 = vpop.f32.mrb[0].mxu0
      %v1788 = vadd.f32 0.0, %v1787
      %v1789 = vpop.f32.mrb[0].mxu0
      %1790 = vmatprep.mubr.bf16.mxu0 0
      %1791 = vmatmul.mubr.bf16.gmra.mrb[0].mxu0 %v1662
      %v1792 = vpop.f32.mrb[0].mxu0
      %v1793 = vadd.f32 0.0, %v1792
      %v1794 = vpop.f32.mrb[0].mxu0
      %v1795 = vpop.f32.mrb[0].mxu0
      %v1796 = vadd.f32 0.0, %v1795
      %v1797 = vpop.f32.mrb[0].mxu0
      %1798 = vmatprep.mubr.bf16.mxu0 0
      %1799 = vmatmul.mubr.bf16.gmra.mrb[0].mxu0 %v1665
      %v1800 = vpop.f32.mrb[0].mxu0
      %v1801 = vadd.f32 0.0, %v1800
      %v1802 = vpop.f32.mrb[0].mxu0
      %v1803 = vpop.f32.mrb[0].mxu0
      %v1804 = vpop.f32.mrb[0].mxu0
      %1805 = vdwg.mxu0
      %v1806 = vadd.f32 %v1573, %v1705
      %v1807 = vadd.f32 %v1574, %v1708
      %v1808 = vadd.f32 %v1575, %v1713
      %v1809 = vadd.f32 %v1576, %v1716
      %v1810 = vadd.f32 %v1577, %v1721
      %v1811 = vadd.f32 %v1578, %v1724
      %v1812 = vadd.f32 %v1579, %v1729
      %v1813 = vadd.f32 %v1580, %v1732
      %v1814 = vadd.f32 %v1581, %v1737
      %v1815 = vadd.f32 %v1582, %v1740
      %v1816 = vadd.f32 %v1583, %v1745
      %v1817 = vadd.f32 %v1584, %v1748
      %v1818 = vadd.f32 %v1585, %v1753
      %v1819 = vadd.f32 %v1586, %v1756
      %v1820 = vadd.f32 %v1587, %v1761
      %v1821 = vadd.f32 %v1588, %v1764
      %v1822 = vadd.f32 %v1589, %v1769
      %v1823 = vadd.f32 %v1590, %v1772
      %v1824 = vadd.f32 %v1591, %v1777
      %v1825 = vadd.f32 %v1592, %v1780
      %v1826 = vadd.f32 %v1593, %v1785
      %v1827 = vadd.f32 %v1594, %v1788
      %v1828 = vadd.f32 %v1595, %v1793
      %v1829 = vadd.f32 %v1596, %v1796
      %v1830 = vadd.f32 %v1597, %v1801
      %s1831 = scalar_lea.vmem %s274, 24
      %v1832 = vld [vmem:[%s1831] sm:$0xf]
      %v1834 = vsel %vm468, %v433, 0
      %v1837 = vsel %vm468, %v434, 0
      %v1840 = vsel %vm468, %v435, 0
      %v1843 = vsel %vm468, %v436, 0
      %v1846 = vsel %vm468, %v437, 0
      %v1849 = vsel %vm438, %v1832, 0
      %1851 = vmatprep.subr.bf16.mxu0 0
      %1852 = vmatpush1.bf16.msra.mxu0 %v1849
      %1853 = vmatprep.subr.bf16.mxu0 0
      %1854 = vmatpush1.bf16.msra.mxu0 0
      %1855 = vmatprep.subr.bf16.mxu0 0
      %1856 = vmatpush1.bf16.msra.mxu0 0
      %1857 = vmatprep.subr.bf16.mxu0 0
      %1858 = vmatpush1.bf16.msra.mxu0 0
      %1859 = vmatprep.subr.bf16.mxu0 0
      %1860 = vmatpush1.bf16.msra.mxu0 0
      %1861 = vmatprep.subr.bf16.mxu0 0
      %1862 = vmatpush1.bf16.msra.mxu0 0
      %1863 = vmatprep.subr.bf16.mxu0 0
      %1864 = vmatpush1.bf16.msra.mxu0 0
      %1865 = vmatprep.subr.bf16.mxu0 0
      %1866 = vmatpush1.bf16.msra.mxu0 0
      %1867 = vmatprep.subr.bf16.mxu0 0
      %1868 = vmatpush1.bf16.msra.mxu0 0
      %1869 = vmatprep.subr.bf16.mxu0 0
      %1870 = vmatpush1.bf16.msra.mxu0 0
      %1871 = vmatprep.subr.bf16.mxu0 0
      %1872 = vmatpush1.bf16.msra.mxu0 0
      %1873 = vmatprep.subr.bf16.mxu0 0
      %1874 = vmatpush1.bf16.msra.mxu0 0
      %1875 = vmatprep.subr.bf16.mxu0 0
      %1876 = vmatpush1.bf16.msra.mxu0 0
      %1877 = vmatprep.subr.bf16.mxu0 0
      %1878 = vmatpush1.bf16.msra.mxu0 0
      %1879 = vmatprep.subr.bf16.mxu0 0
      %1880 = vmatpush1.bf16.msra.mxu0 0
      %1881 = vmatprep.subr.bf16.mxu0 0
      %1882 = vmatpush1.bf16.msra.mxu0 0
      %1883 = vmatprep.mubr.bf16.mxu0 0
      %1884 = vmatmul.mubr.bf16.gmra.mrb[0].mxu0 %v485
      %v1885 = vpop.f32.mrb[0].mxu0
      %v1886 = vadd.f32 0.0, %v1885
      %v1887 = vpop.f32.mrb[0].mxu0
      %v1888 = vpop.f32.mrb[0].mxu0
      %v1889 = vadd.f32 0.0, %v1888
      %v1890 = vpop.f32.mrb[0].mxu0
      %1891 = vmatprep.mubr.bf16.mxu0 0
      %1892 = vmatmul.mubr.bf16.gmra.mrb[0].mxu0 %v488
      %v1893 = vpop.f32.mrb[0].mxu0
      %v1894 = vadd.f32 0.0, %v1893
      %v1895 = vpop.f32.mrb[0].mxu0
      %v1896 = vpop.f32.mrb[0].mxu0
      %v1897 = vadd.f32 0.0, %v1896
      %v1898 = vpop.f32.mrb[0].mxu0
      %1899 = vmatprep.mubr.bf16.mxu0 0
      %1900 = vmatmul.mubr.bf16.gmra.mrb[0].mxu0 %v491
      %v1901 = vpop.f32.mrb[0].mxu0
      %v1902 = vadd.f32 0.0, %v1901
      %v1903 = vpop.f32.mrb[0].mxu0
      %v1904 = vpop.f32.mrb[0].mxu0
      %v1905 = vadd.f32 0.0, %v1904
      %v1906 = vpop.f32.mrb[0].mxu0
      %1907 = vmatprep.mubr.bf16.mxu0 0
      %1908 = vmatmul.mubr.bf16.gmra.mrb[0].mxu0 %v494
      %v1909 = vpop.f32.mrb[0].mxu0
      %v1910 = vadd.f32 0.0, %v1909
      %v1911 = vpop.f32.mrb[0].mxu0
      %v1912 = vpop.f32.mrb[0].mxu0
      %v1913 = vadd.f32 0.0, %v1912
      %v1914 = vpop.f32.mrb[0].mxu0
      %1915 = vmatprep.mubr.bf16.mxu0 0
      %1916 = vmatmul.mubr.bf16.gmra.mrb[0].mxu0 %v497
      %v1917 = vpop.f32.mrb[0].mxu0
      %v1918 = vadd.f32 0.0, %v1917
      %v1919 = vpop.f32.mrb[0].mxu0
      %v1920 = vpop.f32.mrb[0].mxu0
      %v1921 = vadd.f32 0.0, %v1920
      %v1922 = vpop.f32.mrb[0].mxu0
      %1923 = vmatprep.mubr.bf16.mxu0 0
      %1924 = vmatmul.mubr.bf16.gmra.mrb[0].mxu0 %v500
      %v1925 = vpop.f32.mrb[0].mxu0
      %v1926 = vadd.f32 0.0, %v1925
      %v1927 = vpop.f32.mrb[0].mxu0
      %v1928 = vpop.f32.mrb[0].mxu0
      %v1929 = vadd.f32 0.0, %v1928
      %v1930 = vpop.f32.mrb[0].mxu0
      %1931 = vmatprep.mubr.bf16.mxu0 0
      %1932 = vmatmul.mubr.bf16.gmra.mrb[0].mxu0 %v503
      %v1933 = vpop.f32.mrb[0].mxu0
      %v1934 = vadd.f32 0.0, %v1933
      %v1935 = vpop.f32.mrb[0].mxu0
      %v1936 = vpop.f32.mrb[0].mxu0
      %v1937 = vadd.f32 0.0, %v1936
      %v1938 = vpop.f32.mrb[0].mxu0
      %1939 = vmatprep.mubr.bf16.mxu0 0
      %1940 = vmatmul.mubr.bf16.gmra.mrb[0].mxu0 %v505
      %v1941 = vpop.f32.mrb[0].mxu0
      %v1942 = vadd.f32 0.0, %v1941
      %v1943 = vpop.f32.mrb[0].mxu0
      %v1944 = vpop.f32.mrb[0].mxu0
      %v1945 = vadd.f32 0.0, %v1944
      %v1946 = vpop.f32.mrb[0].mxu0
      %1947 = vmatprep.mubr.bf16.mxu0 0
      %1948 = vmatmul.mubr.bf16.gmra.mrb[0].mxu0 %v1834
      %v1949 = vpop.f32.mrb[0].mxu0
      %v1950 = vadd.f32 0.0, %v1949
      %v1951 = vpop.f32.mrb[0].mxu0
      %v1952 = vpop.f32.mrb[0].mxu0
      %v1953 = vadd.f32 0.0, %v1952
      %v1954 = vpop.f32.mrb[0].mxu0
      %1955 = vmatprep.mubr.bf16.mxu0 0
      %1956 = vmatmul.mubr.bf16.gmra.mrb[0].mxu0 %v1837
      %v1957 = vpop.f32.mrb[0].mxu0
      %v1958 = vadd.f32 0.0, %v1957
      %v1959 = vpop.f32.mrb[0].mxu0
      %v1960 = vpop.f32.mrb[0].mxu0
      %v1961 = vadd.f32 0.0, %v1960
      %v1962 = vpop.f32.mrb[0].mxu0
      %1963 = vmatprep.mubr.bf16.mxu0 0
      %1964 = vmatmul.mubr.bf16.gmra.mrb[0].mxu0 %v1840
      %v1965 = vpop.f32.mrb[0].mxu0
      %v1966 = vadd.f32 0.0, %v1965
      %v1967 = vpop.f32.mrb[0].mxu0
      %v1968 = vpop.f32.mrb[0].mxu0
      %v1969 = vadd.f32 0.0, %v1968
      %v1970 = vpop.f32.mrb[0].mxu0
      %1971 = vmatprep.mubr.bf16.mxu0 0
      %1972 = vmatmul.mubr.bf16.gmra.mrb[0].mxu0 %v1843
      %v1973 = vpop.f32.mrb[0].mxu0
      %v1974 = vadd.f32 0.0, %v1973
      %v1975 = vpop.f32.mrb[0].mxu0
      %v1976 = vpop.f32.mrb[0].mxu0
      %v1977 = vadd.f32 0.0, %v1976
      %v1978 = vpop.f32.mrb[0].mxu0
      %1979 = vmatprep.mubr.bf16.mxu0 0
      %1980 = vmatmul.mubr.bf16.gmra.mrb[0].mxu0 %v1846
      %v1981 = vpop.f32.mrb[0].mxu0
      %v1982 = vadd.f32 0.0, %v1981
      %v1983 = vpop.f32.mrb[0].mxu0
      %v1984 = vpop.f32.mrb[0].mxu0
      %v1985 = vpop.f32.mrb[0].mxu0
      %1986 = vdwg.mxu0
      %v1987 = vadd.f32 %v1806, %v1886
      %v1988 = vadd.f32 %v1807, %v1889
      %v1989 = vadd.f32 %v1808, %v1894
      %v1990 = vadd.f32 %v1809, %v1897
      %v1991 = vadd.f32 %v1810, %v1902
      %v1992 = vadd.f32 %v1811, %v1905
      %v1993 = vadd.f32 %v1812, %v1910
      %v1994 = vadd.f32 %v1813, %v1913
      %v1995 = vadd.f32 %v1814, %v1918
      %v1996 = vadd.f32 %v1815, %v1921
      %v1997 = vadd.f32 %v1816, %v1926
      %v1998 = vadd.f32 %v1817, %v1929
      %v1999 = vadd.f32 %v1818, %v1934
      %v2000 = vadd.f32 %v1819, %v1937
      %v2001 = vadd.f32 %v1820, %v1942
      %v2002 = vadd.f32 %v1821, %v1945
      %v2003 = vadd.f32 %v1822, %v1950
      %v2004 = vadd.f32 %v1823, %v1953
      %v2005 = vadd.f32 %v1824, %v1958
      %v2006 = vadd.f32 %v1825, %v1961
      %v2007 = vadd.f32 %v1826, %v1966
      %v2008 = vadd.f32 %v1827, %v1969
      %v2009 = vadd.f32 %v1828, %v1974
      %v2010 = vadd.f32 %v1829, %v1977
      %v2011 = vadd.f32 %v1830, %v1982
      %s2012 = scalar_lea.vmem %s274, 28
      %v2013 = vld [vmem:[%s2012] sm:$0xf]
      %v2014 = vrot.slane %v433, 1
      %v2015 = vsel %vm674, %v698, %v2014
      %v2016 = vrot.slane %v434, 1
      %v2017 = vsel %vm674, %v2014, %v2016
      %v2018 = vrot.slane %v435, 1
      %v2019 = vsel %vm674, %v2016, %v2018
      %v2020 = vrot.slane %v436, 1
      %v2021 = vsel %vm674, %v2018, %v2020
      %v2022 = vrot.slane %v437, 1
      %v2023 = vsel %vm674, %v2020, %v2022
      %v2025 = vsel %vm468, %v2015, 0
      %v2028 = vsel %vm468, %v2017, 0
      %v2031 = vsel %vm468, %v2019, 0
      %v2034 = vsel %vm468, %v2021, 0
      %v2037 = vsel %vm468, %v2023, 0
      %v2040 = vsel %vm468, %v2022, 0
      %v2043 = vsel %vm438, %v2013, 0
      %2045 = vmatprep.subr.bf16.mxu0 0
      %2046 = vmatpush1.bf16.msra.mxu0 %v2043
      %2047 = vmatprep.subr.bf16.mxu0 0
      %2048 = vmatpush1.bf16.msra.mxu0 0
      %2049 = vmatprep.subr.bf16.mxu0 0
      %2050 = vmatpush1.bf16.msra.mxu0 0
      %2051 = vmatprep.subr.bf16.mxu0 0
      %2052 = vmatpush1.bf16.msra.mxu0 0
      %2053 = vmatprep.subr.bf16.mxu0 0
      %2054 = vmatpush1.bf16.msra.mxu0 0
      %2055 = vmatprep.subr.bf16.mxu0 0
      %2056 = vmatpush1.bf16.msra.mxu0 0
      %2057 = vmatprep.subr.bf16.mxu0 0
      %2058 = vmatpush1.bf16.msra.mxu0 0
      %2059 = vmatprep.subr.bf16.mxu0 0
      %2060 = vmatpush1.bf16.msra.mxu0 0
      %2061 = vmatprep.subr.bf16.mxu0 0
      %2062 = vmatpush1.bf16.msra.mxu0 0
      %2063 = vmatprep.subr.bf16.mxu0 0
      %2064 = vmatpush1.bf16.msra.mxu0 0
      %2065 = vmatprep.subr.bf16.mxu0 0
      %2066 = vmatpush1.bf16.msra.mxu0 0
      %2067 = vmatprep.subr.bf16.mxu0 0
      %2068 = vmatpush1.bf16.msra.mxu0 0
      %2069 = vmatprep.subr.bf16.mxu0 0
      %2070 = vmatpush1.bf16.msra.mxu0 0
      %2071 = vmatprep.subr.bf16.mxu0 0
      %2072 = vmatpush1.bf16.msra.mxu0 0
      %2073 = vmatprep.subr.bf16.mxu0 0
      %2074 = vmatpush1.bf16.msra.mxu0 0
      %2075 = vmatprep.subr.bf16.mxu0 0
      %2076 = vmatpush1.bf16.msra.mxu0 0
      %2077 = vmatprep.mubr.bf16.mxu0 0
      %2078 = vmatmul.mubr.bf16.gmra.mrb[0].mxu0 %v716
      %v2079 = vpop.f32.mrb[0].mxu0
      %v2080 = vadd.f32 0.0, %v2079
      %v2081 = vpop.f32.mrb[0].mxu0
      %v2082 = vpop.f32.mrb[0].mxu0
      %v2083 = vadd.f32 0.0, %v2082
      %v2084 = vpop.f32.mrb[0].mxu0
      %2085 = vmatprep.mubr.bf16.mxu0 0
      %2086 = vmatmul.mubr.bf16.gmra.mrb[0].mxu0 %v719
      %v2087 = vpop.f32.mrb[0].mxu0
      %v2088 = vadd.f32 0.0, %v2087
      %v2089 = vpop.f32.mrb[0].mxu0
      %v2090 = vpop.f32.mrb[0].mxu0
      %v2091 = vadd.f32 0.0, %v2090
      %v2092 = vpop.f32.mrb[0].mxu0
      %2093 = vmatprep.mubr.bf16.mxu0 0
      %2094 = vmatmul.mubr.bf16.gmra.mrb[0].mxu0 %v722
      %v2095 = vpop.f32.mrb[0].mxu0
      %v2096 = vadd.f32 0.0, %v2095
      %v2097 = vpop.f32.mrb[0].mxu0
      %v2098 = vpop.f32.mrb[0].mxu0
      %v2099 = vadd.f32 0.0, %v2098
      %v2100 = vpop.f32.mrb[0].mxu0
      %2101 = vmatprep.mubr.bf16.mxu0 0
      %2102 = vmatmul.mubr.bf16.gmra.mrb[0].mxu0 %v725
      %v2103 = vpop.f32.mrb[0].mxu0
      %v2104 = vadd.f32 0.0, %v2103
      %v2105 = vpop.f32.mrb[0].mxu0
      %v2106 = vpop.f32.mrb[0].mxu0
      %v2107 = vadd.f32 0.0, %v2106
      %v2108 = vpop.f32.mrb[0].mxu0
      %2109 = vmatprep.mubr.bf16.mxu0 0
      %2110 = vmatmul.mubr.bf16.gmra.mrb[0].mxu0 %v728
      %v2111 = vpop.f32.mrb[0].mxu0
      %v2112 = vadd.f32 0.0, %v2111
      %v2113 = vpop.f32.mrb[0].mxu0
      %v2114 = vpop.f32.mrb[0].mxu0
      %v2115 = vadd.f32 0.0, %v2114
      %v2116 = vpop.f32.mrb[0].mxu0
      %2117 = vmatprep.mubr.bf16.mxu0 0
      %2118 = vmatmul.mubr.bf16.gmra.mrb[0].mxu0 %v731
      %v2119 = vpop.f32.mrb[0].mxu0
      %v2120 = vadd.f32 0.0, %v2119
      %v2121 = vpop.f32.mrb[0].mxu0
      %v2122 = vpop.f32.mrb[0].mxu0
      %v2123 = vadd.f32 0.0, %v2122
      %v2124 = vpop.f32.mrb[0].mxu0
      %2125 = vmatprep.mubr.bf16.mxu0 0
      %2126 = vmatmul.mubr.bf16.gmra.mrb[0].mxu0 %v734
      %v2127 = vpop.f32.mrb[0].mxu0
      %v2128 = vadd.f32 0.0, %v2127
      %v2129 = vpop.f32.mrb[0].mxu0
      %v2130 = vpop.f32.mrb[0].mxu0
      %v2131 = vadd.f32 0.0, %v2130
      %v2132 = vpop.f32.mrb[0].mxu0
      %2133 = vmatprep.mubr.bf16.mxu0 0
      %2134 = vmatmul.mubr.bf16.gmra.mrb[0].mxu0 %v2025
      %v2135 = vpop.f32.mrb[0].mxu0
      %v2136 = vadd.f32 0.0, %v2135
      %v2137 = vpop.f32.mrb[0].mxu0
      %v2138 = vpop.f32.mrb[0].mxu0
      %v2139 = vadd.f32 0.0, %v2138
      %v2140 = vpop.f32.mrb[0].mxu0
      %2141 = vmatprep.mubr.bf16.mxu0 0
      %2142 = vmatmul.mubr.bf16.gmra.mrb[0].mxu0 %v2028
      %v2143 = vpop.f32.mrb[0].mxu0
      %v2144 = vadd.f32 0.0, %v2143
      %v2145 = vpop.f32.mrb[0].mxu0
      %v2146 = vpop.f32.mrb[0].mxu0
      %v2147 = vadd.f32 0.0, %v2146
      %v2148 = vpop.f32.mrb[0].mxu0
      %2149 = vmatprep.mubr.bf16.mxu0 0
      %2150 = vmatmul.mubr.bf16.gmra.mrb[0].mxu0 %v2031
      %v2151 = vpop.f32.mrb[0].mxu0
      %v2152 = vadd.f32 0.0, %v2151
      %v2153 = vpop.f32.mrb[0].mxu0
      %v2154 = vpop.f32.mrb[0].mxu0
      %v2155 = vadd.f32 0.0, %v2154
      %v2156 = vpop.f32.mrb[0].mxu0
      %2157 = vmatprep.mubr.bf16.mxu0 0
      %2158 = vmatmul.mubr.bf16.gmra.mrb[0].mxu0 %v2034
      %v2159 = vpop.f32.mrb[0].mxu0
      %v2160 = vadd.f32 0.0, %v2159
      %v2161 = vpop.f32.mrb[0].mxu0
      %v2162 = vpop.f32.mrb[0].mxu0
      %v2163 = vadd.f32 0.0, %v2162
      %v2164 = vpop.f32.mrb[0].mxu0
      %2165 = vmatprep.mubr.bf16.mxu0 0
      %2166 = vmatmul.mubr.bf16.gmra.mrb[0].mxu0 %v2037
      %v2167 = vpop.f32.mrb[0].mxu0
      %v2168 = vadd.f32 0.0, %v2167
      %v2169 = vpop.f32.mrb[0].mxu0
      %v2170 = vpop.f32.mrb[0].mxu0
      %v2171 = vadd.f32 0.0, %v2170
      %v2172 = vpop.f32.mrb[0].mxu0
      %2173 = vmatprep.mubr.bf16.mxu0 0
      %2174 = vmatmul.mubr.bf16.gmra.mrb[0].mxu0 %v2040
      %v2175 = vpop.f32.mrb[0].mxu0
      %v2176 = vadd.f32 0.0, %v2175
      %v2177 = vpop.f32.mrb[0].mxu0
      %v2178 = vpop.f32.mrb[0].mxu0
      %v2179 = vpop.f32.mrb[0].mxu0
      %2180 = vdwg.mxu0
      %v2181 = vadd.f32 %v1987, %v2080
      %v2182 = vadd.f32 %v1988, %v2083
      %v2183 = vadd.f32 %v1989, %v2088
      %v2184 = vadd.f32 %v1990, %v2091
      %v2185 = vadd.f32 %v1991, %v2096
      %v2186 = vadd.f32 %v1992, %v2099
      %v2187 = vadd.f32 %v1993, %v2104
      %v2188 = vadd.f32 %v1994, %v2107
      %v2189 = vadd.f32 %v1995, %v2112
      %v2190 = vadd.f32 %v1996, %v2115
      %v2191 = vadd.f32 %v1997, %v2120
      %v2192 = vadd.f32 %v1998, %v2123
      %v2193 = vadd.f32 %v1999, %v2128
      %v2194 = vadd.f32 %v2000, %v2131
      %v2195 = vadd.f32 %v2001, %v2136
      %v2196 = vadd.f32 %v2002, %v2139
      %v2197 = vadd.f32 %v2003, %v2144
      %v2198 = vadd.f32 %v2004, %v2147
      %v2199 = vadd.f32 %v2005, %v2152
      %v2200 = vadd.f32 %v2006, %v2155
      %v2201 = vadd.f32 %v2007, %v2160
      %v2202 = vadd.f32 %v2008, %v2163
      %v2203 = vadd.f32 %v2009, %v2168
      %v2204 = vadd.f32 %v2010, %v2171
      %v2205 = vadd.f32 %v2011, %v2176
      %s2206 = scalar_lea.vmem %s274, 32
      %v2207 = vld [vmem:[%s2206] sm:$0xf]
      %v2208 = vrot.slane %v433, 2
      %v2209 = vsel %vm905, %v929, %v2208
      %v2210 = vrot.slane %v434, 2
      %v2211 = vsel %vm905, %v2208, %v2210
      %v2212 = vrot.slane %v435, 2
      %v2213 = vsel %vm905, %v2210, %v2212
      %v2214 = vrot.slane %v436, 2
      %v2215 = vsel %vm905, %v2212, %v2214
      %v2216 = vrot.slane %v437, 2
      %v2217 = vsel %vm905, %v2214, %v2216
      %v2219 = vsel %vm468, %v2209, 0
      %v2222 = vsel %vm468, %v2211, 0
      %v2225 = vsel %vm468, %v2213, 0
      %v2228 = vsel %vm468, %v2215, 0
      %v2231 = vsel %vm468, %v2217, 0
      %v2234 = vsel %vm468, %v2216, 0
      %v2237 = vsel %vm438, %v2207, 0
      %2239 = vmatprep.subr.bf16.mxu0 0
      %2240 = vmatpush1.bf16.msra.mxu0 %v2237
      %2241 = vmatprep.subr.bf16.mxu0 0
      %2242 = vmatpush1.bf16.msra.mxu0 0
      %2243 = vmatprep.subr.bf16.mxu0 0
      %2244 = vmatpush1.bf16.msra.mxu0 0
      %2245 = vmatprep.subr.bf16.mxu0 0
      %2246 = vmatpush1.bf16.msra.mxu0 0
      %2247 = vmatprep.subr.bf16.mxu0 0
      %2248 = vmatpush1.bf16.msra.mxu0 0
      %2249 = vmatprep.subr.bf16.mxu0 0
      %2250 = vmatpush1.bf16.msra.mxu0 0
      %2251 = vmatprep.subr.bf16.mxu0 0
      %2252 = vmatpush1.bf16.msra.mxu0 0
      %2253 = vmatprep.subr.bf16.mxu0 0
      %2254 = vmatpush1.bf16.msra.mxu0 0
      %2255 = vmatprep.subr.bf16.mxu0 0
      %2256 = vmatpush1.bf16.msra.mxu0 0
      %2257 = vmatprep.subr.bf16.mxu0 0
      %2258 = vmatpush1.bf16.msra.mxu0 0
      %2259 = vmatprep.subr.bf16.mxu0 0
      %2260 = vmatpush1.bf16.msra.mxu0 0
      %2261 = vmatprep.subr.bf16.mxu0 0
      %2262 = vmatpush1.bf16.msra.mxu0 0
      %2263 = vmatprep.subr.bf16.mxu0 0
      %2264 = vmatpush1.bf16.msra.mxu0 0
      %2265 = vmatprep.subr.bf16.mxu0 0
      %2266 = vmatpush1.bf16.msra.mxu0 0
      %2267 = vmatprep.subr.bf16.mxu0 0
      %2268 = vmatpush1.bf16.msra.mxu0 0
      %2269 = vmatprep.subr.bf16.mxu0 0
      %2270 = vmatpush1.bf16.msra.mxu0 0
      %2271 = vmatprep.mubr.bf16.mxu0 0
      %2272 = vmatmul.mubr.bf16.gmra.mrb[0].mxu0 %v947
      %v2273 = vpop.f32.mrb[0].mxu0
      %v2274 = vadd.f32 0.0, %v2273
      %v2275 = vpop.f32.mrb[0].mxu0
      %v2276 = vpop.f32.mrb[0].mxu0
      %v2277 = vadd.f32 0.0, %v2276
      %v2278 = vpop.f32.mrb[0].mxu0
      %2279 = vmatprep.mubr.bf16.mxu0 0
      %2280 = vmatmul.mubr.bf16.gmra.mrb[0].mxu0 %v950
      %v2281 = vpop.f32.mrb[0].mxu0
      %v2282 = vadd.f32 0.0, %v2281
      %v2283 = vpop.f32.mrb[0].mxu0
      %v2284 = vpop.f32.mrb[0].mxu0
      %v2285 = vadd.f32 0.0, %v2284
      %v2286 = vpop.f32.mrb[0].mxu0
      %2287 = vmatprep.mubr.bf16.mxu0 0
      %2288 = vmatmul.mubr.bf16.gmra.mrb[0].mxu0 %v953
      %v2289 = vpop.f32.mrb[0].mxu0
      %v2290 = vadd.f32 0.0, %v2289
      %v2291 = vpop.f32.mrb[0].mxu0
      %v2292 = vpop.f32.mrb[0].mxu0
      %v2293 = vadd.f32 0.0, %v2292
      %v2294 = vpop.f32.mrb[0].mxu0
      %2295 = vmatprep.mubr.bf16.mxu0 0
      %2296 = vmatmul.mubr.bf16.gmra.mrb[0].mxu0 %v956
      %v2297 = vpop.f32.mrb[0].mxu0
      %v2298 = vadd.f32 0.0, %v2297
      %v2299 = vpop.f32.mrb[0].mxu0
      %v2300 = vpop.f32.mrb[0].mxu0
      %v2301 = vadd.f32 0.0, %v2300
      %v2302 = vpop.f32.mrb[0].mxu0
      %2303 = vmatprep.mubr.bf16.mxu0 0
      %2304 = vmatmul.mubr.bf16.gmra.mrb[0].mxu0 %v959
      %v2305 = vpop.f32.mrb[0].mxu0
      %v2306 = vadd.f32 0.0, %v2305
      %v2307 = vpop.f32.mrb[0].mxu0
      %v2308 = vpop.f32.mrb[0].mxu0
      %v2309 = vadd.f32 0.0, %v2308
      %v2310 = vpop.f32.mrb[0].mxu0
      %2311 = vmatprep.mubr.bf16.mxu0 0
      %2312 = vmatmul.mubr.bf16.gmra.mrb[0].mxu0 %v962
      %v2313 = vpop.f32.mrb[0].mxu0
      %v2314 = vadd.f32 0.0, %v2313
      %v2315 = vpop.f32.mrb[0].mxu0
      %v2316 = vpop.f32.mrb[0].mxu0
      %v2317 = vadd.f32 0.0, %v2316
      %v2318 = vpop.f32.mrb[0].mxu0
      %2319 = vmatprep.mubr.bf16.mxu0 0
      %2320 = vmatmul.mubr.bf16.gmra.mrb[0].mxu0 %v965
      %v2321 = vpop.f32.mrb[0].mxu0
      %v2322 = vadd.f32 0.0, %v2321
      %v2323 = vpop.f32.mrb[0].mxu0
      %v2324 = vpop.f32.mrb[0].mxu0
      %v2325 = vadd.f32 0.0, %v2324
      %v2326 = vpop.f32.mrb[0].mxu0
      %2327 = vmatprep.mubr.bf16.mxu0 0
      %2328 = vmatmul.mubr.bf16.gmra.mrb[0].mxu0 %v2219
      %v2329 = vpop.f32.mrb[0].mxu0
      %v2330 = vadd.f32 0.0, %v2329
      %v2331 = vpop.f32.mrb[0].mxu0
      %v2332 = vpop.f32.mrb[0].mxu0
      %v2333 = vadd.f32 0.0, %v2332
      %v2334 = vpop.f32.mrb[0].mxu0
      %2335 = vmatprep.mubr.bf16.mxu0 0
      %2336 = vmatmul.mubr.bf16.gmra.mrb[0].mxu0 %v2222
      %v2337 = vpop.f32.mrb[0].mxu0
      %v2338 = vadd.f32 0.0, %v2337
      %v2339 = vpop.f32.mrb[0].mxu0
      %v2340 = vpop.f32.mrb[0].mxu0
      %v2341 = vadd.f32 0.0, %v2340
      %v2342 = vpop.f32.mrb[0].mxu0
      %2343 = vmatprep.mubr.bf16.mxu0 0
      %2344 = vmatmul.mubr.bf16.gmra.mrb[0].mxu0 %v2225
      %v2345 = vpop.f32.mrb[0].mxu0
      %v2346 = vadd.f32 0.0, %v2345
      %v2347 = vpop.f32.mrb[0].mxu0
      %v2348 = vpop.f32.mrb[0].mxu0
      %v2349 = vadd.f32 0.0, %v2348
      %v2350 = vpop.f32.mrb[0].mxu0
      %2351 = vmatprep.mubr.bf16.mxu0 0
      %2352 = vmatmul.mubr.bf16.gmra.mrb[0].mxu0 %v2228
      %v2353 = vpop.f32.mrb[0].mxu0
      %v2354 = vadd.f32 0.0, %v2353
      %v2355 = vpop.f32.mrb[0].mxu0
      %v2356 = vpop.f32.mrb[0].mxu0
      %v2357 = vadd.f32 0.0, %v2356
      %v2358 = vpop.f32.mrb[0].mxu0
      %2359 = vmatprep.mubr.bf16.mxu0 0
      %2360 = vmatmul.mubr.bf16.gmra.mrb[0].mxu0 %v2231
      %v2361 = vpop.f32.mrb[0].mxu0
      %v2362 = vadd.f32 0.0, %v2361
      %v2363 = vpop.f32.mrb[0].mxu0
      %v2364 = vpop.f32.mrb[0].mxu0
      %v2365 = vadd.f32 0.0, %v2364
      %v2366 = vpop.f32.mrb[0].mxu0
      %2367 = vmatprep.mubr.bf16.mxu0 0
      %2368 = vmatmul.mubr.bf16.gmra.mrb[0].mxu0 %v2234
      %v2369 = vpop.f32.mrb[0].mxu0
      %v2370 = vadd.f32 0.0, %v2369
      %v2371 = vpop.f32.mrb[0].mxu0
      %v2372 = vpop.f32.mrb[0].mxu0
      %v2373 = vpop.f32.mrb[0].mxu0
      %2374 = vdwg.mxu0
      %v2375 = vadd.f32 %v2181, %v2274
      %v2376 = vadd.f32 %v2182, %v2277
      %v2377 = vadd.f32 %v2183, %v2282
      %v2378 = vadd.f32 %v2184, %v2285
      %v2379 = vadd.f32 %v2185, %v2290
      %v2380 = vadd.f32 %v2186, %v2293
      %v2381 = vadd.f32 %v2187, %v2298
      %v2382 = vadd.f32 %v2188, %v2301
      %v2383 = vadd.f32 %v2189, %v2306
      %v2384 = vadd.f32 %v2190, %v2309
      %v2385 = vadd.f32 %v2191, %v2314
      %v2386 = vadd.f32 %v2192, %v2317
      %v2387 = vadd.f32 %v2193, %v2322
      %v2388 = vadd.f32 %v2194, %v2325
      %v2389 = vadd.f32 %v2195, %v2330
      %v2390 = vadd.f32 %v2196, %v2333
      %v2391 = vadd.f32 %v2197, %v2338
      %v2392 = vadd.f32 %v2198, %v2341
      %v2393 = vadd.f32 %v2199, %v2346
      %v2394 = vadd.f32 %v2200, %v2349
      %v2395 = vadd.f32 %v2201, %v2354
      %v2396 = vadd.f32 %v2202, %v2357
      %v2397 = vadd.f32 %v2203, %v2362
      %v2398 = vadd.f32 %v2204, %v2365
      %v2399 = vadd.f32 %v2205, %v2370
      %2400 = vst [vmem:[#allocation2] sm:$0xff] %v2375
      %2401 = vst [vmem:[#allocation2 + $0x8] sm:$0xff] %v2376
      %2402 = vst [vmem:[#allocation2 + $0x10] sm:$0xff] %v2377
      %2403 = vst [vmem:[#allocation2 + $0x18] sm:$0xff] %v2378
      %2404 = vst [vmem:[#allocation2 + $0x20] sm:$0xff] %v2379
      %2405 = vst [vmem:[#allocation2 + $0x28] sm:$0xff] %v2380
      %2406 = vst [vmem:[#allocation2 + $0x30] sm:$0xff] %v2381
      %2407 = vst [vmem:[#allocation2 + $0x38] sm:$0xff] %v2382
      %2408 = vst [vmem:[#allocation2 + $0x40] sm:$0xff] %v2383
      %2409 = vst [vmem:[#allocation2 + $0x48] sm:$0xff] %v2384
      %2410 = vst [vmem:[#allocation2 + $0x50] sm:$0xff] %v2385
      %2411 = vst [vmem:[#allocation2 + $0x58] sm:$0xff] %v2386
      %2412 = vst [vmem:[#allocation2 + $0x60] sm:$0xff] %v2387
      %2413 = vst [vmem:[#allocation2 + $0x68] sm:$0xff] %v2388
      %2414 = vst [vmem:[#allocation2 + $0x70] sm:$0xff] %v2389
      %2415 = vst [vmem:[#allocation2 + $0x78] sm:$0xff] %v2390
      %2416 = vst [vmem:[#allocation2 + $0x80] sm:$0xff] %v2391
      %2417 = vst [vmem:[#allocation2 + $0x88] sm:$0xff] %v2392
      %2418 = vst [vmem:[#allocation2 + $0x90] sm:$0xff] %v2393
      %2419 = vst [vmem:[#allocation2 + $0x98] sm:$0xff] %v2394
      %2420 = vst [vmem:[#allocation2 + $0xa0] sm:$0xff] %v2395
      %2421 = vst [vmem:[#allocation2 + $0xa8] sm:$0xff] %v2396
      %2422 = vst [vmem:[#allocation2 + $0xb0] sm:$0xff] %v2397
      %2423 = vst [vmem:[#allocation2 + $0xb8] sm:$0xff] %v2398
      %2424 = vst [vmem:[#allocation2 + $0xc0] sm:$0xff] %v2399
      // Predicated region
      $region41: #{brc_caspp_forward.5} parent=35 // pred_check
        %p2425 = pneg %p282
      $region42: #{brc_caspp_forward.5} parent=35 // pred_check_branch
        %2427 = sbr.rel (%p2425) target = $region44
      $region43: #{brc_caspp_forward.5} parent=35 // pred_region
        %v2428 = vld [vmem:[#allocation2] sm:$0xff]
        %v2429 = vld [vmem:[#allocation2 + $0x8] sm:$0xff]
        %v2430 = vld [vmem:[#allocation2 + $0x10] sm:$0xff]
        %v2431 = vld [vmem:[#allocation2 + $0x18] sm:$0xff]
        %v2432 = vld [vmem:[#allocation2 + $0x20] sm:$0xff]
        %v2433 = vld [vmem:[#allocation2 + $0x28] sm:$0xff]
        %v2434 = vld [vmem:[#allocation2 + $0x30] sm:$0xff]
        %v2435 = vld [vmem:[#allocation2 + $0x38] sm:$0xff]
        %v2436 = vld [vmem:[#allocation2 + $0x40] sm:$0xff]
        %v2437 = vld [vmem:[#allocation2 + $0x48] sm:$0xff]
        %v2438 = vld [vmem:[#allocation2 + $0x50] sm:$0xff]
        %v2439 = vld [vmem:[#allocation2 + $0x58] sm:$0xff]
        %v2440 = vld [vmem:[#allocation2 + $0x60] sm:$0xff]
        %v2441 = vld [vmem:[#allocation2 + $0x68] sm:$0xff]
        %v2442 = vld [vmem:[#allocation2 + $0x70] sm:$0xff]
        %v2443 = vld [vmem:[#allocation2 + $0x78] sm:$0xff]
        %v2444 = vld [vmem:[#allocation2 + $0x80] sm:$0xff]
        %v2445 = vld [vmem:[#allocation2 + $0x88] sm:$0xff]
        %v2446 = vld [vmem:[#allocation2 + $0x90] sm:$0xff]
        %v2447 = vld [vmem:[#allocation2 + $0x98] sm:$0xff]
        %v2448 = vld [vmem:[#allocation2 + $0xa0] sm:$0xff]
        %v2449 = vld [vmem:[#allocation2 + $0xa8] sm:$0xff]
        %v2450 = vld [vmem:[#allocation2 + $0xb0] sm:$0xff]
        %v2451 = vld [vmem:[#allocation2 + $0xb8] sm:$0xff]
        %v2452 = vld [vmem:[#allocation2 + $0xc0] sm:$0xff]
        %v2453 = vld [vmem:[%s3] sm:$0x1]
        %v2455 = vlaneseq
        %v2456 = vshrl.u32 %v2455, 7
        %v2457 = vsub.s32 0, %v2456
        %v2458 = vrot.slane %v2453, %v2457
        %v2460 = vadd.f32 %v2428, %v2458
        %v2461 = vadd.f32 %v2429, %v2458
        %v2462 = vadd.f32 %v2430, %v2458
        %v2463 = vadd.f32 %v2431, %v2458
        %v2464 = vadd.f32 %v2432, %v2458
        %v2465 = vadd.f32 %v2433, %v2458
        %v2466 = vadd.f32 %v2434, %v2458
        %v2467 = vadd.f32 %v2435, %v2458
        %v2468 = vadd.f32 %v2436, %v2458
        %v2469 = vadd.f32 %v2437, %v2458
        %v2470 = vadd.f32 %v2438, %v2458
        %v2471 = vadd.f32 %v2439, %v2458
        %v2472 = vadd.f32 %v2440, %v2458
        %v2473 = vadd.f32 %v2441, %v2458
        %v2474 = vadd.f32 %v2442, %v2458
        %v2475 = vadd.f32 %v2443, %v2458
        %v2476 = vadd.f32 %v2444, %v2458
        %v2477 = vadd.f32 %v2445, %v2458
        %v2478 = vadd.f32 %v2446, %v2458
        %v2479 = vadd.f32 %v2447, %v2458
        %v2480 = vadd.f32 %v2448, %v2458
        %v2481 = vadd.f32 %v2449, %v2458
        %v2482 = vadd.f32 %v2450, %v2458
        %v2483 = vadd.f32 %v2451, %v2458
        %v2484 = vadd.f32 %v2452, %v2458
        %v2485 = vpack.c.bf16 %v2461, %v2460
        %v2486 = vpack.c.bf16 %v2463, %v2462
        %v2487 = vpack.c.bf16 %v2465, %v2464
        %v2488 = vpack.c.bf16 %v2467, %v2466
        %v2489 = vpack.c.bf16 %v2469, %v2468
        %v2490 = vpack.c.bf16 %v2471, %v2470
        %v2491 = vpack.c.bf16 %v2473, %v2472
        %v2492 = vpack.c.bf16 %v2475, %v2474
        %v2493 = vpack.c.bf16 %v2477, %v2476
        %v2494 = vpack.c.bf16 %v2479, %v2478
        %v2495 = vpack.c.bf16 %v2481, %v2480
        %v2496 = vpack.c.bf16 %v2483, %v2482
        %v2497 = vpack.c.bf16 %v2484, %v2484
        %v2511 = vunpack.c.l.b16 %v2485
        %v2512 = vunpack.c.h.b16 %v2485
        %v2513 = vunpack.c.l.b16 %v2486
        %v2514 = vunpack.c.h.b16 %v2486
        %v2515 = vunpack.c.l.b16 %v2487
        %v2516 = vunpack.c.h.b16 %v2487
        %v2517 = vunpack.c.l.b16 %v2488
        %v2518 = vunpack.c.h.b16 %v2488
        %v2519 = vunpack.c.l.b16 %v2489
        %v2520 = vunpack.c.h.b16 %v2489
        %v2521 = vunpack.c.l.b16 %v2490
        %v2522 = vunpack.c.h.b16 %v2490
        %v2523 = vunpack.c.l.b16 %v2491
        %v2524 = vunpack.c.h.b16 %v2491
        %v2525 = vunpack.c.l.b16 %v2492
        %v2526 = vunpack.c.h.b16 %v2492
        %v2527 = vunpack.c.l.b16 %v2493
        %v2528 = vunpack.c.h.b16 %v2493
        %v2529 = vunpack.c.l.b16 %v2494
        %v2530 = vunpack.c.h.b16 %v2494
        %v2531 = vunpack.c.l.b16 %v2495
        %v2532 = vunpack.c.h.b16 %v2495
        %v2533 = vunpack.c.l.b16 %v2496
        %v2534 = vunpack.c.h.b16 %v2496
        %v2535 = vunpack.c.l.b16 %v2497
        %v2536 = vpack.c.b16 %v2511, %v2511
        %v2537 = vpack.c.b16 %v2512, %v2512
        %v2538 = vpack.c.b16 %v2513, %v2513
        %v2539 = vpack.c.b16 %v2514, %v2514
        %v2540 = vpack.c.b16 %v2515, %v2515
        %v2541 = vpack.c.b16 %v2516, %v2516
        %v2542 = vpack.c.b16 %v2517, %v2517
        %v2543 = vpack.c.b16 %v2518, %v2518
        %v2544 = vpack.c.b16 %v2519, %v2519
        %v2545 = vpack.c.b16 %v2520, %v2520
        %v2546 = vpack.c.b16 %v2521, %v2521
        %v2547 = vpack.c.b16 %v2522, %v2522
        %v2548 = vpack.c.b16 %v2523, %v2523
        %v2549 = vpack.c.b16 %v2524, %v2524
        %v2550 = vpack.c.b16 %v2525, %v2525
        %v2551 = vpack.c.b16 %v2526, %v2526
        %v2552 = vpack.c.b16 %v2527, %v2527
        %v2553 = vpack.c.b16 %v2528, %v2528
        %v2554 = vpack.c.b16 %v2529, %v2529
        %v2555 = vpack.c.b16 %v2530, %v2530
        %v2556 = vpack.c.b16 %v2531, %v2531
        %v2557 = vpack.c.b16 %v2532, %v2532
        %v2558 = vpack.c.b16 %v2533, %v2533
        %v2559 = vpack.c.b16 %v2534, %v2534
        %v2560 = vpack.c.b16 %v2535, %v2535
        %2586 = vst [vmem:[%s279] sm:$0xf] %v2536
        %2587 = vst [vmem:[%s279 + $0x4] sm:$0xf] %v2537
        %2588 = vst [vmem:[%s279 + $0x8] sm:$0xf] %v2538
        %2589 = vst [vmem:[%s279 + $0xc] sm:$0xf] %v2539
        %2590 = vst [vmem:[%s279 + $0x10] sm:$0xf] %v2540
        %2591 = vst [vmem:[%s279 + $0x14] sm:$0xf] %v2541
        %2592 = vst [vmem:[%s279 + $0x18] sm:$0xf] %v2542
        %2593 = vst [vmem:[%s279 + $0x1c] sm:$0xf] %v2543
        %2594 = vst [vmem:[%s279 + $0x20] sm:$0xf] %v2544
        %2595 = vst [vmem:[%s279 + $0x24] sm:$0xf] %v2545
        %2596 = vst [vmem:[%s279 + $0x28] sm:$0xf] %v2546
        %2597 = vst [vmem:[%s279 + $0x2c] sm:$0xf] %v2547
        %2598 = vst [vmem:[%s279 + $0x30] sm:$0xf] %v2548
        %2599 = vst [vmem:[%s279 + $0x34] sm:$0xf] %v2549
        %2600 = vst [vmem:[%s279 + $0x38] sm:$0xf] %v2550
        %2601 = vst [vmem:[%s279 + $0x3c] sm:$0xf] %v2551
        %2602 = vst [vmem:[%s279 + $0x40] sm:$0xf] %v2552
        %2603 = vst [vmem:[%s279 + $0x44] sm:$0xf] %v2553
        %2604 = vst [vmem:[%s279 + $0x48] sm:$0xf] %v2554
        %2605 = vst [vmem:[%s279 + $0x4c] sm:$0xf] %v2555
        %2606 = vst [vmem:[%s279 + $0x50] sm:$0xf] %v2556
        %2607 = vst [vmem:[%s279 + $0x54] sm:$0xf] %v2557
        %2608 = vst [vmem:[%s279 + $0x58] sm:$0xf] %v2558
        %2609 = vst [vmem:[%s279 + $0x5c] sm:$0xf] %v2559
        %2610 = vst [vmem:[%s279 + $0x60] sm:$0xf] %v2560
      $region44: #{brc_caspp_forward.5} parent=35 // pred_fallthru
        _
      %s2611 = smul.u32 25, %s19
      %p2612 = scmp.lt.s32.totalorder %s2611, 99
      %s2613 = scalar_select %p2612, %s2611, 99
      %s2614 = smul.addr %s2613, 4
      %s2615 = scalar_lea.vmem %s4, %s2614
      // Predicated region
      $region45: #{brc_caspp_forward.5} parent=35 // pred_check
        %p2616 = pneg %p150
      $region46: #{brc_caspp_forward.5} parent=35 // pred_check_branch
        %2618 = sbr.rel (%p2616) target = $region48
      $region47: #{brc_caspp_forward.5} parent=35 // pred_region
        %s2619 = smul.u32 25, %s19
      $region48: #{brc_caspp_forward.5} parent=35 // pred_fallthru
        _
    $region36: #{brc_caspp_forward.5} parent=5 // pred_fallthru
      _
    %p2620 = scmp.le.s32.totalorder 2, %s10
    // Predicated region
    $region49: #{brc_caspp_forward.5} parent=5 // pred_check
      %p2621 = pneg %p2620
    $region50: #{brc_caspp_forward.5} parent=5 // pred_check_branch
      %2623 = sbr.rel (%p2621) target = $region52
    $region51: #{brc_caspp_forward.5} parent=5 // pred_region
      %s2624 = ssub.s32 %s10, 2
      // Predicated region
      $region53: #{brc_caspp_forward.5} parent=51 // pred_check
        %p2625 = pneg %p156
      $region54: #{brc_caspp_forward.5} parent=51 // pred_check_branch
        %2627 = sbr.rel (%p2625) target = $region56
      $region55: #{brc_caspp_forward.5} parent=51 // pred_region
        %s2628 = smul.u32 25, %s21
        %p2629 = scmp.lt.s32.totalorder %s2628, 99
        %s2630 = scalar_select %p2629, %s2628, 99
        %s2631 = smul.addr %s2630, 4
        %s2632 = scalar_lea.vmem %s4, %s2631
      $region56: #{brc_caspp_forward.5} parent=51 // pred_fallthru
        _
    $region52: #{brc_caspp_forward.5} parent=5 // pred_fallthru
      _
  $region6: #{brc_caspp_forward.5} parent=0 // loop_footer
    %s14 = sadd.s32 1, %s10
  $region7: #{brc_caspp_forward.5} parent=0 // loop_footer_branch
    %9 = sbr.rel target = $region3
  $region8: #{brc_caspp_forward.5} parent=0 // loop_exit
    _

</llo_original>
